<compile_context>
chip_gen: v5e
topology: v5e:2x2
jax: 0.10.0
libtpu: 0.0.40
codegen_flags: <defaults>
</compile_context>

<pallas_src>
import functools

import numpy as np
import jax
import jax.numpy as jnp
from jax.experimental import pallas as pl
from jax.experimental.pallas import tpu as pltpu

C1, C2, C3 = 8, 16, 32

_CONV_LAYERS = (
    ("enc1a", 4, C1), ("enc1b", C1, C1),
    ("enc2a", C1, C2), ("enc2b", C2, C2),
    ("bot_a", C2, C3), ("bot_b", C3, C3),
    ("dec2a", C3 + C2, C2), ("dec2b", C2, C2),
    ("dec1a", C2 + C1, C1), ("dec1b", C1, C1),
    ("seg", C1, 1),
)


# ----------------------------------------------------------------------------
# Host-side constants (functions of H, W only; built with numpy -> jit consts)
# ----------------------------------------------------------------------------
def _tap_mask_np(H, W):
    """[9, H*W] f32: 1 where tap (dy,dx) stays inside the image, 0 at borders."""
    M = H * W
    r = np.arange(M) // W
    c = np.arange(M) % W
    m = np.ones((9, M), np.float32)
    for dy in (-1, 0, 1):
        for dx in (-1, 0, 1):
            k = (dy + 1) * 3 + (dx + 1)
            valid = (r + dy >= 0) & (r + dy < H) & (c + dx >= 0) & (c + dx < W)
            m[k] = valid.astype(np.float32)
    return m


def _pool_pick_np(H, W):
    """[H*W, (H/2)*(W/2)] one-hot: picks the top-left anchor of every 2x2 block."""
    p = np.zeros((H * W, (H // 2) * (W // 2)), np.float32)
    for r in range(H // 2):
        for c in range(W // 2):
            p[(2 * r) * W + 2 * c, r * (W // 2) + c] = 1.0
    return p


def _up_gather_np(h, w):
    """[h*w, (2h)*(2w)] one-hot: nearest-neighbour 2x upsample."""
    g = np.zeros((h * w, (2 * h) * (2 * w)), np.float32)
    for i in range((2 * h) * (2 * w)):
        rr, cc = i // (2 * w), i % (2 * w)
        g[(rr // 2) * w + (cc // 2), i] = 1.0
    return g


# ----------------------------------------------------------------------------
# In-kernel helpers (activations are f32 [C, H*W] slabs)
# ----------------------------------------------------------------------------
def _shift_lanes(x, s):
    """out[:, m] = x[:, (m + s) % M] for a static integer s (cyclic)."""
    M = x.shape[-1]
    s %= M
    if s == 0:
        return x
    if M % 128 == 0:
        # XLU lane rotate (jnp.roll semantics): shift M-s puts x[m+s] at m.
        return pltpu.roll(x, M - s, axis=1)
    # Tiny sub-vreg slabs: fall back to slice + concat.
    return jnp.concatenate([x[:, s:], x[:, :s]], axis=1)


def _conv3x3(parts, b_ref, W, mask, relu):
    """Fused-tap 3x3 'same' conv.

    parts: list of (x [Ci, M] f32, w_ref [Cout, 9*Ci] bf16).  More than one
           entry implements a skip-concat without materializing the concat slab.
    mask : [9, M] f32 per-tap validity (center row is all ones, skipped).
    One K = 9*Ci MXU dot per part; f32 accumulation; optional ReLU.
    """
    acc = None
    for x, w_ref in parts:
        taps = []
        for dy in (-1, 0, 1):
            for dx in (-1, 0, 1):
                k = (dy + 1) * 3 + (dx + 1)
                v = _shift_lanes(x, dy * W + dx)
                if k != 4:                      # center tap never wraps
                    v = v * mask[k:k + 1]
                taps.append(v.astype(jnp.bfloat16))
        patch = jnp.concatenate(taps, axis=0)   # [9*Ci, M] bf16
        d = jnp.dot(w_ref[...], patch, preferred_element_type=jnp.float32)
        acc = d if acc is None else acc + d
    acc = acc + b_ref[...]
    if relu:
        acc = jnp.maximum(acc, 0.0)
    return acc                                  # [Cout, M] f32


def _maxpool2(x, W, pick_ref):
    """2x2 max pool: f32 maxes of lane-shifted copies + one-hot subsample dot.
    Correct because the subsample only picks even (row, col) anchors and H, W
    are even, so the cyclic shifts never wrap into a picked position."""
    m1 = jnp.maximum(x, _shift_lanes(x, 1))
    m2 = jnp.maximum(m1, _shift_lanes(m1, W))
    return jnp.dot(m2.astype(jnp.bfloat16), pick_ref[...],
                   preferred_element_type=jnp.float32)


def _upsample2(x, up_ref):
    """Nearest-neighbour 2x upsample via one-hot gather dot."""
    return jnp.dot(x.astype(jnp.bfloat16), up_ref[...],
                   preferred_element_type=jnp.float32)


# ----------------------------------------------------------------------------
# Fused U-Net kernel: one grid step == one batch element, everything in VMEM
# ----------------------------------------------------------------------------
def _net4ch_kernel(x_ref,
                   w_e1a, b_e1a, w_e1b, b_e1b,
                   w_e2a, b_e2a, w_e2b, b_e2b,
                   w_ba, b_ba, w_bb, b_bb,
                   w_d2a_u, w_d2a_s, b_d2a, w_d2b, b_d2b,
                   w_d1a_u, w_d1a_s, b_d1a, w_d1b, b_d1b,
                   w_seg, b_seg,
                   mask1_ref, mask2_ref, mask4_ref,
                   pick1_ref, pick2_ref, up4_ref, up2_ref,
                   o_ref, *, W):
    W2, W4 = W // 2, W // 4
    mk1 = mask1_ref[...]
    mk2 = mask2_ref[...]
    mk4 = mask4_ref[...]

    x = x_ref[0]                                              # [4, M] f32

    # encoder
    e1 = _conv3x3([(x, w_e1a)], b_e1a, W, mk1, True)
    e1 = _conv3x3([(e1, w_e1b)], b_e1b, W, mk1, True)         # [C1, M]
    p1 = _maxpool2(e1, W, pick1_ref)                          # [C1, M/4]
    e2 = _conv3x3([(p1, w_e2a)], b_e2a, W2, mk2, True)
    e2 = _conv3x3([(e2, w_e2b)], b_e2b, W2, mk2, True)        # [C2, M/4]
    p2 = _maxpool2(e2, W2, pick2_ref)                         # [C2, M/16]

    # bottleneck
    bn = _conv3x3([(p2, w_ba)], b_ba, W4, mk4, True)
    bn = _conv3x3([(bn, w_bb)], b_bb, W4, mk4, True)          # [C3, M/16]

    # TODO(synk): smp.Unet's aux classification head (avgpool->dropout->linear)
    # is omitted: Net4CH.forward discards its logit, so it is dead work.

    # decoder; skip "concat" realized as two accumulated dots (no [Cu+Ce, M] slab)
    u2 = _upsample2(bn, up4_ref)                              # [C3, M/4]
    d2 = _conv3x3([(u2, w_d2a_u), (e2, w_d2a_s)], b_d2a, W2, mk2, True)
    d2 = _conv3x3([(d2, w_d2b)], b_d2b, W2, mk2, True)        # [C2, M/4]
    u1 = _upsample2(d2, up2_ref)                              # [C2, M]
    d1 = _conv3x3([(u1, w_d1a_u), (e1, w_d1a_s)], b_d1a, W, mk1, True)
    d1 = _conv3x3([(d1, w_d1b)], b_d1b, W, mk1, True)         # [C1, M]

    # segmentation head: 3x3 conv to 1 channel, no activation -> lane-dense [1, M]
    o_ref[0] = _conv3x3([(d1, w_seg)], b_seg, W, mk1, False).astype(o_ref.dtype)


# ----------------------------------------------------------------------------
# Parameters (deterministic synthetic init; canonical [9, Cout, Cin] f32 layout)
# ----------------------------------------------------------------------------
def _init_conv(key, cin, cout):
    k1, k2 = jax.random.split(key)
    w = jax.random.normal(k1, (9, cout, cin), jnp.float32) / ((9.0 * cin) ** 0.5)
    b = 0.01 * jax.random.normal(k2, (cout, 1), jnp.float32)
    return w, b


def init_params(key):
    keys = jax.random.split(key, len(_CONV_LAYERS))
    return {name: _init_conv(k, cin, cout)
            for (name, cin, cout), k in zip(_CONV_LAYERS, keys)}


# ----------------------------------------------------------------------------
# Net4CH.forward : image [B,4,H,W] f32 -> mask [B,1,H,W] f32
# ----------------------------------------------------------------------------
def net4ch_forward(params, image):
    B, Cin, H, W = image.shape
    assert H % 4 == 0 and W % 4 == 0, "H, W must be divisible by 4 (two pools)"
    M = H * W
    assert M % 128 == 0, "H*W must be a multiple of 128 for lane-dense blocks"

    # host-side weight layout: [9, Cout, Cin] -> [Cout, 9*Cin] bf16 (tap-major K)
    def fuse(w):
        return jnp.transpose(w, (1, 0, 2)).reshape(w.shape[1], -1).astype(jnp.bfloat16)

    wgt, bia = {}, {}
    for name, _, _ in _CONV_LAYERS:
        w, b = params[name]
        bia[name] = b
        if name == "dec2a":     # contraction split: upsampled block | skip block
            wgt["dec2a_u"], wgt["dec2a_s"] = fuse(w[:, :, :C3]), fuse(w[:, :, C3:])
        elif name == "dec1a":
            wgt["dec1a_u"], wgt["dec1a_s"] = fuse(w[:, :, :C2]), fuse(w[:, :, C2:])
        else:
            wgt[name] = fuse(w)

    # constants of (H, W): masks f32, pool/upsample one-hot matrices bf16
    mask1 = jnp.asarray(_tap_mask_np(H, W))
    mask2 = jnp.asarray(_tap_mask_np(H // 2, W // 2))
    mask4 = jnp.asarray(_tap_mask_np(H // 4, W // 4))
    pick1 = jnp.asarray(_pool_pick_np(H, W), jnp.bfloat16)
    pick2 = jnp.asarray(_pool_pick_np(H // 2, W // 2), jnp.bfloat16)
    up4 = jnp.asarray(_up_gather_np(H // 4, W // 4), jnp.bfloat16)
    up2 = jnp.asarray(_up_gather_np(H // 2, W // 2), jnp.bfloat16)

    x = image.reshape(B, Cin, M)   # NCHW -> channels-sublane / spatial-lane slab

    inputs = [x,
              wgt["enc1a"], bia["enc1a"], wgt["enc1b"], bia["enc1b"],
              wgt["enc2a"], bia["enc2a"], wgt["enc2b"], bia["enc2b"],
              wgt["bot_a"], bia["bot_a"], wgt["bot_b"], bia["bot_b"],
              wgt["dec2a_u"], wgt["dec2a_s"], bia["dec2a"],
              wgt["dec2b"], bia["dec2b"],
              wgt["dec1a_u"], wgt["dec1a_s"], bia["dec1a"],
              wgt["dec1b"], bia["dec1b"],
              wgt["seg"], bia["seg"],
              mask1, mask2, mask4, pick1, pick2, up4, up2]

    def const_spec(a):
        return pl.BlockSpec(a.shape, lambda b, _n=a.ndim: (0,) * _n)

    in_specs = [pl.BlockSpec((1, Cin, M), lambda b: (b, 0, 0))]
    in_specs += [const_spec(a) for a in inputs[1:]]

    # cost estimate: conv flops + pool/upsample one-hot matmul flops
    spatial = {"enc1a": M, "enc1b": M, "enc2a": M // 4, "enc2b": M // 4,
               "bot_a": M // 16, "bot_b": M // 16, "dec2a": M // 4,
               "dec2b": M // 4, "dec1a": M, "dec1b": M, "seg": M}
    flops = sum(2 * B * 9 * cin * cout * spatial[name]
                for name, cin, cout in _CONV_LAYERS)
    flops += 2 * B * (C1 * M * (M // 4) + C2 * (M // 4) * (M // 16)
                      + C3 * (M // 16) * (M // 4) + C2 * (M // 4) * M)
    bytes_accessed = sum(int(a.size) * a.dtype.itemsize for a in inputs) + B * M * 4

    # VMEM limit derived from the actual footprint (+margin), not hard-coded.
    const_bytes = sum(int(a.size) * a.dtype.itemsize for a in inputs[1:])
    act_bytes = 9 * (C3 + C2) * M * 2 + 8 * C3 * M * 4    # bf16 patches + f32 slabs
    vmem_bytes = 2 * (Cin * M * 4 + M * 4 + const_bytes) + 2 * act_bytes + (4 << 20)
    vmem_bytes = int(max(16 << 20, min(vmem_bytes, 48 << 20)))

    # TODO(synk): for large images on v7x (64 MiB VMEM) add a row-block grid axis
    # with halo handling instead of keeping the whole image resident per step.
    out = pl.pallas_call(
        functools.partial(_net4ch_kernel, W=W),
        out_shape=jax.ShapeDtypeStruct((B, 1, M), jnp.float32),
        grid=(B,),
        in_specs=in_specs,
        out_specs=pl.BlockSpec((1, 1, M), lambda b: (b, 0, 0)),
        compiler_params=pltpu.CompilerParams(
            dimension_semantics=("parallel",),     # B=2 -> both v7x TensorCores
            vmem_limit_bytes=vmem_bytes,
        ),
        cost_estimate=pl.CostEstimate(flops=int(flops), transcendentals=0,
                                      bytes_accessed=int(bytes_accessed)),
    )(*inputs)
    return out.reshape(B, 1, H, W)


if __name__ == "__main__":
    image = jax.random.normal(jax.random.PRNGKey(0), (2, 4, 16, 16), jnp.float32)
    params = init_params(jax.random.PRNGKey(42))

    fwd = jax.jit(net4ch_forward)
    mask = jax.block_until_ready(fwd(params, image))

    assert mask.shape == (2, 1, 16, 16), mask.shape
    assert mask.dtype == jnp.float32
    assert bool(jnp.all(jnp.isfinite(mask)))
    print("KERNEL_OK")
</pallas_src>

<mosaic_0001>
module attributes {stable_mosaic.version = 11 : i64} {
  func.func @_net4ch_kernel(%arg0: i32, %arg1: memref<1x4x256xf32, #tpu.memory_space<vmem>>, %arg2: memref<8x36xbf16, #tpu.memory_space<vmem>>, %arg3: memref<8x1xf32, #tpu.memory_space<vmem>>, %arg4: memref<8x72xbf16, #tpu.memory_space<vmem>>, %arg5: memref<8x1xf32, #tpu.memory_space<vmem>>, %arg6: memref<16x72xbf16, #tpu.memory_space<vmem>>, %arg7: memref<16x1xf32, #tpu.memory_space<vmem>>, %arg8: memref<16x144xbf16, #tpu.memory_space<vmem>>, %arg9: memref<16x1xf32, #tpu.memory_space<vmem>>, %arg10: memref<32x144xbf16, #tpu.memory_space<vmem>>, %arg11: memref<32x1xf32, #tpu.memory_space<vmem>>, %arg12: memref<32x288xbf16, #tpu.memory_space<vmem>>, %arg13: memref<32x1xf32, #tpu.memory_space<vmem>>, %arg14: memref<16x288xbf16, #tpu.memory_space<vmem>>, %arg15: memref<16x144xbf16, #tpu.memory_space<vmem>>, %arg16: memref<16x1xf32, #tpu.memory_space<vmem>>, %arg17: memref<16x144xbf16, #tpu.memory_space<vmem>>, %arg18: memref<16x1xf32, #tpu.memory_space<vmem>>, %arg19: memref<8x144xbf16, #tpu.memory_space<vmem>>, %arg20: memref<8x72xbf16, #tpu.memory_space<vmem>>, %arg21: memref<8x1xf32, #tpu.memory_space<vmem>>, %arg22: memref<8x72xbf16, #tpu.memory_space<vmem>>, %arg23: memref<8x1xf32, #tpu.memory_space<vmem>>, %arg24: memref<1x72xbf16, #tpu.memory_space<vmem>>, %arg25: memref<1x1xf32, #tpu.memory_space<vmem>>, %arg26: memref<9x256xf32, #tpu.memory_space<vmem>>, %arg27: memref<9x64xf32, #tpu.memory_space<vmem>>, %arg28: memref<9x16xf32, #tpu.memory_space<vmem>>, %arg29: memref<256x64xbf16, #tpu.memory_space<vmem>>, %arg30: memref<64x16xbf16, #tpu.memory_space<vmem>>, %arg31: memref<16x64xbf16, #tpu.memory_space<vmem>>, %arg32: memref<64x256xbf16, #tpu.memory_space<vmem>>, %arg33: memref<1x1x256xf32, #tpu.memory_space<vmem>>) attributes {dimension_semantics = [#tpu.dimension_semantics<parallel>], iteration_bounds = array<i64: 2>, scalar_prefetch = 0 : i64, scratch_operands = 0 : i64, tpu.core_type = #tpu.core_type<tc>, window_params = [{transform_indices = @transform_0, window_bounds = array<i64: 1, 4, 256>}, {pipeline_mode = #tpu.pipeline_mode<synchronous>, transform_indices = @transform_1, window_bounds = array<i64: 8, 36>}, {pipeline_mode = #tpu.pipeline_mode<synchronous>, transform_indices = @transform_2, window_bounds = array<i64: 8, 1>}, {pipeline_mode = #tpu.pipeline_mode<synchronous>, transform_indices = @transform_3, window_bounds = array<i64: 8, 72>}, {pipeline_mode = #tpu.pipeline_mode<synchronous>, transform_indices = @transform_4, window_bounds = array<i64: 8, 1>}, {pipeline_mode = #tpu.pipeline_mode<synchronous>, transform_indices = @transform_5, window_bounds = array<i64: 16, 72>}, {pipeline_mode = #tpu.pipeline_mode<synchronous>, transform_indices = @transform_6, window_bounds = array<i64: 16, 1>}, {pipeline_mode = #tpu.pipeline_mode<synchronous>, transform_indices = @transform_7, window_bounds = array<i64: 16, 144>}, {pipeline_mode = #tpu.pipeline_mode<synchronous>, transform_indices = @transform_8, window_bounds = array<i64: 16, 1>}, {pipeline_mode = #tpu.pipeline_mode<synchronous>, transform_indices = @transform_9, window_bounds = array<i64: 32, 144>}, {pipeline_mode = #tpu.pipeline_mode<synchronous>, transform_indices = @transform_10, window_bounds = array<i64: 32, 1>}, {pipeline_mode = #tpu.pipeline_mode<synchronous>, transform_indices = @transform_11, window_bounds = array<i64: 32, 288>}, {pipeline_mode = #tpu.pipeline_mode<synchronous>, transform_indices = @transform_12, window_bounds = array<i64: 32, 1>}, {pipeline_mode = #tpu.pipeline_mode<synchronous>, transform_indices = @transform_13, window_bounds = array<i64: 16, 288>}, {pipeline_mode = #tpu.pipeline_mode<synchronous>, transform_indices = @transform_14, window_bounds = array<i64: 16, 144>}, {pipeline_mode = #tpu.pipeline_mode<synchronous>, transform_indices = @transform_15, window_bounds = array<i64: 16, 1>}, {pipeline_mode = #tpu.pipeline_mode<synchronous>, transform_indices = @transform_16, window_bounds = array<i64: 16, 144>}, {pipeline_mode = #tpu.pipeline_mode<synchronous>, transform_indices = @transform_17, window_bounds = array<i64: 16, 1>}, {pipeline_mode = #tpu.pipeline_mode<synchronous>, transform_indices = @transform_18, window_bounds = array<i64: 8, 144>}, {pipeline_mode = #tpu.pipeline_mode<synchronous>, transform_indices = @transform_19, window_bounds = array<i64: 8, 72>}, {pipeline_mode = #tpu.pipeline_mode<synchronous>, transform_indices = @transform_20, window_bounds = array<i64: 8, 1>}, {pipeline_mode = #tpu.pipeline_mode<synchronous>, transform_indices = @transform_21, window_bounds = array<i64: 8, 72>}, {pipeline_mode = #tpu.pipeline_mode<synchronous>, transform_indices = @transform_22, window_bounds = array<i64: 8, 1>}, {pipeline_mode = #tpu.pipeline_mode<synchronous>, transform_indices = @transform_23, window_bounds = array<i64: 1, 72>}, {pipeline_mode = #tpu.pipeline_mode<synchronous>, transform_indices = @transform_24, window_bounds = array<i64: 1, 1>}, {pipeline_mode = #tpu.pipeline_mode<synchronous>, transform_indices = @transform_25, window_bounds = array<i64: 9, 256>}, {pipeline_mode = #tpu.pipeline_mode<synchronous>, transform_indices = @transform_26, window_bounds = array<i64: 9, 64>}, {pipeline_mode = #tpu.pipeline_mode<synchronous>, transform_indices = @transform_27, window_bounds = array<i64: 9, 16>}, {pipeline_mode = #tpu.pipeline_mode<synchronous>, transform_indices = @transform_28, window_bounds = array<i64: 256, 64>}, {pipeline_mode = #tpu.pipeline_mode<synchronous>, transform_indices = @transform_29, window_bounds = array<i64: 64, 16>}, {pipeline_mode = #tpu.pipeline_mode<synchronous>, transform_indices = @transform_30, window_bounds = array<i64: 16, 64>}, {pipeline_mode = #tpu.pipeline_mode<synchronous>, transform_indices = @transform_31, window_bounds = array<i64: 64, 256>}, {transform_indices = @transform_32, window_bounds = array<i64: 1, 1, 256>}]} {
    %c0 = arith.constant 0 : index
    %c0_0 = arith.constant 0 : index
    %0 = vector.load %arg26[%c0, %c0_0] : memref<9x256xf32, #tpu.memory_space<vmem>>, vector<9x256xf32>
    %c0_1 = arith.constant 0 : index
    %c0_2 = arith.constant 0 : index
    %1 = vector.load %arg27[%c0_1, %c0_2] : memref<9x64xf32, #tpu.memory_space<vmem>>, vector<9x64xf32>
    %c0_3 = arith.constant 0 : index
    %c0_4 = arith.constant 0 : index
    %2 = vector.load %arg28[%c0_3, %c0_4] : memref<9x16xf32, #tpu.memory_space<vmem>>, vector<9x16xf32>
    %c0_5 = arith.constant 0 : index
    %c0_6 = arith.constant 0 : index
    %c0_7 = arith.constant 0 : index
    %3 = vector.load %arg1[%c0_5, %c0_6, %c0_7] : memref<1x4x256xf32, #tpu.memory_space<vmem>>, vector<1x4x256xf32>
    %4 = vector.shape_cast %3 : vector<1x4x256xf32> to vector<4x256xf32>
    %c17_i32 = arith.constant 17 : i32
    %5 = tpu.dynamic_rotate %4 by %c17_i32 dim 1 : vector<4x256xf32>, i32 -> vector<4x256xf32>
    %6 = vector.extract_strided_slice %0 {offsets = [0, 0], sizes = [1, 256], strides = [1, 1]} : vector<9x256xf32> to vector<1x256xf32>
    %7 = vector.broadcast %6 : vector<1x256xf32> to vector<4x256xf32>
    %8 = arith.mulf %5, %7 : vector<4x256xf32>
    %9 = arith.truncf %8 : vector<4x256xf32> to vector<4x256xbf16>
    %c16_i32 = arith.constant 16 : i32
    %10 = tpu.dynamic_rotate %4 by %c16_i32 dim 1 : vector<4x256xf32>, i32 -> vector<4x256xf32>
    %11 = vector.extract_strided_slice %0 {offsets = [1, 0], sizes = [1, 256], strides = [1, 1]} : vector<9x256xf32> to vector<1x256xf32>
    %12 = vector.broadcast %11 : vector<1x256xf32> to vector<4x256xf32>
    %13 = arith.mulf %10, %12 : vector<4x256xf32>
    %14 = arith.truncf %13 : vector<4x256xf32> to vector<4x256xbf16>
    %c15_i32 = arith.constant 15 : i32
    %15 = tpu.dynamic_rotate %4 by %c15_i32 dim 1 : vector<4x256xf32>, i32 -> vector<4x256xf32>
    %16 = vector.extract_strided_slice %0 {offsets = [2, 0], sizes = [1, 256], strides = [1, 1]} : vector<9x256xf32> to vector<1x256xf32>
    %17 = vector.broadcast %16 : vector<1x256xf32> to vector<4x256xf32>
    %18 = arith.mulf %15, %17 : vector<4x256xf32>
    %19 = arith.truncf %18 : vector<4x256xf32> to vector<4x256xbf16>
    %c1_i32 = arith.constant 1 : i32
    %20 = tpu.dynamic_rotate %4 by %c1_i32 dim 1 : vector<4x256xf32>, i32 -> vector<4x256xf32>
    %21 = vector.extract_strided_slice %0 {offsets = [3, 0], sizes = [1, 256], strides = [1, 1]} : vector<9x256xf32> to vector<1x256xf32>
    %22 = vector.broadcast %21 : vector<1x256xf32> to vector<4x256xf32>
    %23 = arith.mulf %20, %22 : vector<4x256xf32>
    %24 = arith.truncf %23 : vector<4x256xf32> to vector<4x256xbf16>
    %25 = arith.truncf %4 : vector<4x256xf32> to vector<4x256xbf16>
    %c255_i32 = arith.constant 255 : i32
    %26 = tpu.dynamic_rotate %4 by %c255_i32 dim 1 : vector<4x256xf32>, i32 -> vector<4x256xf32>
    %27 = vector.extract_strided_slice %0 {offsets = [5, 0], sizes = [1, 256], strides = [1, 1]} : vector<9x256xf32> to vector<1x256xf32>
    %28 = vector.broadcast %27 : vector<1x256xf32> to vector<4x256xf32>
    %29 = arith.mulf %26, %28 : vector<4x256xf32>
    %30 = arith.truncf %29 : vector<4x256xf32> to vector<4x256xbf16>
    %c241_i32 = arith.constant 241 : i32
    %31 = tpu.dynamic_rotate %4 by %c241_i32 dim 1 : vector<4x256xf32>, i32 -> vector<4x256xf32>
    %32 = vector.extract_strided_slice %0 {offsets = [6, 0], sizes = [1, 256], strides = [1, 1]} : vector<9x256xf32> to vector<1x256xf32>
    %33 = vector.broadcast %32 : vector<1x256xf32> to vector<4x256xf32>
    %34 = arith.mulf %31, %33 : vector<4x256xf32>
    %35 = arith.truncf %34 : vector<4x256xf32> to vector<4x256xbf16>
    %c240_i32 = arith.constant 240 : i32
    %36 = tpu.dynamic_rotate %4 by %c240_i32 dim 1 : vector<4x256xf32>, i32 -> vector<4x256xf32>
    %37 = vector.extract_strided_slice %0 {offsets = [7, 0], sizes = [1, 256], strides = [1, 1]} : vector<9x256xf32> to vector<1x256xf32>
    %38 = vector.broadcast %37 : vector<1x256xf32> to vector<4x256xf32>
    %39 = arith.mulf %36, %38 : vector<4x256xf32>
    %40 = arith.truncf %39 : vector<4x256xf32> to vector<4x256xbf16>
    %c239_i32 = arith.constant 239 : i32
    %41 = tpu.dynamic_rotate %4 by %c239_i32 dim 1 : vector<4x256xf32>, i32 -> vector<4x256xf32>
    %42 = vector.extract_strided_slice %0 {offsets = [8, 0], sizes = [1, 256], strides = [1, 1]} : vector<9x256xf32> to vector<1x256xf32>
    %43 = vector.broadcast %42 : vector<1x256xf32> to vector<4x256xf32>
    %44 = arith.mulf %41, %43 : vector<4x256xf32>
    %45 = arith.truncf %44 : vector<4x256xf32> to vector<4x256xbf16>
    %46 = tpu.concatenate %9, %14, %19, %24, %25, %30, %35, %40, %45 in 0 : vector<4x256xbf16>, vector<4x256xbf16>, vector<4x256xbf16>, vector<4x256xbf16>, vector<4x256xbf16>, vector<4x256xbf16>, vector<4x256xbf16>, vector<4x256xbf16>, vector<4x256xbf16> -> vector<36x256xbf16>
    %c0_8 = arith.constant 0 : index
    %c0_9 = arith.constant 0 : index
    %47 = vector.load %arg2[%c0_8, %c0_9] : memref<8x36xbf16, #tpu.memory_space<vmem>>, vector<8x36xbf16>
    %cst = arith.constant dense<0.000000e+00> : vector<8x256xf32>
    %48 = tpu.matmul %47, %46, %cst {dimension_numbers = #tpu.dot_dimension_numbers<[1], [0], [0], [1], [0, 0, 1, 1], [], []>} : vector<8x36xbf16>, vector<36x256xbf16>, vector<8x256xf32> -> vector<8x256xf32>
    %c0_10 = arith.constant 0 : index
    %c0_11 = arith.constant 0 : index
    %49 = vector.load %arg3[%c0_10, %c0_11] : memref<8x1xf32, #tpu.memory_space<vmem>>, vector<8x1xf32>
    %50 = vector.broadcast %49 : vector<8x1xf32> to vector<8x256xf32>
    %51 = arith.addf %48, %50 : vector<8x256xf32>
    %cst_12 = arith.constant 0.000000e+00 : f32
    %52 = vector.broadcast %cst_12 : f32 to vector<8x256xf32>
    %53 = arith.maximumf %51, %52 : vector<8x256xf32>
    %c17_i32_13 = arith.constant 17 : i32
    %54 = tpu.dynamic_rotate %53 by %c17_i32_13 dim 1 : vector<8x256xf32>, i32 -> vector<8x256xf32>
    %55 = vector.extract_strided_slice %0 {offsets = [0, 0], sizes = [1, 256], strides = [1, 1]} : vector<9x256xf32> to vector<1x256xf32>
    %56 = vector.broadcast %55 : vector<1x256xf32> to vector<8x256xf32>
    %57 = arith.mulf %54, %56 : vector<8x256xf32>
    %58 = arith.truncf %57 : vector<8x256xf32> to vector<8x256xbf16>
    %c16_i32_14 = arith.constant 16 : i32
    %59 = tpu.dynamic_rotate %53 by %c16_i32_14 dim 1 : vector<8x256xf32>, i32 -> vector<8x256xf32>
    %60 = vector.extract_strided_slice %0 {offsets = [1, 0], sizes = [1, 256], strides = [1, 1]} : vector<9x256xf32> to vector<1x256xf32>
    %61 = vector.broadcast %60 : vector<1x256xf32> to vector<8x256xf32>
    %62 = arith.mulf %59, %61 : vector<8x256xf32>
    %63 = arith.truncf %62 : vector<8x256xf32> to vector<8x256xbf16>
    %c15_i32_15 = arith.constant 15 : i32
    %64 = tpu.dynamic_rotate %53 by %c15_i32_15 dim 1 : vector<8x256xf32>, i32 -> vector<8x256xf32>
    %65 = vector.extract_strided_slice %0 {offsets = [2, 0], sizes = [1, 256], strides = [1, 1]} : vector<9x256xf32> to vector<1x256xf32>
    %66 = vector.broadcast %65 : vector<1x256xf32> to vector<8x256xf32>
    %67 = arith.mulf %64, %66 : vector<8x256xf32>
    %68 = arith.truncf %67 : vector<8x256xf32> to vector<8x256xbf16>
    %c1_i32_16 = arith.constant 1 : i32
    %69 = tpu.dynamic_rotate %53 by %c1_i32_16 dim 1 : vector<8x256xf32>, i32 -> vector<8x256xf32>
    %70 = vector.extract_strided_slice %0 {offsets = [3, 0], sizes = [1, 256], strides = [1, 1]} : vector<9x256xf32> to vector<1x256xf32>
    %71 = vector.broadcast %70 : vector<1x256xf32> to vector<8x256xf32>
    %72 = arith.mulf %69, %71 : vector<8x256xf32>
    %73 = arith.truncf %72 : vector<8x256xf32> to vector<8x256xbf16>
    %74 = arith.truncf %53 : vector<8x256xf32> to vector<8x256xbf16>
    %c255_i32_17 = arith.constant 255 : i32
    %75 = tpu.dynamic_rotate %53 by %c255_i32_17 dim 1 : vector<8x256xf32>, i32 -> vector<8x256xf32>
    %76 = vector.extract_strided_slice %0 {offsets = [5, 0], sizes = [1, 256], strides = [1, 1]} : vector<9x256xf32> to vector<1x256xf32>
    %77 = vector.broadcast %76 : vector<1x256xf32> to vector<8x256xf32>
    %78 = arith.mulf %75, %77 : vector<8x256xf32>
    %79 = arith.truncf %78 : vector<8x256xf32> to vector<8x256xbf16>
    %c241_i32_18 = arith.constant 241 : i32
    %80 = tpu.dynamic_rotate %53 by %c241_i32_18 dim 1 : vector<8x256xf32>, i32 -> vector<8x256xf32>
    %81 = vector.extract_strided_slice %0 {offsets = [6, 0], sizes = [1, 256], strides = [1, 1]} : vector<9x256xf32> to vector<1x256xf32>
    %82 = vector.broadcast %81 : vector<1x256xf32> to vector<8x256xf32>
    %83 = arith.mulf %80, %82 : vector<8x256xf32>
    %84 = arith.truncf %83 : vector<8x256xf32> to vector<8x256xbf16>
    %c240_i32_19 = arith.constant 240 : i32
    %85 = tpu.dynamic_rotate %53 by %c240_i32_19 dim 1 : vector<8x256xf32>, i32 -> vector<8x256xf32>
    %86 = vector.extract_strided_slice %0 {offsets = [7, 0], sizes = [1, 256], strides = [1, 1]} : vector<9x256xf32> to vector<1x256xf32>
    %87 = vector.broadcast %86 : vector<1x256xf32> to vector<8x256xf32>
    %88 = arith.mulf %85, %87 : vector<8x256xf32>
    %89 = arith.truncf %88 : vector<8x256xf32> to vector<8x256xbf16>
    %c239_i32_20 = arith.constant 239 : i32
    %90 = tpu.dynamic_rotate %53 by %c239_i32_20 dim 1 : vector<8x256xf32>, i32 -> vector<8x256xf32>
    %91 = vector.extract_strided_slice %0 {offsets = [8, 0], sizes = [1, 256], strides = [1, 1]} : vector<9x256xf32> to vector<1x256xf32>
    %92 = vector.broadcast %91 : vector<1x256xf32> to vector<8x256xf32>
    %93 = arith.mulf %90, %92 : vector<8x256xf32>
    %94 = arith.truncf %93 : vector<8x256xf32> to vector<8x256xbf16>
    %95 = tpu.concatenate %58, %63, %68, %73, %74, %79, %84, %89, %94 in 0 : vector<8x256xbf16>, vector<8x256xbf16>, vector<8x256xbf16>, vector<8x256xbf16>, vector<8x256xbf16>, vector<8x256xbf16>, vector<8x256xbf16>, vector<8x256xbf16>, vector<8x256xbf16> -> vector<72x256xbf16>
    %c0_21 = arith.constant 0 : index
    %c0_22 = arith.constant 0 : index
    %96 = vector.load %arg4[%c0_21, %c0_22] : memref<8x72xbf16, #tpu.memory_space<vmem>>, vector<8x72xbf16>
    %cst_23 = arith.constant dense<0.000000e+00> : vector<8x256xf32>
    %97 = tpu.matmul %96, %95, %cst_23 {dimension_numbers = #tpu.dot_dimension_numbers<[1], [0], [0], [1], [0, 0, 1, 1], [], []>} : vector<8x72xbf16>, vector<72x256xbf16>, vector<8x256xf32> -> vector<8x256xf32>
    %c0_24 = arith.constant 0 : index
    %c0_25 = arith.constant 0 : index
    %98 = vector.load %arg5[%c0_24, %c0_25] : memref<8x1xf32, #tpu.memory_space<vmem>>, vector<8x1xf32>
    %99 = vector.broadcast %98 : vector<8x1xf32> to vector<8x256xf32>
    %100 = arith.addf %97, %99 : vector<8x256xf32>
    %cst_26 = arith.constant 0.000000e+00 : f32
    %101 = vector.broadcast %cst_26 : f32 to vector<8x256xf32>
    %102 = arith.maximumf %100, %101 : vector<8x256xf32>
    %c255_i32_27 = arith.constant 255 : i32
    %103 = tpu.dynamic_rotate %102 by %c255_i32_27 dim 1 : vector<8x256xf32>, i32 -> vector<8x256xf32>
    %104 = arith.maximumf %102, %103 : vector<8x256xf32>
    %c240_i32_28 = arith.constant 240 : i32
    %105 = tpu.dynamic_rotate %104 by %c240_i32_28 dim 1 : vector<8x256xf32>, i32 -> vector<8x256xf32>
    %106 = arith.maximumf %104, %105 : vector<8x256xf32>
    %107 = arith.truncf %106 : vector<8x256xf32> to vector<8x256xbf16>
    %c0_29 = arith.constant 0 : index
    %c0_30 = arith.constant 0 : index
    %108 = vector.load %arg29[%c0_29, %c0_30] : memref<256x64xbf16, #tpu.memory_space<vmem>>, vector<256x64xbf16>
    %cst_31 = arith.constant dense<0.000000e+00> : vector<8x64xf32>
    %109 = tpu.matmul %107, %108, %cst_31 {dimension_numbers = #tpu.dot_dimension_numbers<[1], [0], [0], [1], [0, 0, 1, 1], [], []>} : vector<8x256xbf16>, vector<256x64xbf16>, vector<8x64xf32> -> vector<8x64xf32>
    %110 = vector.extract_strided_slice %109 {offsets = [0, 55], sizes = [8, 9], strides = [1, 1]} : vector<8x64xf32> to vector<8x9xf32>
    %111 = vector.extract_strided_slice %109 {offsets = [0, 0], sizes = [8, 55], strides = [1, 1]} : vector<8x64xf32> to vector<8x55xf32>
    %112 = tpu.concatenate %110, %111 in 1 : vector<8x9xf32>, vector<8x55xf32> -> vector<8x64xf32>
    %113 = vector.extract_strided_slice %1 {offsets = [0, 0], sizes = [1, 64], strides = [1, 1]} : vector<9x64xf32> to vector<1x64xf32>
    %114 = vector.broadcast %113 : vector<1x64xf32> to vector<8x64xf32>
    %115 = arith.mulf %112, %114 : vector<8x64xf32>
    %116 = arith.truncf %115 : vector<8x64xf32> to vector<8x64xbf16>
    %117 = vector.extract_strided_slice %109 {offsets = [0, 56], sizes = [8, 8], strides = [1, 1]} : vector<8x64xf32> to vector<8x8xf32>
    %118 = vector.extract_strided_slice %109 {offsets = [0, 0], sizes = [8, 56], strides = [1, 1]} : vector<8x64xf32> to vector<8x56xf32>
    %119 = tpu.concatenate %117, %118 in 1 : vector<8x8xf32>, vector<8x56xf32> -> vector<8x64xf32>
    %120 = vector.extract_strided_slice %1 {offsets = [1, 0], sizes = [1, 64], strides = [1, 1]} : vector<9x64xf32> to vector<1x64xf32>
    %121 = vector.broadcast %120 : vector<1x64xf32> to vector<8x64xf32>
    %122 = arith.mulf %119, %121 : vector<8x64xf32>
    %123 = arith.truncf %122 : vector<8x64xf32> to vector<8x64xbf16>
    %124 = vector.extract_strided_slice %109 {offsets = [0, 57], sizes = [8, 7], strides = [1, 1]} : vector<8x64xf32> to vector<8x7xf32>
    %125 = vector.extract_strided_slice %109 {offsets = [0, 0], sizes = [8, 57], strides = [1, 1]} : vector<8x64xf32> to vector<8x57xf32>
    %126 = tpu.concatenate %124, %125 in 1 : vector<8x7xf32>, vector<8x57xf32> -> vector<8x64xf32>
    %127 = vector.extract_strided_slice %1 {offsets = [2, 0], sizes = [1, 64], strides = [1, 1]} : vector<9x64xf32> to vector<1x64xf32>
    %128 = vector.broadcast %127 : vector<1x64xf32> to vector<8x64xf32>
    %129 = arith.mulf %126, %128 : vector<8x64xf32>
    %130 = arith.truncf %129 : vector<8x64xf32> to vector<8x64xbf16>
    %131 = vector.extract_strided_slice %109 {offsets = [0, 63], sizes = [8, 1], strides = [1, 1]} : vector<8x64xf32> to vector<8x1xf32>
    %132 = vector.extract_strided_slice %109 {offsets = [0, 0], sizes = [8, 63], strides = [1, 1]} : vector<8x64xf32> to vector<8x63xf32>
    %133 = tpu.concatenate %131, %132 in 1 : vector<8x1xf32>, vector<8x63xf32> -> vector<8x64xf32>
    %134 = vector.extract_strided_slice %1 {offsets = [3, 0], sizes = [1, 64], strides = [1, 1]} : vector<9x64xf32> to vector<1x64xf32>
    %135 = vector.broadcast %134 : vector<1x64xf32> to vector<8x64xf32>
    %136 = arith.mulf %133, %135 : vector<8x64xf32>
    %137 = arith.truncf %136 : vector<8x64xf32> to vector<8x64xbf16>
    %138 = arith.truncf %109 : vector<8x64xf32> to vector<8x64xbf16>
    %139 = vector.extract_strided_slice %109 {offsets = [0, 1], sizes = [8, 63], strides = [1, 1]} : vector<8x64xf32> to vector<8x63xf32>
    %140 = vector.extract_strided_slice %109 {offsets = [0, 0], sizes = [8, 1], strides = [1, 1]} : vector<8x64xf32> to vector<8x1xf32>
    %141 = tpu.concatenate %139, %140 in 1 : vector<8x63xf32>, vector<8x1xf32> -> vector<8x64xf32>
    %142 = vector.extract_strided_slice %1 {offsets = [5, 0], sizes = [1, 64], strides = [1, 1]} : vector<9x64xf32> to vector<1x64xf32>
    %143 = vector.broadcast %142 : vector<1x64xf32> to vector<8x64xf32>
    %144 = arith.mulf %141, %143 : vector<8x64xf32>
    %145 = arith.truncf %144 : vector<8x64xf32> to vector<8x64xbf16>
    %146 = vector.extract_strided_slice %109 {offsets = [0, 7], sizes = [8, 57], strides = [1, 1]} : vector<8x64xf32> to vector<8x57xf32>
    %147 = vector.extract_strided_slice %109 {offsets = [0, 0], sizes = [8, 7], strides = [1, 1]} : vector<8x64xf32> to vector<8x7xf32>
    %148 = tpu.concatenate %146, %147 in 1 : vector<8x57xf32>, vector<8x7xf32> -> vector<8x64xf32>
    %149 = vector.extract_strided_slice %1 {offsets = [6, 0], sizes = [1, 64], strides = [1, 1]} : vector<9x64xf32> to vector<1x64xf32>
    %150 = vector.broadcast %149 : vector<1x64xf32> to vector<8x64xf32>
    %151 = arith.mulf %148, %150 : vector<8x64xf32>
    %152 = arith.truncf %151 : vector<8x64xf32> to vector<8x64xbf16>
    %153 = vector.extract_strided_slice %109 {offsets = [0, 8], sizes = [8, 56], strides = [1, 1]} : vector<8x64xf32> to vector<8x56xf32>
    %154 = vector.extract_strided_slice %109 {offsets = [0, 0], sizes = [8, 8], strides = [1, 1]} : vector<8x64xf32> to vector<8x8xf32>
    %155 = tpu.concatenate %153, %154 in 1 : vector<8x56xf32>, vector<8x8xf32> -> vector<8x64xf32>
    %156 = vector.extract_strided_slice %1 {offsets = [7, 0], sizes = [1, 64], strides = [1, 1]} : vector<9x64xf32> to vector<1x64xf32>
    %157 = vector.broadcast %156 : vector<1x64xf32> to vector<8x64xf32>
    %158 = arith.mulf %155, %157 : vector<8x64xf32>
    %159 = arith.truncf %158 : vector<8x64xf32> to vector<8x64xbf16>
    %160 = vector.extract_strided_slice %109 {offsets = [0, 9], sizes = [8, 55], strides = [1, 1]} : vector<8x64xf32> to vector<8x55xf32>
    %161 = vector.extract_strided_slice %109 {offsets = [0, 0], sizes = [8, 9], strides = [1, 1]} : vector<8x64xf32> to vector<8x9xf32>
    %162 = tpu.concatenate %160, %161 in 1 : vector<8x55xf32>, vector<8x9xf32> -> vector<8x64xf32>
    %163 = vector.extract_strided_slice %1 {offsets = [8, 0], sizes = [1, 64], strides = [1, 1]} : vector<9x64xf32> to vector<1x64xf32>
    %164 = vector.broadcast %163 : vector<1x64xf32> to vector<8x64xf32>
    %165 = arith.mulf %162, %164 : vector<8x64xf32>
    %166 = arith.truncf %165 : vector<8x64xf32> to vector<8x64xbf16>
    %167 = tpu.concatenate %116, %123, %130, %137, %138, %145, %152, %159, %166 in 0 : vector<8x64xbf16>, vector<8x64xbf16>, vector<8x64xbf16>, vector<8x64xbf16>, vector<8x64xbf16>, vector<8x64xbf16>, vector<8x64xbf16>, vector<8x64xbf16>, vector<8x64xbf16> -> vector<72x64xbf16>
    %c0_32 = arith.constant 0 : index
    %c0_33 = arith.constant 0 : index
    %168 = vector.load %arg6[%c0_32, %c0_33] : memref<16x72xbf16, #tpu.memory_space<vmem>>, vector<16x72xbf16>
    %cst_34 = arith.constant dense<0.000000e+00> : vector<16x64xf32>
    %169 = tpu.matmul %168, %167, %cst_34 {dimension_numbers = #tpu.dot_dimension_numbers<[1], [0], [0], [1], [0, 0, 1, 1], [], []>} : vector<16x72xbf16>, vector<72x64xbf16>, vector<16x64xf32> -> vector<16x64xf32>
    %c0_35 = arith.constant 0 : index
    %c0_36 = arith.constant 0 : index
    %170 = vector.load %arg7[%c0_35, %c0_36] : memref<16x1xf32, #tpu.memory_space<vmem>>, vector<16x1xf32>
    %171 = vector.broadcast %170 : vector<16x1xf32> to vector<16x64xf32>
    %172 = arith.addf %169, %171 : vector<16x64xf32>
    %cst_37 = arith.constant 0.000000e+00 : f32
    %173 = vector.broadcast %cst_37 : f32 to vector<16x64xf32>
    %174 = arith.maximumf %172, %173 : vector<16x64xf32>
    %175 = vector.extract_strided_slice %174 {offsets = [0, 55], sizes = [16, 9], strides = [1, 1]} : vector<16x64xf32> to vector<16x9xf32>
    %176 = vector.extract_strided_slice %174 {offsets = [0, 0], sizes = [16, 55], strides = [1, 1]} : vector<16x64xf32> to vector<16x55xf32>
    %177 = tpu.concatenate %175, %176 in 1 : vector<16x9xf32>, vector<16x55xf32> -> vector<16x64xf32>
    %178 = vector.extract_strided_slice %1 {offsets = [0, 0], sizes = [1, 64], strides = [1, 1]} : vector<9x64xf32> to vector<1x64xf32>
    %179 = vector.broadcast %178 : vector<1x64xf32> to vector<16x64xf32>
    %180 = arith.mulf %177, %179 : vector<16x64xf32>
    %181 = arith.truncf %180 : vector<16x64xf32> to vector<16x64xbf16>
    %182 = vector.extract_strided_slice %174 {offsets = [0, 56], sizes = [16, 8], strides = [1, 1]} : vector<16x64xf32> to vector<16x8xf32>
    %183 = vector.extract_strided_slice %174 {offsets = [0, 0], sizes = [16, 56], strides = [1, 1]} : vector<16x64xf32> to vector<16x56xf32>
    %184 = tpu.concatenate %182, %183 in 1 : vector<16x8xf32>, vector<16x56xf32> -> vector<16x64xf32>
    %185 = vector.extract_strided_slice %1 {offsets = [1, 0], sizes = [1, 64], strides = [1, 1]} : vector<9x64xf32> to vector<1x64xf32>
    %186 = vector.broadcast %185 : vector<1x64xf32> to vector<16x64xf32>
    %187 = arith.mulf %184, %186 : vector<16x64xf32>
    %188 = arith.truncf %187 : vector<16x64xf32> to vector<16x64xbf16>
    %189 = vector.extract_strided_slice %174 {offsets = [0, 57], sizes = [16, 7], strides = [1, 1]} : vector<16x64xf32> to vector<16x7xf32>
    %190 = vector.extract_strided_slice %174 {offsets = [0, 0], sizes = [16, 57], strides = [1, 1]} : vector<16x64xf32> to vector<16x57xf32>
    %191 = tpu.concatenate %189, %190 in 1 : vector<16x7xf32>, vector<16x57xf32> -> vector<16x64xf32>
    %192 = vector.extract_strided_slice %1 {offsets = [2, 0], sizes = [1, 64], strides = [1, 1]} : vector<9x64xf32> to vector<1x64xf32>
    %193 = vector.broadcast %192 : vector<1x64xf32> to vector<16x64xf32>
    %194 = arith.mulf %191, %193 : vector<16x64xf32>
    %195 = arith.truncf %194 : vector<16x64xf32> to vector<16x64xbf16>
    %196 = vector.extract_strided_slice %174 {offsets = [0, 63], sizes = [16, 1], strides = [1, 1]} : vector<16x64xf32> to vector<16x1xf32>
    %197 = vector.extract_strided_slice %174 {offsets = [0, 0], sizes = [16, 63], strides = [1, 1]} : vector<16x64xf32> to vector<16x63xf32>
    %198 = tpu.concatenate %196, %197 in 1 : vector<16x1xf32>, vector<16x63xf32> -> vector<16x64xf32>
    %199 = vector.extract_strided_slice %1 {offsets = [3, 0], sizes = [1, 64], strides = [1, 1]} : vector<9x64xf32> to vector<1x64xf32>
    %200 = vector.broadcast %199 : vector<1x64xf32> to vector<16x64xf32>
    %201 = arith.mulf %198, %200 : vector<16x64xf32>
    %202 = arith.truncf %201 : vector<16x64xf32> to vector<16x64xbf16>
    %203 = arith.truncf %174 : vector<16x64xf32> to vector<16x64xbf16>
    %204 = vector.extract_strided_slice %174 {offsets = [0, 1], sizes = [16, 63], strides = [1, 1]} : vector<16x64xf32> to vector<16x63xf32>
    %205 = vector.extract_strided_slice %174 {offsets = [0, 0], sizes = [16, 1], strides = [1, 1]} : vector<16x64xf32> to vector<16x1xf32>
    %206 = tpu.concatenate %204, %205 in 1 : vector<16x63xf32>, vector<16x1xf32> -> vector<16x64xf32>
    %207 = vector.extract_strided_slice %1 {offsets = [5, 0], sizes = [1, 64], strides = [1, 1]} : vector<9x64xf32> to vector<1x64xf32>
    %208 = vector.broadcast %207 : vector<1x64xf32> to vector<16x64xf32>
    %209 = arith.mulf %206, %208 : vector<16x64xf32>
    %210 = arith.truncf %209 : vector<16x64xf32> to vector<16x64xbf16>
    %211 = vector.extract_strided_slice %174 {offsets = [0, 7], sizes = [16, 57], strides = [1, 1]} : vector<16x64xf32> to vector<16x57xf32>
    %212 = vector.extract_strided_slice %174 {offsets = [0, 0], sizes = [16, 7], strides = [1, 1]} : vector<16x64xf32> to vector<16x7xf32>
    %213 = tpu.concatenate %211, %212 in 1 : vector<16x57xf32>, vector<16x7xf32> -> vector<16x64xf32>
    %214 = vector.extract_strided_slice %1 {offsets = [6, 0], sizes = [1, 64], strides = [1, 1]} : vector<9x64xf32> to vector<1x64xf32>
    %215 = vector.broadcast %214 : vector<1x64xf32> to vector<16x64xf32>
    %216 = arith.mulf %213, %215 : vector<16x64xf32>
    %217 = arith.truncf %216 : vector<16x64xf32> to vector<16x64xbf16>
    %218 = vector.extract_strided_slice %174 {offsets = [0, 8], sizes = [16, 56], strides = [1, 1]} : vector<16x64xf32> to vector<16x56xf32>
    %219 = vector.extract_strided_slice %174 {offsets = [0, 0], sizes = [16, 8], strides = [1, 1]} : vector<16x64xf32> to vector<16x8xf32>
    %220 = tpu.concatenate %218, %219 in 1 : vector<16x56xf32>, vector<16x8xf32> -> vector<16x64xf32>
    %221 = vector.extract_strided_slice %1 {offsets = [7, 0], sizes = [1, 64], strides = [1, 1]} : vector<9x64xf32> to vector<1x64xf32>
    %222 = vector.broadcast %221 : vector<1x64xf32> to vector<16x64xf32>
    %223 = arith.mulf %220, %222 : vector<16x64xf32>
    %224 = arith.truncf %223 : vector<16x64xf32> to vector<16x64xbf16>
    %225 = vector.extract_strided_slice %174 {offsets = [0, 9], sizes = [16, 55], strides = [1, 1]} : vector<16x64xf32> to vector<16x55xf32>
    %226 = vector.extract_strided_slice %174 {offsets = [0, 0], sizes = [16, 9], strides = [1, 1]} : vector<16x64xf32> to vector<16x9xf32>
    %227 = tpu.concatenate %225, %226 in 1 : vector<16x55xf32>, vector<16x9xf32> -> vector<16x64xf32>
    %228 = vector.extract_strided_slice %1 {offsets = [8, 0], sizes = [1, 64], strides = [1, 1]} : vector<9x64xf32> to vector<1x64xf32>
    %229 = vector.broadcast %228 : vector<1x64xf32> to vector<16x64xf32>
    %230 = arith.mulf %227, %229 : vector<16x64xf32>
    %231 = arith.truncf %230 : vector<16x64xf32> to vector<16x64xbf16>
    %232 = tpu.concatenate %181, %188, %195, %202, %203, %210, %217, %224, %231 in 0 : vector<16x64xbf16>, vector<16x64xbf16>, vector<16x64xbf16>, vector<16x64xbf16>, vector<16x64xbf16>, vector<16x64xbf16>, vector<16x64xbf16>, vector<16x64xbf16>, vector<16x64xbf16> -> vector<144x64xbf16>
    %c0_38 = arith.constant 0 : index
    %c0_39 = arith.constant 0 : index
    %233 = vector.load %arg8[%c0_38, %c0_39] : memref<16x144xbf16, #tpu.memory_space<vmem>>, vector<16x144xbf16>
    %cst_40 = arith.constant dense<0.000000e+00> : vector<16x64xf32>
    %234 = tpu.matmul %233, %232, %cst_40 {dimension_numbers = #tpu.dot_dimension_numbers<[1], [0], [0], [1], [0, 0, 1, 1], [], []>} : vector<16x144xbf16>, vector<144x64xbf16>, vector<16x64xf32> -> vector<16x64xf32>
    %c0_41 = arith.constant 0 : index
    %c0_42 = arith.constant 0 : index
    %235 = vector.load %arg9[%c0_41, %c0_42] : memref<16x1xf32, #tpu.memory_space<vmem>>, vector<16x1xf32>
    %236 = vector.broadcast %235 : vector<16x1xf32> to vector<16x64xf32>
    %237 = arith.addf %234, %236 : vector<16x64xf32>
    %cst_43 = arith.constant 0.000000e+00 : f32
    %238 = vector.broadcast %cst_43 : f32 to vector<16x64xf32>
    %239 = arith.maximumf %237, %238 : vector<16x64xf32>
    %240 = vector.extract_strided_slice %239 {offsets = [0, 1], sizes = [16, 63], strides = [1, 1]} : vector<16x64xf32> to vector<16x63xf32>
    %241 = vector.extract_strided_slice %239 {offsets = [0, 0], sizes = [16, 1], strides = [1, 1]} : vector<16x64xf32> to vector<16x1xf32>
    %242 = tpu.concatenate %240, %241 in 1 : vector<16x63xf32>, vector<16x1xf32> -> vector<16x64xf32>
    %243 = arith.maximumf %239, %242 : vector<16x64xf32>
    %244 = vector.extract_strided_slice %243 {offsets = [0, 8], sizes = [16, 56], strides = [1, 1]} : vector<16x64xf32> to vector<16x56xf32>
    %245 = vector.extract_strided_slice %243 {offsets = [0, 0], sizes = [16, 8], strides = [1, 1]} : vector<16x64xf32> to vector<16x8xf32>
    %246 = tpu.concatenate %244, %245 in 1 : vector<16x56xf32>, vector<16x8xf32> -> vector<16x64xf32>
    %247 = arith.maximumf %243, %246 : vector<16x64xf32>
    %248 = arith.truncf %247 : vector<16x64xf32> to vector<16x64xbf16>
    %c0_44 = arith.constant 0 : index
    %c0_45 = arith.constant 0 : index
    %249 = vector.load %arg30[%c0_44, %c0_45] : memref<64x16xbf16, #tpu.memory_space<vmem>>, vector<64x16xbf16>
    %cst_46 = arith.constant dense<0.000000e+00> : vector<16x16xf32>
    %250 = tpu.matmul %248, %249, %cst_46 {dimension_numbers = #tpu.dot_dimension_numbers<[1], [0], [0], [1], [0, 0, 1, 1], [], []>} : vector<16x64xbf16>, vector<64x16xbf16>, vector<16x16xf32> -> vector<16x16xf32>
    %251 = vector.extract_strided_slice %250 {offsets = [0, 11], sizes = [16, 5], strides = [1, 1]} : vector<16x16xf32> to vector<16x5xf32>
    %252 = vector.extract_strided_slice %250 {offsets = [0, 0], sizes = [16, 11], strides = [1, 1]} : vector<16x16xf32> to vector<16x11xf32>
    %253 = tpu.concatenate %251, %252 in 1 : vector<16x5xf32>, vector<16x11xf32> -> vector<16x16xf32>
    %254 = vector.extract_strided_slice %2 {offsets = [0, 0], sizes = [1, 16], strides = [1, 1]} : vector<9x16xf32> to vector<1x16xf32>
    %255 = vector.broadcast %254 : vector<1x16xf32> to vector<16x16xf32>
    %256 = arith.mulf %253, %255 : vector<16x16xf32>
    %257 = arith.truncf %256 : vector<16x16xf32> to vector<16x16xbf16>
    %258 = vector.extract_strided_slice %250 {offsets = [0, 12], sizes = [16, 4], strides = [1, 1]} : vector<16x16xf32> to vector<16x4xf32>
    %259 = vector.extract_strided_slice %250 {offsets = [0, 0], sizes = [16, 12], strides = [1, 1]} : vector<16x16xf32> to vector<16x12xf32>
    %260 = tpu.concatenate %258, %259 in 1 : vector<16x4xf32>, vector<16x12xf32> -> vector<16x16xf32>
    %261 = vector.extract_strided_slice %2 {offsets = [1, 0], sizes = [1, 16], strides = [1, 1]} : vector<9x16xf32> to vector<1x16xf32>
    %262 = vector.broadcast %261 : vector<1x16xf32> to vector<16x16xf32>
    %263 = arith.mulf %260, %262 : vector<16x16xf32>
    %264 = arith.truncf %263 : vector<16x16xf32> to vector<16x16xbf16>
    %265 = vector.extract_strided_slice %250 {offsets = [0, 13], sizes = [16, 3], strides = [1, 1]} : vector<16x16xf32> to vector<16x3xf32>
    %266 = vector.extract_strided_slice %250 {offsets = [0, 0], sizes = [16, 13], strides = [1, 1]} : vector<16x16xf32> to vector<16x13xf32>
    %267 = tpu.concatenate %265, %266 in 1 : vector<16x3xf32>, vector<16x13xf32> -> vector<16x16xf32>
    %268 = vector.extract_strided_slice %2 {offsets = [2, 0], sizes = [1, 16], strides = [1, 1]} : vector<9x16xf32> to vector<1x16xf32>
    %269 = vector.broadcast %268 : vector<1x16xf32> to vector<16x16xf32>
    %270 = arith.mulf %267, %269 : vector<16x16xf32>
    %271 = arith.truncf %270 : vector<16x16xf32> to vector<16x16xbf16>
    %272 = vector.extract_strided_slice %250 {offsets = [0, 15], sizes = [16, 1], strides = [1, 1]} : vector<16x16xf32> to vector<16x1xf32>
    %273 = vector.extract_strided_slice %250 {offsets = [0, 0], sizes = [16, 15], strides = [1, 1]} : vector<16x16xf32> to vector<16x15xf32>
    %274 = tpu.concatenate %272, %273 in 1 : vector<16x1xf32>, vector<16x15xf32> -> vector<16x16xf32>
    %275 = vector.extract_strided_slice %2 {offsets = [3, 0], sizes = [1, 16], strides = [1, 1]} : vector<9x16xf32> to vector<1x16xf32>
    %276 = vector.broadcast %275 : vector<1x16xf32> to vector<16x16xf32>
    %277 = arith.mulf %274, %276 : vector<16x16xf32>
    %278 = arith.truncf %277 : vector<16x16xf32> to vector<16x16xbf16>
    %279 = arith.truncf %250 : vector<16x16xf32> to vector<16x16xbf16>
    %280 = vector.extract_strided_slice %250 {offsets = [0, 1], sizes = [16, 15], strides = [1, 1]} : vector<16x16xf32> to vector<16x15xf32>
    %281 = vector.extract_strided_slice %250 {offsets = [0, 0], sizes = [16, 1], strides = [1, 1]} : vector<16x16xf32> to vector<16x1xf32>
    %282 = tpu.concatenate %280, %281 in 1 : vector<16x15xf32>, vector<16x1xf32> -> vector<16x16xf32>
    %283 = vector.extract_strided_slice %2 {offsets = [5, 0], sizes = [1, 16], strides = [1, 1]} : vector<9x16xf32> to vector<1x16xf32>
    %284 = vector.broadcast %283 : vector<1x16xf32> to vector<16x16xf32>
    %285 = arith.mulf %282, %284 : vector<16x16xf32>
    %286 = arith.truncf %285 : vector<16x16xf32> to vector<16x16xbf16>
    %287 = vector.extract_strided_slice %250 {offsets = [0, 3], sizes = [16, 13], strides = [1, 1]} : vector<16x16xf32> to vector<16x13xf32>
    %288 = vector.extract_strided_slice %250 {offsets = [0, 0], sizes = [16, 3], strides = [1, 1]} : vector<16x16xf32> to vector<16x3xf32>
    %289 = tpu.concatenate %287, %288 in 1 : vector<16x13xf32>, vector<16x3xf32> -> vector<16x16xf32>
    %290 = vector.extract_strided_slice %2 {offsets = [6, 0], sizes = [1, 16], strides = [1, 1]} : vector<9x16xf32> to vector<1x16xf32>
    %291 = vector.broadcast %290 : vector<1x16xf32> to vector<16x16xf32>
    %292 = arith.mulf %289, %291 : vector<16x16xf32>
    %293 = arith.truncf %292 : vector<16x16xf32> to vector<16x16xbf16>
    %294 = vector.extract_strided_slice %250 {offsets = [0, 4], sizes = [16, 12], strides = [1, 1]} : vector<16x16xf32> to vector<16x12xf32>
    %295 = vector.extract_strided_slice %250 {offsets = [0, 0], sizes = [16, 4], strides = [1, 1]} : vector<16x16xf32> to vector<16x4xf32>
    %296 = tpu.concatenate %294, %295 in 1 : vector<16x12xf32>, vector<16x4xf32> -> vector<16x16xf32>
    %297 = vector.extract_strided_slice %2 {offsets = [7, 0], sizes = [1, 16], strides = [1, 1]} : vector<9x16xf32> to vector<1x16xf32>
    %298 = vector.broadcast %297 : vector<1x16xf32> to vector<16x16xf32>
    %299 = arith.mulf %296, %298 : vector<16x16xf32>
    %300 = arith.truncf %299 : vector<16x16xf32> to vector<16x16xbf16>
    %301 = vector.extract_strided_slice %250 {offsets = [0, 5], sizes = [16, 11], strides = [1, 1]} : vector<16x16xf32> to vector<16x11xf32>
    %302 = vector.extract_strided_slice %250 {offsets = [0, 0], sizes = [16, 5], strides = [1, 1]} : vector<16x16xf32> to vector<16x5xf32>
    %303 = tpu.concatenate %301, %302 in 1 : vector<16x11xf32>, vector<16x5xf32> -> vector<16x16xf32>
    %304 = vector.extract_strided_slice %2 {offsets = [8, 0], sizes = [1, 16], strides = [1, 1]} : vector<9x16xf32> to vector<1x16xf32>
    %305 = vector.broadcast %304 : vector<1x16xf32> to vector<16x16xf32>
    %306 = arith.mulf %303, %305 : vector<16x16xf32>
    %307 = arith.truncf %306 : vector<16x16xf32> to vector<16x16xbf16>
    %308 = tpu.concatenate %257, %264, %271, %278, %279, %286, %293, %300, %307 in 0 : vector<16x16xbf16>, vector<16x16xbf16>, vector<16x16xbf16>, vector<16x16xbf16>, vector<16x16xbf16>, vector<16x16xbf16>, vector<16x16xbf16>, vector<16x16xbf16>, vector<16x16xbf16> -> vector<144x16xbf16>
    %c0_47 = arith.constant 0 : index
    %c0_48 = arith.constant 0 : index
    %309 = vector.load %arg10[%c0_47, %c0_48] : memref<32x144xbf16, #tpu.memory_space<vmem>>, vector<32x144xbf16>
    %cst_49 = arith.constant dense<0.000000e+00> : vector<32x16xf32>
    %310 = tpu.matmul %309, %308, %cst_49 {dimension_numbers = #tpu.dot_dimension_numbers<[1], [0], [0], [1], [0, 0, 1, 1], [], []>} : vector<32x144xbf16>, vector<144x16xbf16>, vector<32x16xf32> -> vector<32x16xf32>
    %c0_50 = arith.constant 0 : index
    %c0_51 = arith.constant 0 : index
    %311 = vector.load %arg11[%c0_50, %c0_51] : memref<32x1xf32, #tpu.memory_space<vmem>>, vector<32x1xf32>
    %312 = vector.broadcast %311 : vector<32x1xf32> to vector<32x16xf32>
    %313 = arith.addf %310, %312 : vector<32x16xf32>
    %cst_52 = arith.constant 0.000000e+00 : f32
    %314 = vector.broadcast %cst_52 : f32 to vector<32x16xf32>
    %315 = arith.maximumf %313, %314 : vector<32x16xf32>
    %316 = vector.extract_strided_slice %315 {offsets = [0, 11], sizes = [32, 5], strides = [1, 1]} : vector<32x16xf32> to vector<32x5xf32>
    %317 = vector.extract_strided_slice %315 {offsets = [0, 0], sizes = [32, 11], strides = [1, 1]} : vector<32x16xf32> to vector<32x11xf32>
    %318 = tpu.concatenate %316, %317 in 1 : vector<32x5xf32>, vector<32x11xf32> -> vector<32x16xf32>
    %319 = vector.extract_strided_slice %2 {offsets = [0, 0], sizes = [1, 16], strides = [1, 1]} : vector<9x16xf32> to vector<1x16xf32>
    %320 = vector.broadcast %319 : vector<1x16xf32> to vector<32x16xf32>
    %321 = arith.mulf %318, %320 : vector<32x16xf32>
    %322 = arith.truncf %321 : vector<32x16xf32> to vector<32x16xbf16>
    %323 = vector.extract_strided_slice %315 {offsets = [0, 12], sizes = [32, 4], strides = [1, 1]} : vector<32x16xf32> to vector<32x4xf32>
    %324 = vector.extract_strided_slice %315 {offsets = [0, 0], sizes = [32, 12], strides = [1, 1]} : vector<32x16xf32> to vector<32x12xf32>
    %325 = tpu.concatenate %323, %324 in 1 : vector<32x4xf32>, vector<32x12xf32> -> vector<32x16xf32>
    %326 = vector.extract_strided_slice %2 {offsets = [1, 0], sizes = [1, 16], strides = [1, 1]} : vector<9x16xf32> to vector<1x16xf32>
    %327 = vector.broadcast %326 : vector<1x16xf32> to vector<32x16xf32>
    %328 = arith.mulf %325, %327 : vector<32x16xf32>
    %329 = arith.truncf %328 : vector<32x16xf32> to vector<32x16xbf16>
    %330 = vector.extract_strided_slice %315 {offsets = [0, 13], sizes = [32, 3], strides = [1, 1]} : vector<32x16xf32> to vector<32x3xf32>
    %331 = vector.extract_strided_slice %315 {offsets = [0, 0], sizes = [32, 13], strides = [1, 1]} : vector<32x16xf32> to vector<32x13xf32>
    %332 = tpu.concatenate %330, %331 in 1 : vector<32x3xf32>, vector<32x13xf32> -> vector<32x16xf32>
    %333 = vector.extract_strided_slice %2 {offsets = [2, 0], sizes = [1, 16], strides = [1, 1]} : vector<9x16xf32> to vector<1x16xf32>
    %334 = vector.broadcast %333 : vector<1x16xf32> to vector<32x16xf32>
    %335 = arith.mulf %332, %334 : vector<32x16xf32>
    %336 = arith.truncf %335 : vector<32x16xf32> to vector<32x16xbf16>
    %337 = vector.extract_strided_slice %315 {offsets = [0, 15], sizes = [32, 1], strides = [1, 1]} : vector<32x16xf32> to vector<32x1xf32>
    %338 = vector.extract_strided_slice %315 {offsets = [0, 0], sizes = [32, 15], strides = [1, 1]} : vector<32x16xf32> to vector<32x15xf32>
    %339 = tpu.concatenate %337, %338 in 1 : vector<32x1xf32>, vector<32x15xf32> -> vector<32x16xf32>
    %340 = vector.extract_strided_slice %2 {offsets = [3, 0], sizes = [1, 16], strides = [1, 1]} : vector<9x16xf32> to vector<1x16xf32>
    %341 = vector.broadcast %340 : vector<1x16xf32> to vector<32x16xf32>
    %342 = arith.mulf %339, %341 : vector<32x16xf32>
    %343 = arith.truncf %342 : vector<32x16xf32> to vector<32x16xbf16>
    %344 = arith.truncf %315 : vector<32x16xf32> to vector<32x16xbf16>
    %345 = vector.extract_strided_slice %315 {offsets = [0, 1], sizes = [32, 15], strides = [1, 1]} : vector<32x16xf32> to vector<32x15xf32>
    %346 = vector.extract_strided_slice %315 {offsets = [0, 0], sizes = [32, 1], strides = [1, 1]} : vector<32x16xf32> to vector<32x1xf32>
    %347 = tpu.concatenate %345, %346 in 1 : vector<32x15xf32>, vector<32x1xf32> -> vector<32x16xf32>
    %348 = vector.extract_strided_slice %2 {offsets = [5, 0], sizes = [1, 16], strides = [1, 1]} : vector<9x16xf32> to vector<1x16xf32>
    %349 = vector.broadcast %348 : vector<1x16xf32> to vector<32x16xf32>
    %350 = arith.mulf %347, %349 : vector<32x16xf32>
    %351 = arith.truncf %350 : vector<32x16xf32> to vector<32x16xbf16>
    %352 = vector.extract_strided_slice %315 {offsets = [0, 3], sizes = [32, 13], strides = [1, 1]} : vector<32x16xf32> to vector<32x13xf32>
    %353 = vector.extract_strided_slice %315 {offsets = [0, 0], sizes = [32, 3], strides = [1, 1]} : vector<32x16xf32> to vector<32x3xf32>
    %354 = tpu.concatenate %352, %353 in 1 : vector<32x13xf32>, vector<32x3xf32> -> vector<32x16xf32>
    %355 = vector.extract_strided_slice %2 {offsets = [6, 0], sizes = [1, 16], strides = [1, 1]} : vector<9x16xf32> to vector<1x16xf32>
    %356 = vector.broadcast %355 : vector<1x16xf32> to vector<32x16xf32>
    %357 = arith.mulf %354, %356 : vector<32x16xf32>
    %358 = arith.truncf %357 : vector<32x16xf32> to vector<32x16xbf16>
    %359 = vector.extract_strided_slice %315 {offsets = [0, 4], sizes = [32, 12], strides = [1, 1]} : vector<32x16xf32> to vector<32x12xf32>
    %360 = vector.extract_strided_slice %315 {offsets = [0, 0], sizes = [32, 4], strides = [1, 1]} : vector<32x16xf32> to vector<32x4xf32>
    %361 = tpu.concatenate %359, %360 in 1 : vector<32x12xf32>, vector<32x4xf32> -> vector<32x16xf32>
    %362 = vector.extract_strided_slice %2 {offsets = [7, 0], sizes = [1, 16], strides = [1, 1]} : vector<9x16xf32> to vector<1x16xf32>
    %363 = vector.broadcast %362 : vector<1x16xf32> to vector<32x16xf32>
    %364 = arith.mulf %361, %363 : vector<32x16xf32>
    %365 = arith.truncf %364 : vector<32x16xf32> to vector<32x16xbf16>
    %366 = vector.extract_strided_slice %315 {offsets = [0, 5], sizes = [32, 11], strides = [1, 1]} : vector<32x16xf32> to vector<32x11xf32>
    %367 = vector.extract_strided_slice %315 {offsets = [0, 0], sizes = [32, 5], strides = [1, 1]} : vector<32x16xf32> to vector<32x5xf32>
    %368 = tpu.concatenate %366, %367 in 1 : vector<32x11xf32>, vector<32x5xf32> -> vector<32x16xf32>
    %369 = vector.extract_strided_slice %2 {offsets = [8, 0], sizes = [1, 16], strides = [1, 1]} : vector<9x16xf32> to vector<1x16xf32>
    %370 = vector.broadcast %369 : vector<1x16xf32> to vector<32x16xf32>
    %371 = arith.mulf %368, %370 : vector<32x16xf32>
    %372 = arith.truncf %371 : vector<32x16xf32> to vector<32x16xbf16>
    %373 = tpu.concatenate %322, %329, %336, %343, %344, %351, %358, %365, %372 in 0 : vector<32x16xbf16>, vector<32x16xbf16>, vector<32x16xbf16>, vector<32x16xbf16>, vector<32x16xbf16>, vector<32x16xbf16>, vector<32x16xbf16>, vector<32x16xbf16>, vector<32x16xbf16> -> vector<288x16xbf16>
    %c0_53 = arith.constant 0 : index
    %c0_54 = arith.constant 0 : index
    %374 = vector.load %arg12[%c0_53, %c0_54] : memref<32x288xbf16, #tpu.memory_space<vmem>>, vector<32x288xbf16>
    %cst_55 = arith.constant dense<0.000000e+00> : vector<32x16xf32>
    %375 = tpu.matmul %374, %373, %cst_55 {dimension_numbers = #tpu.dot_dimension_numbers<[1], [0], [0], [1], [0, 0, 1, 1], [], []>} : vector<32x288xbf16>, vector<288x16xbf16>, vector<32x16xf32> -> vector<32x16xf32>
    %c0_56 = arith.constant 0 : index
    %c0_57 = arith.constant 0 : index
    %376 = vector.load %arg13[%c0_56, %c0_57] : memref<32x1xf32, #tpu.memory_space<vmem>>, vector<32x1xf32>
    %377 = vector.broadcast %376 : vector<32x1xf32> to vector<32x16xf32>
    %378 = arith.addf %375, %377 : vector<32x16xf32>
    %cst_58 = arith.constant 0.000000e+00 : f32
    %379 = vector.broadcast %cst_58 : f32 to vector<32x16xf32>
    %380 = arith.maximumf %378, %379 : vector<32x16xf32>
    %381 = arith.truncf %380 : vector<32x16xf32> to vector<32x16xbf16>
    %c0_59 = arith.constant 0 : index
    %c0_60 = arith.constant 0 : index
    %382 = vector.load %arg31[%c0_59, %c0_60] : memref<16x64xbf16, #tpu.memory_space<vmem>>, vector<16x64xbf16>
    %cst_61 = arith.constant dense<0.000000e+00> : vector<32x64xf32>
    %383 = tpu.matmul %381, %382, %cst_61 {dimension_numbers = #tpu.dot_dimension_numbers<[1], [0], [0], [1], [0, 0, 1, 1], [], []>} : vector<32x16xbf16>, vector<16x64xbf16>, vector<32x64xf32> -> vector<32x64xf32>
    %384 = vector.extract_strided_slice %383 {offsets = [0, 55], sizes = [32, 9], strides = [1, 1]} : vector<32x64xf32> to vector<32x9xf32>
    %385 = vector.extract_strided_slice %383 {offsets = [0, 0], sizes = [32, 55], strides = [1, 1]} : vector<32x64xf32> to vector<32x55xf32>
    %386 = tpu.concatenate %384, %385 in 1 : vector<32x9xf32>, vector<32x55xf32> -> vector<32x64xf32>
    %387 = vector.extract_strided_slice %1 {offsets = [0, 0], sizes = [1, 64], strides = [1, 1]} : vector<9x64xf32> to vector<1x64xf32>
    %388 = vector.broadcast %387 : vector<1x64xf32> to vector<32x64xf32>
    %389 = arith.mulf %386, %388 : vector<32x64xf32>
    %390 = arith.truncf %389 : vector<32x64xf32> to vector<32x64xbf16>
    %391 = vector.extract_strided_slice %383 {offsets = [0, 56], sizes = [32, 8], strides = [1, 1]} : vector<32x64xf32> to vector<32x8xf32>
    %392 = vector.extract_strided_slice %383 {offsets = [0, 0], sizes = [32, 56], strides = [1, 1]} : vector<32x64xf32> to vector<32x56xf32>
    %393 = tpu.concatenate %391, %392 in 1 : vector<32x8xf32>, vector<32x56xf32> -> vector<32x64xf32>
    %394 = vector.extract_strided_slice %1 {offsets = [1, 0], sizes = [1, 64], strides = [1, 1]} : vector<9x64xf32> to vector<1x64xf32>
    %395 = vector.broadcast %394 : vector<1x64xf32> to vector<32x64xf32>
    %396 = arith.mulf %393, %395 : vector<32x64xf32>
    %397 = arith.truncf %396 : vector<32x64xf32> to vector<32x64xbf16>
    %398 = vector.extract_strided_slice %383 {offsets = [0, 57], sizes = [32, 7], strides = [1, 1]} : vector<32x64xf32> to vector<32x7xf32>
    %399 = vector.extract_strided_slice %383 {offsets = [0, 0], sizes = [32, 57], strides = [1, 1]} : vector<32x64xf32> to vector<32x57xf32>
    %400 = tpu.concatenate %398, %399 in 1 : vector<32x7xf32>, vector<32x57xf32> -> vector<32x64xf32>
    %401 = vector.extract_strided_slice %1 {offsets = [2, 0], sizes = [1, 64], strides = [1, 1]} : vector<9x64xf32> to vector<1x64xf32>
    %402 = vector.broadcast %401 : vector<1x64xf32> to vector<32x64xf32>
    %403 = arith.mulf %400, %402 : vector<32x64xf32>
    %404 = arith.truncf %403 : vector<32x64xf32> to vector<32x64xbf16>
    %405 = vector.extract_strided_slice %383 {offsets = [0, 63], sizes = [32, 1], strides = [1, 1]} : vector<32x64xf32> to vector<32x1xf32>
    %406 = vector.extract_strided_slice %383 {offsets = [0, 0], sizes = [32, 63], strides = [1, 1]} : vector<32x64xf32> to vector<32x63xf32>
    %407 = tpu.concatenate %405, %406 in 1 : vector<32x1xf32>, vector<32x63xf32> -> vector<32x64xf32>
    %408 = vector.extract_strided_slice %1 {offsets = [3, 0], sizes = [1, 64], strides = [1, 1]} : vector<9x64xf32> to vector<1x64xf32>
    %409 = vector.broadcast %408 : vector<1x64xf32> to vector<32x64xf32>
    %410 = arith.mulf %407, %409 : vector<32x64xf32>
    %411 = arith.truncf %410 : vector<32x64xf32> to vector<32x64xbf16>
    %412 = arith.truncf %383 : vector<32x64xf32> to vector<32x64xbf16>
    %413 = vector.extract_strided_slice %383 {offsets = [0, 1], sizes = [32, 63], strides = [1, 1]} : vector<32x64xf32> to vector<32x63xf32>
    %414 = vector.extract_strided_slice %383 {offsets = [0, 0], sizes = [32, 1], strides = [1, 1]} : vector<32x64xf32> to vector<32x1xf32>
    %415 = tpu.concatenate %413, %414 in 1 : vector<32x63xf32>, vector<32x1xf32> -> vector<32x64xf32>
    %416 = vector.extract_strided_slice %1 {offsets = [5, 0], sizes = [1, 64], strides = [1, 1]} : vector<9x64xf32> to vector<1x64xf32>
    %417 = vector.broadcast %416 : vector<1x64xf32> to vector<32x64xf32>
    %418 = arith.mulf %415, %417 : vector<32x64xf32>
    %419 = arith.truncf %418 : vector<32x64xf32> to vector<32x64xbf16>
    %420 = vector.extract_strided_slice %383 {offsets = [0, 7], sizes = [32, 57], strides = [1, 1]} : vector<32x64xf32> to vector<32x57xf32>
    %421 = vector.extract_strided_slice %383 {offsets = [0, 0], sizes = [32, 7], strides = [1, 1]} : vector<32x64xf32> to vector<32x7xf32>
    %422 = tpu.concatenate %420, %421 in 1 : vector<32x57xf32>, vector<32x7xf32> -> vector<32x64xf32>
    %423 = vector.extract_strided_slice %1 {offsets = [6, 0], sizes = [1, 64], strides = [1, 1]} : vector<9x64xf32> to vector<1x64xf32>
    %424 = vector.broadcast %423 : vector<1x64xf32> to vector<32x64xf32>
    %425 = arith.mulf %422, %424 : vector<32x64xf32>
    %426 = arith.truncf %425 : vector<32x64xf32> to vector<32x64xbf16>
    %427 = vector.extract_strided_slice %383 {offsets = [0, 8], sizes = [32, 56], strides = [1, 1]} : vector<32x64xf32> to vector<32x56xf32>
    %428 = vector.extract_strided_slice %383 {offsets = [0, 0], sizes = [32, 8], strides = [1, 1]} : vector<32x64xf32> to vector<32x8xf32>
    %429 = tpu.concatenate %427, %428 in 1 : vector<32x56xf32>, vector<32x8xf32> -> vector<32x64xf32>
    %430 = vector.extract_strided_slice %1 {offsets = [7, 0], sizes = [1, 64], strides = [1, 1]} : vector<9x64xf32> to vector<1x64xf32>
    %431 = vector.broadcast %430 : vector<1x64xf32> to vector<32x64xf32>
    %432 = arith.mulf %429, %431 : vector<32x64xf32>
    %433 = arith.truncf %432 : vector<32x64xf32> to vector<32x64xbf16>
    %434 = vector.extract_strided_slice %383 {offsets = [0, 9], sizes = [32, 55], strides = [1, 1]} : vector<32x64xf32> to vector<32x55xf32>
    %435 = vector.extract_strided_slice %383 {offsets = [0, 0], sizes = [32, 9], strides = [1, 1]} : vector<32x64xf32> to vector<32x9xf32>
    %436 = tpu.concatenate %434, %435 in 1 : vector<32x55xf32>, vector<32x9xf32> -> vector<32x64xf32>
    %437 = vector.extract_strided_slice %1 {offsets = [8, 0], sizes = [1, 64], strides = [1, 1]} : vector<9x64xf32> to vector<1x64xf32>
    %438 = vector.broadcast %437 : vector<1x64xf32> to vector<32x64xf32>
    %439 = arith.mulf %436, %438 : vector<32x64xf32>
    %440 = arith.truncf %439 : vector<32x64xf32> to vector<32x64xbf16>
    %441 = tpu.concatenate %390, %397, %404, %411, %412, %419, %426, %433, %440 in 0 : vector<32x64xbf16>, vector<32x64xbf16>, vector<32x64xbf16>, vector<32x64xbf16>, vector<32x64xbf16>, vector<32x64xbf16>, vector<32x64xbf16>, vector<32x64xbf16>, vector<32x64xbf16> -> vector<288x64xbf16>
    %c0_62 = arith.constant 0 : index
    %c0_63 = arith.constant 0 : index
    %442 = vector.load %arg14[%c0_62, %c0_63] : memref<16x288xbf16, #tpu.memory_space<vmem>>, vector<16x288xbf16>
    %cst_64 = arith.constant dense<0.000000e+00> : vector<16x64xf32>
    %443 = tpu.matmul %442, %441, %cst_64 {dimension_numbers = #tpu.dot_dimension_numbers<[1], [0], [0], [1], [0, 0, 1, 1], [], []>} : vector<16x288xbf16>, vector<288x64xbf16>, vector<16x64xf32> -> vector<16x64xf32>
    %444 = vector.extract_strided_slice %239 {offsets = [0, 55], sizes = [16, 9], strides = [1, 1]} : vector<16x64xf32> to vector<16x9xf32>
    %445 = vector.extract_strided_slice %239 {offsets = [0, 0], sizes = [16, 55], strides = [1, 1]} : vector<16x64xf32> to vector<16x55xf32>
    %446 = tpu.concatenate %444, %445 in 1 : vector<16x9xf32>, vector<16x55xf32> -> vector<16x64xf32>
    %447 = vector.extract_strided_slice %1 {offsets = [0, 0], sizes = [1, 64], strides = [1, 1]} : vector<9x64xf32> to vector<1x64xf32>
    %448 = vector.broadcast %447 : vector<1x64xf32> to vector<16x64xf32>
    %449 = arith.mulf %446, %448 : vector<16x64xf32>
    %450 = arith.truncf %449 : vector<16x64xf32> to vector<16x64xbf16>
    %451 = vector.extract_strided_slice %239 {offsets = [0, 56], sizes = [16, 8], strides = [1, 1]} : vector<16x64xf32> to vector<16x8xf32>
    %452 = vector.extract_strided_slice %239 {offsets = [0, 0], sizes = [16, 56], strides = [1, 1]} : vector<16x64xf32> to vector<16x56xf32>
    %453 = tpu.concatenate %451, %452 in 1 : vector<16x8xf32>, vector<16x56xf32> -> vector<16x64xf32>
    %454 = vector.extract_strided_slice %1 {offsets = [1, 0], sizes = [1, 64], strides = [1, 1]} : vector<9x64xf32> to vector<1x64xf32>
    %455 = vector.broadcast %454 : vector<1x64xf32> to vector<16x64xf32>
    %456 = arith.mulf %453, %455 : vector<16x64xf32>
    %457 = arith.truncf %456 : vector<16x64xf32> to vector<16x64xbf16>
    %458 = vector.extract_strided_slice %239 {offsets = [0, 57], sizes = [16, 7], strides = [1, 1]} : vector<16x64xf32> to vector<16x7xf32>
    %459 = vector.extract_strided_slice %239 {offsets = [0, 0], sizes = [16, 57], strides = [1, 1]} : vector<16x64xf32> to vector<16x57xf32>
    %460 = tpu.concatenate %458, %459 in 1 : vector<16x7xf32>, vector<16x57xf32> -> vector<16x64xf32>
    %461 = vector.extract_strided_slice %1 {offsets = [2, 0], sizes = [1, 64], strides = [1, 1]} : vector<9x64xf32> to vector<1x64xf32>
    %462 = vector.broadcast %461 : vector<1x64xf32> to vector<16x64xf32>
    %463 = arith.mulf %460, %462 : vector<16x64xf32>
    %464 = arith.truncf %463 : vector<16x64xf32> to vector<16x64xbf16>
    %465 = vector.extract_strided_slice %239 {offsets = [0, 63], sizes = [16, 1], strides = [1, 1]} : vector<16x64xf32> to vector<16x1xf32>
    %466 = vector.extract_strided_slice %239 {offsets = [0, 0], sizes = [16, 63], strides = [1, 1]} : vector<16x64xf32> to vector<16x63xf32>
    %467 = tpu.concatenate %465, %466 in 1 : vector<16x1xf32>, vector<16x63xf32> -> vector<16x64xf32>
    %468 = vector.extract_strided_slice %1 {offsets = [3, 0], sizes = [1, 64], strides = [1, 1]} : vector<9x64xf32> to vector<1x64xf32>
    %469 = vector.broadcast %468 : vector<1x64xf32> to vector<16x64xf32>
    %470 = arith.mulf %467, %469 : vector<16x64xf32>
    %471 = arith.truncf %470 : vector<16x64xf32> to vector<16x64xbf16>
    %472 = arith.truncf %239 : vector<16x64xf32> to vector<16x64xbf16>
    %473 = vector.extract_strided_slice %239 {offsets = [0, 1], sizes = [16, 63], strides = [1, 1]} : vector<16x64xf32> to vector<16x63xf32>
    %474 = vector.extract_strided_slice %239 {offsets = [0, 0], sizes = [16, 1], strides = [1, 1]} : vector<16x64xf32> to vector<16x1xf32>
    %475 = tpu.concatenate %473, %474 in 1 : vector<16x63xf32>, vector<16x1xf32> -> vector<16x64xf32>
    %476 = vector.extract_strided_slice %1 {offsets = [5, 0], sizes = [1, 64], strides = [1, 1]} : vector<9x64xf32> to vector<1x64xf32>
    %477 = vector.broadcast %476 : vector<1x64xf32> to vector<16x64xf32>
    %478 = arith.mulf %475, %477 : vector<16x64xf32>
    %479 = arith.truncf %478 : vector<16x64xf32> to vector<16x64xbf16>
    %480 = vector.extract_strided_slice %239 {offsets = [0, 7], sizes = [16, 57], strides = [1, 1]} : vector<16x64xf32> to vector<16x57xf32>
    %481 = vector.extract_strided_slice %239 {offsets = [0, 0], sizes = [16, 7], strides = [1, 1]} : vector<16x64xf32> to vector<16x7xf32>
    %482 = tpu.concatenate %480, %481 in 1 : vector<16x57xf32>, vector<16x7xf32> -> vector<16x64xf32>
    %483 = vector.extract_strided_slice %1 {offsets = [6, 0], sizes = [1, 64], strides = [1, 1]} : vector<9x64xf32> to vector<1x64xf32>
    %484 = vector.broadcast %483 : vector<1x64xf32> to vector<16x64xf32>
    %485 = arith.mulf %482, %484 : vector<16x64xf32>
    %486 = arith.truncf %485 : vector<16x64xf32> to vector<16x64xbf16>
    %487 = vector.extract_strided_slice %239 {offsets = [0, 8], sizes = [16, 56], strides = [1, 1]} : vector<16x64xf32> to vector<16x56xf32>
    %488 = vector.extract_strided_slice %239 {offsets = [0, 0], sizes = [16, 8], strides = [1, 1]} : vector<16x64xf32> to vector<16x8xf32>
    %489 = tpu.concatenate %487, %488 in 1 : vector<16x56xf32>, vector<16x8xf32> -> vector<16x64xf32>
    %490 = vector.extract_strided_slice %1 {offsets = [7, 0], sizes = [1, 64], strides = [1, 1]} : vector<9x64xf32> to vector<1x64xf32>
    %491 = vector.broadcast %490 : vector<1x64xf32> to vector<16x64xf32>
    %492 = arith.mulf %489, %491 : vector<16x64xf32>
    %493 = arith.truncf %492 : vector<16x64xf32> to vector<16x64xbf16>
    %494 = vector.extract_strided_slice %239 {offsets = [0, 9], sizes = [16, 55], strides = [1, 1]} : vector<16x64xf32> to vector<16x55xf32>
    %495 = vector.extract_strided_slice %239 {offsets = [0, 0], sizes = [16, 9], strides = [1, 1]} : vector<16x64xf32> to vector<16x9xf32>
    %496 = tpu.concatenate %494, %495 in 1 : vector<16x55xf32>, vector<16x9xf32> -> vector<16x64xf32>
    %497 = vector.extract_strided_slice %1 {offsets = [8, 0], sizes = [1, 64], strides = [1, 1]} : vector<9x64xf32> to vector<1x64xf32>
    %498 = vector.broadcast %497 : vector<1x64xf32> to vector<16x64xf32>
    %499 = arith.mulf %496, %498 : vector<16x64xf32>
    %500 = arith.truncf %499 : vector<16x64xf32> to vector<16x64xbf16>
    %501 = tpu.concatenate %450, %457, %464, %471, %472, %479, %486, %493, %500 in 0 : vector<16x64xbf16>, vector<16x64xbf16>, vector<16x64xbf16>, vector<16x64xbf16>, vector<16x64xbf16>, vector<16x64xbf16>, vector<16x64xbf16>, vector<16x64xbf16>, vector<16x64xbf16> -> vector<144x64xbf16>
    %c0_65 = arith.constant 0 : index
    %c0_66 = arith.constant 0 : index
    %502 = vector.load %arg15[%c0_65, %c0_66] : memref<16x144xbf16, #tpu.memory_space<vmem>>, vector<16x144xbf16>
    %cst_67 = arith.constant dense<0.000000e+00> : vector<16x64xf32>
    %503 = tpu.matmul %502, %501, %cst_67 {dimension_numbers = #tpu.dot_dimension_numbers<[1], [0], [0], [1], [0, 0, 1, 1], [], []>} : vector<16x144xbf16>, vector<144x64xbf16>, vector<16x64xf32> -> vector<16x64xf32>
    %504 = arith.addf %443, %503 : vector<16x64xf32>
    %c0_68 = arith.constant 0 : index
    %c0_69 = arith.constant 0 : index
    %505 = vector.load %arg16[%c0_68, %c0_69] : memref<16x1xf32, #tpu.memory_space<vmem>>, vector<16x1xf32>
    %506 = vector.broadcast %505 : vector<16x1xf32> to vector<16x64xf32>
    %507 = arith.addf %504, %506 : vector<16x64xf32>
    %cst_70 = arith.constant 0.000000e+00 : f32
    %508 = vector.broadcast %cst_70 : f32 to vector<16x64xf32>
    %509 = arith.maximumf %507, %508 : vector<16x64xf32>
    %510 = vector.extract_strided_slice %509 {offsets = [0, 55], sizes = [16, 9], strides = [1, 1]} : vector<16x64xf32> to vector<16x9xf32>
    %511 = vector.extract_strided_slice %509 {offsets = [0, 0], sizes = [16, 55], strides = [1, 1]} : vector<16x64xf32> to vector<16x55xf32>
    %512 = tpu.concatenate %510, %511 in 1 : vector<16x9xf32>, vector<16x55xf32> -> vector<16x64xf32>
    %513 = vector.extract_strided_slice %1 {offsets = [0, 0], sizes = [1, 64], strides = [1, 1]} : vector<9x64xf32> to vector<1x64xf32>
    %514 = vector.broadcast %513 : vector<1x64xf32> to vector<16x64xf32>
    %515 = arith.mulf %512, %514 : vector<16x64xf32>
    %516 = arith.truncf %515 : vector<16x64xf32> to vector<16x64xbf16>
    %517 = vector.extract_strided_slice %509 {offsets = [0, 56], sizes = [16, 8], strides = [1, 1]} : vector<16x64xf32> to vector<16x8xf32>
    %518 = vector.extract_strided_slice %509 {offsets = [0, 0], sizes = [16, 56], strides = [1, 1]} : vector<16x64xf32> to vector<16x56xf32>
    %519 = tpu.concatenate %517, %518 in 1 : vector<16x8xf32>, vector<16x56xf32> -> vector<16x64xf32>
    %520 = vector.extract_strided_slice %1 {offsets = [1, 0], sizes = [1, 64], strides = [1, 1]} : vector<9x64xf32> to vector<1x64xf32>
    %521 = vector.broadcast %520 : vector<1x64xf32> to vector<16x64xf32>
    %522 = arith.mulf %519, %521 : vector<16x64xf32>
    %523 = arith.truncf %522 : vector<16x64xf32> to vector<16x64xbf16>
    %524 = vector.extract_strided_slice %509 {offsets = [0, 57], sizes = [16, 7], strides = [1, 1]} : vector<16x64xf32> to vector<16x7xf32>
    %525 = vector.extract_strided_slice %509 {offsets = [0, 0], sizes = [16, 57], strides = [1, 1]} : vector<16x64xf32> to vector<16x57xf32>
    %526 = tpu.concatenate %524, %525 in 1 : vector<16x7xf32>, vector<16x57xf32> -> vector<16x64xf32>
    %527 = vector.extract_strided_slice %1 {offsets = [2, 0], sizes = [1, 64], strides = [1, 1]} : vector<9x64xf32> to vector<1x64xf32>
    %528 = vector.broadcast %527 : vector<1x64xf32> to vector<16x64xf32>
    %529 = arith.mulf %526, %528 : vector<16x64xf32>
    %530 = arith.truncf %529 : vector<16x64xf32> to vector<16x64xbf16>
    %531 = vector.extract_strided_slice %509 {offsets = [0, 63], sizes = [16, 1], strides = [1, 1]} : vector<16x64xf32> to vector<16x1xf32>
    %532 = vector.extract_strided_slice %509 {offsets = [0, 0], sizes = [16, 63], strides = [1, 1]} : vector<16x64xf32> to vector<16x63xf32>
    %533 = tpu.concatenate %531, %532 in 1 : vector<16x1xf32>, vector<16x63xf32> -> vector<16x64xf32>
    %534 = vector.extract_strided_slice %1 {offsets = [3, 0], sizes = [1, 64], strides = [1, 1]} : vector<9x64xf32> to vector<1x64xf32>
    %535 = vector.broadcast %534 : vector<1x64xf32> to vector<16x64xf32>
    %536 = arith.mulf %533, %535 : vector<16x64xf32>
    %537 = arith.truncf %536 : vector<16x64xf32> to vector<16x64xbf16>
    %538 = arith.truncf %509 : vector<16x64xf32> to vector<16x64xbf16>
    %539 = vector.extract_strided_slice %509 {offsets = [0, 1], sizes = [16, 63], strides = [1, 1]} : vector<16x64xf32> to vector<16x63xf32>
    %540 = vector.extract_strided_slice %509 {offsets = [0, 0], sizes = [16, 1], strides = [1, 1]} : vector<16x64xf32> to vector<16x1xf32>
    %541 = tpu.concatenate %539, %540 in 1 : vector<16x63xf32>, vector<16x1xf32> -> vector<16x64xf32>
    %542 = vector.extract_strided_slice %1 {offsets = [5, 0], sizes = [1, 64], strides = [1, 1]} : vector<9x64xf32> to vector<1x64xf32>
    %543 = vector.broadcast %542 : vector<1x64xf32> to vector<16x64xf32>
    %544 = arith.mulf %541, %543 : vector<16x64xf32>
    %545 = arith.truncf %544 : vector<16x64xf32> to vector<16x64xbf16>
    %546 = vector.extract_strided_slice %509 {offsets = [0, 7], sizes = [16, 57], strides = [1, 1]} : vector<16x64xf32> to vector<16x57xf32>
    %547 = vector.extract_strided_slice %509 {offsets = [0, 0], sizes = [16, 7], strides = [1, 1]} : vector<16x64xf32> to vector<16x7xf32>
    %548 = tpu.concatenate %546, %547 in 1 : vector<16x57xf32>, vector<16x7xf32> -> vector<16x64xf32>
    %549 = vector.extract_strided_slice %1 {offsets = [6, 0], sizes = [1, 64], strides = [1, 1]} : vector<9x64xf32> to vector<1x64xf32>
    %550 = vector.broadcast %549 : vector<1x64xf32> to vector<16x64xf32>
    %551 = arith.mulf %548, %550 : vector<16x64xf32>
    %552 = arith.truncf %551 : vector<16x64xf32> to vector<16x64xbf16>
    %553 = vector.extract_strided_slice %509 {offsets = [0, 8], sizes = [16, 56], strides = [1, 1]} : vector<16x64xf32> to vector<16x56xf32>
    %554 = vector.extract_strided_slice %509 {offsets = [0, 0], sizes = [16, 8], strides = [1, 1]} : vector<16x64xf32> to vector<16x8xf32>
    %555 = tpu.concatenate %553, %554 in 1 : vector<16x56xf32>, vector<16x8xf32> -> vector<16x64xf32>
    %556 = vector.extract_strided_slice %1 {offsets = [7, 0], sizes = [1, 64], strides = [1, 1]} : vector<9x64xf32> to vector<1x64xf32>
    %557 = vector.broadcast %556 : vector<1x64xf32> to vector<16x64xf32>
    %558 = arith.mulf %555, %557 : vector<16x64xf32>
    %559 = arith.truncf %558 : vector<16x64xf32> to vector<16x64xbf16>
    %560 = vector.extract_strided_slice %509 {offsets = [0, 9], sizes = [16, 55], strides = [1, 1]} : vector<16x64xf32> to vector<16x55xf32>
    %561 = vector.extract_strided_slice %509 {offsets = [0, 0], sizes = [16, 9], strides = [1, 1]} : vector<16x64xf32> to vector<16x9xf32>
    %562 = tpu.concatenate %560, %561 in 1 : vector<16x55xf32>, vector<16x9xf32> -> vector<16x64xf32>
    %563 = vector.extract_strided_slice %1 {offsets = [8, 0], sizes = [1, 64], strides = [1, 1]} : vector<9x64xf32> to vector<1x64xf32>
    %564 = vector.broadcast %563 : vector<1x64xf32> to vector<16x64xf32>
    %565 = arith.mulf %562, %564 : vector<16x64xf32>
    %566 = arith.truncf %565 : vector<16x64xf32> to vector<16x64xbf16>
    %567 = tpu.concatenate %516, %523, %530, %537, %538, %545, %552, %559, %566 in 0 : vector<16x64xbf16>, vector<16x64xbf16>, vector<16x64xbf16>, vector<16x64xbf16>, vector<16x64xbf16>, vector<16x64xbf16>, vector<16x64xbf16>, vector<16x64xbf16>, vector<16x64xbf16> -> vector<144x64xbf16>
    %c0_71 = arith.constant 0 : index
    %c0_72 = arith.constant 0 : index
    %568 = vector.load %arg17[%c0_71, %c0_72] : memref<16x144xbf16, #tpu.memory_space<vmem>>, vector<16x144xbf16>
    %cst_73 = arith.constant dense<0.000000e+00> : vector<16x64xf32>
    %569 = tpu.matmul %568, %567, %cst_73 {dimension_numbers = #tpu.dot_dimension_numbers<[1], [0], [0], [1], [0, 0, 1, 1], [], []>} : vector<16x144xbf16>, vector<144x64xbf16>, vector<16x64xf32> -> vector<16x64xf32>
    %c0_74 = arith.constant 0 : index
    %c0_75 = arith.constant 0 : index
    %570 = vector.load %arg18[%c0_74, %c0_75] : memref<16x1xf32, #tpu.memory_space<vmem>>, vector<16x1xf32>
    %571 = vector.broadcast %570 : vector<16x1xf32> to vector<16x64xf32>
    %572 = arith.addf %569, %571 : vector<16x64xf32>
    %cst_76 = arith.constant 0.000000e+00 : f32
    %573 = vector.broadcast %cst_76 : f32 to vector<16x64xf32>
    %574 = arith.maximumf %572, %573 : vector<16x64xf32>
    %575 = arith.truncf %574 : vector<16x64xf32> to vector<16x64xbf16>
    %c0_77 = arith.constant 0 : index
    %c0_78 = arith.constant 0 : index
    %576 = vector.load %arg32[%c0_77, %c0_78] : memref<64x256xbf16, #tpu.memory_space<vmem>>, vector<64x256xbf16>
    %cst_79 = arith.constant dense<0.000000e+00> : vector<16x256xf32>
    %577 = tpu.matmul %575, %576, %cst_79 {dimension_numbers = #tpu.dot_dimension_numbers<[1], [0], [0], [1], [0, 0, 1, 1], [], []>} : vector<16x64xbf16>, vector<64x256xbf16>, vector<16x256xf32> -> vector<16x256xf32>
    %c17_i32_80 = arith.constant 17 : i32
    %578 = tpu.dynamic_rotate %577 by %c17_i32_80 dim 1 : vector<16x256xf32>, i32 -> vector<16x256xf32>
    %579 = vector.extract_strided_slice %0 {offsets = [0, 0], sizes = [1, 256], strides = [1, 1]} : vector<9x256xf32> to vector<1x256xf32>
    %580 = vector.broadcast %579 : vector<1x256xf32> to vector<16x256xf32>
    %581 = arith.mulf %578, %580 : vector<16x256xf32>
    %582 = arith.truncf %581 : vector<16x256xf32> to vector<16x256xbf16>
    %c16_i32_81 = arith.constant 16 : i32
    %583 = tpu.dynamic_rotate %577 by %c16_i32_81 dim 1 : vector<16x256xf32>, i32 -> vector<16x256xf32>
    %584 = vector.extract_strided_slice %0 {offsets = [1, 0], sizes = [1, 256], strides = [1, 1]} : vector<9x256xf32> to vector<1x256xf32>
    %585 = vector.broadcast %584 : vector<1x256xf32> to vector<16x256xf32>
    %586 = arith.mulf %583, %585 : vector<16x256xf32>
    %587 = arith.truncf %586 : vector<16x256xf32> to vector<16x256xbf16>
    %c15_i32_82 = arith.constant 15 : i32
    %588 = tpu.dynamic_rotate %577 by %c15_i32_82 dim 1 : vector<16x256xf32>, i32 -> vector<16x256xf32>
    %589 = vector.extract_strided_slice %0 {offsets = [2, 0], sizes = [1, 256], strides = [1, 1]} : vector<9x256xf32> to vector<1x256xf32>
    %590 = vector.broadcast %589 : vector<1x256xf32> to vector<16x256xf32>
    %591 = arith.mulf %588, %590 : vector<16x256xf32>
    %592 = arith.truncf %591 : vector<16x256xf32> to vector<16x256xbf16>
    %c1_i32_83 = arith.constant 1 : i32
    %593 = tpu.dynamic_rotate %577 by %c1_i32_83 dim 1 : vector<16x256xf32>, i32 -> vector<16x256xf32>
    %594 = vector.extract_strided_slice %0 {offsets = [3, 0], sizes = [1, 256], strides = [1, 1]} : vector<9x256xf32> to vector<1x256xf32>
    %595 = vector.broadcast %594 : vector<1x256xf32> to vector<16x256xf32>
    %596 = arith.mulf %593, %595 : vector<16x256xf32>
    %597 = arith.truncf %596 : vector<16x256xf32> to vector<16x256xbf16>
    %598 = arith.truncf %577 : vector<16x256xf32> to vector<16x256xbf16>
    %c255_i32_84 = arith.constant 255 : i32
    %599 = tpu.dynamic_rotate %577 by %c255_i32_84 dim 1 : vector<16x256xf32>, i32 -> vector<16x256xf32>
    %600 = vector.extract_strided_slice %0 {offsets = [5, 0], sizes = [1, 256], strides = [1, 1]} : vector<9x256xf32> to vector<1x256xf32>
    %601 = vector.broadcast %600 : vector<1x256xf32> to vector<16x256xf32>
    %602 = arith.mulf %599, %601 : vector<16x256xf32>
    %603 = arith.truncf %602 : vector<16x256xf32> to vector<16x256xbf16>
    %c241_i32_85 = arith.constant 241 : i32
    %604 = tpu.dynamic_rotate %577 by %c241_i32_85 dim 1 : vector<16x256xf32>, i32 -> vector<16x256xf32>
    %605 = vector.extract_strided_slice %0 {offsets = [6, 0], sizes = [1, 256], strides = [1, 1]} : vector<9x256xf32> to vector<1x256xf32>
    %606 = vector.broadcast %605 : vector<1x256xf32> to vector<16x256xf32>
    %607 = arith.mulf %604, %606 : vector<16x256xf32>
    %608 = arith.truncf %607 : vector<16x256xf32> to vector<16x256xbf16>
    %c240_i32_86 = arith.constant 240 : i32
    %609 = tpu.dynamic_rotate %577 by %c240_i32_86 dim 1 : vector<16x256xf32>, i32 -> vector<16x256xf32>
    %610 = vector.extract_strided_slice %0 {offsets = [7, 0], sizes = [1, 256], strides = [1, 1]} : vector<9x256xf32> to vector<1x256xf32>
    %611 = vector.broadcast %610 : vector<1x256xf32> to vector<16x256xf32>
    %612 = arith.mulf %609, %611 : vector<16x256xf32>
    %613 = arith.truncf %612 : vector<16x256xf32> to vector<16x256xbf16>
    %c239_i32_87 = arith.constant 239 : i32
    %614 = tpu.dynamic_rotate %577 by %c239_i32_87 dim 1 : vector<16x256xf32>, i32 -> vector<16x256xf32>
    %615 = vector.extract_strided_slice %0 {offsets = [8, 0], sizes = [1, 256], strides = [1, 1]} : vector<9x256xf32> to vector<1x256xf32>
    %616 = vector.broadcast %615 : vector<1x256xf32> to vector<16x256xf32>
    %617 = arith.mulf %614, %616 : vector<16x256xf32>
    %618 = arith.truncf %617 : vector<16x256xf32> to vector<16x256xbf16>
    %619 = tpu.concatenate %582, %587, %592, %597, %598, %603, %608, %613, %618 in 0 : vector<16x256xbf16>, vector<16x256xbf16>, vector<16x256xbf16>, vector<16x256xbf16>, vector<16x256xbf16>, vector<16x256xbf16>, vector<16x256xbf16>, vector<16x256xbf16>, vector<16x256xbf16> -> vector<144x256xbf16>
    %c0_88 = arith.constant 0 : index
    %c0_89 = arith.constant 0 : index
    %620 = vector.load %arg19[%c0_88, %c0_89] : memref<8x144xbf16, #tpu.memory_space<vmem>>, vector<8x144xbf16>
    %cst_90 = arith.constant dense<0.000000e+00> : vector<8x256xf32>
    %621 = tpu.matmul %620, %619, %cst_90 {dimension_numbers = #tpu.dot_dimension_numbers<[1], [0], [0], [1], [0, 0, 1, 1], [], []>} : vector<8x144xbf16>, vector<144x256xbf16>, vector<8x256xf32> -> vector<8x256xf32>
    %c17_i32_91 = arith.constant 17 : i32
    %622 = tpu.dynamic_rotate %102 by %c17_i32_91 dim 1 : vector<8x256xf32>, i32 -> vector<8x256xf32>
    %623 = vector.extract_strided_slice %0 {offsets = [0, 0], sizes = [1, 256], strides = [1, 1]} : vector<9x256xf32> to vector<1x256xf32>
    %624 = vector.broadcast %623 : vector<1x256xf32> to vector<8x256xf32>
    %625 = arith.mulf %622, %624 : vector<8x256xf32>
    %626 = arith.truncf %625 : vector<8x256xf32> to vector<8x256xbf16>
    %c16_i32_92 = arith.constant 16 : i32
    %627 = tpu.dynamic_rotate %102 by %c16_i32_92 dim 1 : vector<8x256xf32>, i32 -> vector<8x256xf32>
    %628 = vector.extract_strided_slice %0 {offsets = [1, 0], sizes = [1, 256], strides = [1, 1]} : vector<9x256xf32> to vector<1x256xf32>
    %629 = vector.broadcast %628 : vector<1x256xf32> to vector<8x256xf32>
    %630 = arith.mulf %627, %629 : vector<8x256xf32>
    %631 = arith.truncf %630 : vector<8x256xf32> to vector<8x256xbf16>
    %c15_i32_93 = arith.constant 15 : i32
    %632 = tpu.dynamic_rotate %102 by %c15_i32_93 dim 1 : vector<8x256xf32>, i32 -> vector<8x256xf32>
    %633 = vector.extract_strided_slice %0 {offsets = [2, 0], sizes = [1, 256], strides = [1, 1]} : vector<9x256xf32> to vector<1x256xf32>
    %634 = vector.broadcast %633 : vector<1x256xf32> to vector<8x256xf32>
    %635 = arith.mulf %632, %634 : vector<8x256xf32>
    %636 = arith.truncf %635 : vector<8x256xf32> to vector<8x256xbf16>
    %c1_i32_94 = arith.constant 1 : i32
    %637 = tpu.dynamic_rotate %102 by %c1_i32_94 dim 1 : vector<8x256xf32>, i32 -> vector<8x256xf32>
    %638 = vector.extract_strided_slice %0 {offsets = [3, 0], sizes = [1, 256], strides = [1, 1]} : vector<9x256xf32> to vector<1x256xf32>
    %639 = vector.broadcast %638 : vector<1x256xf32> to vector<8x256xf32>
    %640 = arith.mulf %637, %639 : vector<8x256xf32>
    %641 = arith.truncf %640 : vector<8x256xf32> to vector<8x256xbf16>
    %642 = arith.truncf %102 : vector<8x256xf32> to vector<8x256xbf16>
    %c255_i32_95 = arith.constant 255 : i32
    %643 = tpu.dynamic_rotate %102 by %c255_i32_95 dim 1 : vector<8x256xf32>, i32 -> vector<8x256xf32>
    %644 = vector.extract_strided_slice %0 {offsets = [5, 0], sizes = [1, 256], strides = [1, 1]} : vector<9x256xf32> to vector<1x256xf32>
    %645 = vector.broadcast %644 : vector<1x256xf32> to vector<8x256xf32>
    %646 = arith.mulf %643, %645 : vector<8x256xf32>
    %647 = arith.truncf %646 : vector<8x256xf32> to vector<8x256xbf16>
    %c241_i32_96 = arith.constant 241 : i32
    %648 = tpu.dynamic_rotate %102 by %c241_i32_96 dim 1 : vector<8x256xf32>, i32 -> vector<8x256xf32>
    %649 = vector.extract_strided_slice %0 {offsets = [6, 0], sizes = [1, 256], strides = [1, 1]} : vector<9x256xf32> to vector<1x256xf32>
    %650 = vector.broadcast %649 : vector<1x256xf32> to vector<8x256xf32>
    %651 = arith.mulf %648, %650 : vector<8x256xf32>
    %652 = arith.truncf %651 : vector<8x256xf32> to vector<8x256xbf16>
    %c240_i32_97 = arith.constant 240 : i32
    %653 = tpu.dynamic_rotate %102 by %c240_i32_97 dim 1 : vector<8x256xf32>, i32 -> vector<8x256xf32>
    %654 = vector.extract_strided_slice %0 {offsets = [7, 0], sizes = [1, 256], strides = [1, 1]} : vector<9x256xf32> to vector<1x256xf32>
    %655 = vector.broadcast %654 : vector<1x256xf32> to vector<8x256xf32>
    %656 = arith.mulf %653, %655 : vector<8x256xf32>
    %657 = arith.truncf %656 : vector<8x256xf32> to vector<8x256xbf16>
    %c239_i32_98 = arith.constant 239 : i32
    %658 = tpu.dynamic_rotate %102 by %c239_i32_98 dim 1 : vector<8x256xf32>, i32 -> vector<8x256xf32>
    %659 = vector.extract_strided_slice %0 {offsets = [8, 0], sizes = [1, 256], strides = [1, 1]} : vector<9x256xf32> to vector<1x256xf32>
    %660 = vector.broadcast %659 : vector<1x256xf32> to vector<8x256xf32>
    %661 = arith.mulf %658, %660 : vector<8x256xf32>
    %662 = arith.truncf %661 : vector<8x256xf32> to vector<8x256xbf16>
    %663 = tpu.concatenate %626, %631, %636, %641, %642, %647, %652, %657, %662 in 0 : vector<8x256xbf16>, vector<8x256xbf16>, vector<8x256xbf16>, vector<8x256xbf16>, vector<8x256xbf16>, vector<8x256xbf16>, vector<8x256xbf16>, vector<8x256xbf16>, vector<8x256xbf16> -> vector<72x256xbf16>
    %c0_99 = arith.constant 0 : index
    %c0_100 = arith.constant 0 : index
    %664 = vector.load %arg20[%c0_99, %c0_100] : memref<8x72xbf16, #tpu.memory_space<vmem>>, vector<8x72xbf16>
    %cst_101 = arith.constant dense<0.000000e+00> : vector<8x256xf32>
    %665 = tpu.matmul %664, %663, %cst_101 {dimension_numbers = #tpu.dot_dimension_numbers<[1], [0], [0], [1], [0, 0, 1, 1], [], []>} : vector<8x72xbf16>, vector<72x256xbf16>, vector<8x256xf32> -> vector<8x256xf32>
    %666 = arith.addf %621, %665 : vector<8x256xf32>
    %c0_102 = arith.constant 0 : index
    %c0_103 = arith.constant 0 : index
    %667 = vector.load %arg21[%c0_102, %c0_103] : memref<8x1xf32, #tpu.memory_space<vmem>>, vector<8x1xf32>
    %668 = vector.broadcast %667 : vector<8x1xf32> to vector<8x256xf32>
    %669 = arith.addf %666, %668 : vector<8x256xf32>
    %cst_104 = arith.constant 0.000000e+00 : f32
    %670 = vector.broadcast %cst_104 : f32 to vector<8x256xf32>
    %671 = arith.maximumf %669, %670 : vector<8x256xf32>
    %c17_i32_105 = arith.constant 17 : i32
    %672 = tpu.dynamic_rotate %671 by %c17_i32_105 dim 1 : vector<8x256xf32>, i32 -> vector<8x256xf32>
    %673 = vector.extract_strided_slice %0 {offsets = [0, 0], sizes = [1, 256], strides = [1, 1]} : vector<9x256xf32> to vector<1x256xf32>
    %674 = vector.broadcast %673 : vector<1x256xf32> to vector<8x256xf32>
    %675 = arith.mulf %672, %674 : vector<8x256xf32>
    %676 = arith.truncf %675 : vector<8x256xf32> to vector<8x256xbf16>
    %c16_i32_106 = arith.constant 16 : i32
    %677 = tpu.dynamic_rotate %671 by %c16_i32_106 dim 1 : vector<8x256xf32>, i32 -> vector<8x256xf32>
    %678 = vector.extract_strided_slice %0 {offsets = [1, 0], sizes = [1, 256], strides = [1, 1]} : vector<9x256xf32> to vector<1x256xf32>
    %679 = vector.broadcast %678 : vector<1x256xf32> to vector<8x256xf32>
    %680 = arith.mulf %677, %679 : vector<8x256xf32>
    %681 = arith.truncf %680 : vector<8x256xf32> to vector<8x256xbf16>
    %c15_i32_107 = arith.constant 15 : i32
    %682 = tpu.dynamic_rotate %671 by %c15_i32_107 dim 1 : vector<8x256xf32>, i32 -> vector<8x256xf32>
    %683 = vector.extract_strided_slice %0 {offsets = [2, 0], sizes = [1, 256], strides = [1, 1]} : vector<9x256xf32> to vector<1x256xf32>
    %684 = vector.broadcast %683 : vector<1x256xf32> to vector<8x256xf32>
    %685 = arith.mulf %682, %684 : vector<8x256xf32>
    %686 = arith.truncf %685 : vector<8x256xf32> to vector<8x256xbf16>
    %c1_i32_108 = arith.constant 1 : i32
    %687 = tpu.dynamic_rotate %671 by %c1_i32_108 dim 1 : vector<8x256xf32>, i32 -> vector<8x256xf32>
    %688 = vector.extract_strided_slice %0 {offsets = [3, 0], sizes = [1, 256], strides = [1, 1]} : vector<9x256xf32> to vector<1x256xf32>
    %689 = vector.broadcast %688 : vector<1x256xf32> to vector<8x256xf32>
    %690 = arith.mulf %687, %689 : vector<8x256xf32>
    %691 = arith.truncf %690 : vector<8x256xf32> to vector<8x256xbf16>
    %692 = arith.truncf %671 : vector<8x256xf32> to vector<8x256xbf16>
    %c255_i32_109 = arith.constant 255 : i32
    %693 = tpu.dynamic_rotate %671 by %c255_i32_109 dim 1 : vector<8x256xf32>, i32 -> vector<8x256xf32>
    %694 = vector.extract_strided_slice %0 {offsets = [5, 0], sizes = [1, 256], strides = [1, 1]} : vector<9x256xf32> to vector<1x256xf32>
    %695 = vector.broadcast %694 : vector<1x256xf32> to vector<8x256xf32>
    %696 = arith.mulf %693, %695 : vector<8x256xf32>
    %697 = arith.truncf %696 : vector<8x256xf32> to vector<8x256xbf16>
    %c241_i32_110 = arith.constant 241 : i32
    %698 = tpu.dynamic_rotate %671 by %c241_i32_110 dim 1 : vector<8x256xf32>, i32 -> vector<8x256xf32>
    %699 = vector.extract_strided_slice %0 {offsets = [6, 0], sizes = [1, 256], strides = [1, 1]} : vector<9x256xf32> to vector<1x256xf32>
    %700 = vector.broadcast %699 : vector<1x256xf32> to vector<8x256xf32>
    %701 = arith.mulf %698, %700 : vector<8x256xf32>
    %702 = arith.truncf %701 : vector<8x256xf32> to vector<8x256xbf16>
    %c240_i32_111 = arith.constant 240 : i32
    %703 = tpu.dynamic_rotate %671 by %c240_i32_111 dim 1 : vector<8x256xf32>, i32 -> vector<8x256xf32>
    %704 = vector.extract_strided_slice %0 {offsets = [7, 0], sizes = [1, 256], strides = [1, 1]} : vector<9x256xf32> to vector<1x256xf32>
    %705 = vector.broadcast %704 : vector<1x256xf32> to vector<8x256xf32>
    %706 = arith.mulf %703, %705 : vector<8x256xf32>
    %707 = arith.truncf %706 : vector<8x256xf32> to vector<8x256xbf16>
    %c239_i32_112 = arith.constant 239 : i32
    %708 = tpu.dynamic_rotate %671 by %c239_i32_112 dim 1 : vector<8x256xf32>, i32 -> vector<8x256xf32>
    %709 = vector.extract_strided_slice %0 {offsets = [8, 0], sizes = [1, 256], strides = [1, 1]} : vector<9x256xf32> to vector<1x256xf32>
    %710 = vector.broadcast %709 : vector<1x256xf32> to vector<8x256xf32>
    %711 = arith.mulf %708, %710 : vector<8x256xf32>
    %712 = arith.truncf %711 : vector<8x256xf32> to vector<8x256xbf16>
    %713 = tpu.concatenate %676, %681, %686, %691, %692, %697, %702, %707, %712 in 0 : vector<8x256xbf16>, vector<8x256xbf16>, vector<8x256xbf16>, vector<8x256xbf16>, vector<8x256xbf16>, vector<8x256xbf16>, vector<8x256xbf16>, vector<8x256xbf16>, vector<8x256xbf16> -> vector<72x256xbf16>
    %c0_113 = arith.constant 0 : index
    %c0_114 = arith.constant 0 : index
    %714 = vector.load %arg22[%c0_113, %c0_114] : memref<8x72xbf16, #tpu.memory_space<vmem>>, vector<8x72xbf16>
    %cst_115 = arith.constant dense<0.000000e+00> : vector<8x256xf32>
    %715 = tpu.matmul %714, %713, %cst_115 {dimension_numbers = #tpu.dot_dimension_numbers<[1], [0], [0], [1], [0, 0, 1, 1], [], []>} : vector<8x72xbf16>, vector<72x256xbf16>, vector<8x256xf32> -> vector<8x256xf32>
    %c0_116 = arith.constant 0 : index
    %c0_117 = arith.constant 0 : index
    %716 = vector.load %arg23[%c0_116, %c0_117] : memref<8x1xf32, #tpu.memory_space<vmem>>, vector<8x1xf32>
    %717 = vector.broadcast %716 : vector<8x1xf32> to vector<8x256xf32>
    %718 = arith.addf %715, %717 : vector<8x256xf32>
    %cst_118 = arith.constant 0.000000e+00 : f32
    %719 = vector.broadcast %cst_118 : f32 to vector<8x256xf32>
    %720 = arith.maximumf %718, %719 : vector<8x256xf32>
    %c17_i32_119 = arith.constant 17 : i32
    %721 = tpu.dynamic_rotate %720 by %c17_i32_119 dim 1 : vector<8x256xf32>, i32 -> vector<8x256xf32>
    %722 = vector.extract_strided_slice %0 {offsets = [0, 0], sizes = [1, 256], strides = [1, 1]} : vector<9x256xf32> to vector<1x256xf32>
    %723 = vector.broadcast %722 : vector<1x256xf32> to vector<8x256xf32>
    %724 = arith.mulf %721, %723 : vector<8x256xf32>
    %725 = arith.truncf %724 : vector<8x256xf32> to vector<8x256xbf16>
    %c16_i32_120 = arith.constant 16 : i32
    %726 = tpu.dynamic_rotate %720 by %c16_i32_120 dim 1 : vector<8x256xf32>, i32 -> vector<8x256xf32>
    %727 = vector.extract_strided_slice %0 {offsets = [1, 0], sizes = [1, 256], strides = [1, 1]} : vector<9x256xf32> to vector<1x256xf32>
    %728 = vector.broadcast %727 : vector<1x256xf32> to vector<8x256xf32>
    %729 = arith.mulf %726, %728 : vector<8x256xf32>
    %730 = arith.truncf %729 : vector<8x256xf32> to vector<8x256xbf16>
    %c15_i32_121 = arith.constant 15 : i32
    %731 = tpu.dynamic_rotate %720 by %c15_i32_121 dim 1 : vector<8x256xf32>, i32 -> vector<8x256xf32>
    %732 = vector.extract_strided_slice %0 {offsets = [2, 0], sizes = [1, 256], strides = [1, 1]} : vector<9x256xf32> to vector<1x256xf32>
    %733 = vector.broadcast %732 : vector<1x256xf32> to vector<8x256xf32>
    %734 = arith.mulf %731, %733 : vector<8x256xf32>
    %735 = arith.truncf %734 : vector<8x256xf32> to vector<8x256xbf16>
    %c1_i32_122 = arith.constant 1 : i32
    %736 = tpu.dynamic_rotate %720 by %c1_i32_122 dim 1 : vector<8x256xf32>, i32 -> vector<8x256xf32>
    %737 = vector.extract_strided_slice %0 {offsets = [3, 0], sizes = [1, 256], strides = [1, 1]} : vector<9x256xf32> to vector<1x256xf32>
    %738 = vector.broadcast %737 : vector<1x256xf32> to vector<8x256xf32>
    %739 = arith.mulf %736, %738 : vector<8x256xf32>
    %740 = arith.truncf %739 : vector<8x256xf32> to vector<8x256xbf16>
    %741 = arith.truncf %720 : vector<8x256xf32> to vector<8x256xbf16>
    %c255_i32_123 = arith.constant 255 : i32
    %742 = tpu.dynamic_rotate %720 by %c255_i32_123 dim 1 : vector<8x256xf32>, i32 -> vector<8x256xf32>
    %743 = vector.extract_strided_slice %0 {offsets = [5, 0], sizes = [1, 256], strides = [1, 1]} : vector<9x256xf32> to vector<1x256xf32>
    %744 = vector.broadcast %743 : vector<1x256xf32> to vector<8x256xf32>
    %745 = arith.mulf %742, %744 : vector<8x256xf32>
    %746 = arith.truncf %745 : vector<8x256xf32> to vector<8x256xbf16>
    %c241_i32_124 = arith.constant 241 : i32
    %747 = tpu.dynamic_rotate %720 by %c241_i32_124 dim 1 : vector<8x256xf32>, i32 -> vector<8x256xf32>
    %748 = vector.extract_strided_slice %0 {offsets = [6, 0], sizes = [1, 256], strides = [1, 1]} : vector<9x256xf32> to vector<1x256xf32>
    %749 = vector.broadcast %748 : vector<1x256xf32> to vector<8x256xf32>
    %750 = arith.mulf %747, %749 : vector<8x256xf32>
    %751 = arith.truncf %750 : vector<8x256xf32> to vector<8x256xbf16>
    %c240_i32_125 = arith.constant 240 : i32
    %752 = tpu.dynamic_rotate %720 by %c240_i32_125 dim 1 : vector<8x256xf32>, i32 -> vector<8x256xf32>
    %753 = vector.extract_strided_slice %0 {offsets = [7, 0], sizes = [1, 256], strides = [1, 1]} : vector<9x256xf32> to vector<1x256xf32>
    %754 = vector.broadcast %753 : vector<1x256xf32> to vector<8x256xf32>
    %755 = arith.mulf %752, %754 : vector<8x256xf32>
    %756 = arith.truncf %755 : vector<8x256xf32> to vector<8x256xbf16>
    %c239_i32_126 = arith.constant 239 : i32
    %757 = tpu.dynamic_rotate %720 by %c239_i32_126 dim 1 : vector<8x256xf32>, i32 -> vector<8x256xf32>
    %758 = vector.extract_strided_slice %0 {offsets = [8, 0], sizes = [1, 256], strides = [1, 1]} : vector<9x256xf32> to vector<1x256xf32>
    %759 = vector.broadcast %758 : vector<1x256xf32> to vector<8x256xf32>
    %760 = arith.mulf %757, %759 : vector<8x256xf32>
    %761 = arith.truncf %760 : vector<8x256xf32> to vector<8x256xbf16>
    %762 = tpu.concatenate %725, %730, %735, %740, %741, %746, %751, %756, %761 in 0 : vector<8x256xbf16>, vector<8x256xbf16>, vector<8x256xbf16>, vector<8x256xbf16>, vector<8x256xbf16>, vector<8x256xbf16>, vector<8x256xbf16>, vector<8x256xbf16>, vector<8x256xbf16> -> vector<72x256xbf16>
    %c0_127 = arith.constant 0 : index
    %c0_128 = arith.constant 0 : index
    %763 = vector.load %arg24[%c0_127, %c0_128] : memref<1x72xbf16, #tpu.memory_space<vmem>>, vector<1x72xbf16>
    %cst_129 = arith.constant dense<0.000000e+00> : vector<1x256xf32>
    %764 = tpu.matmul %763, %762, %cst_129 {dimension_numbers = #tpu.dot_dimension_numbers<[1], [0], [0], [1], [0, 0, 1, 1], [], []>} : vector<1x72xbf16>, vector<72x256xbf16>, vector<1x256xf32> -> vector<1x256xf32>
    %c0_130 = arith.constant 0 : index
    %c0_131 = arith.constant 0 : index
    %765 = vector.load %arg25[%c0_130, %c0_131] : memref<1x1xf32, #tpu.memory_space<vmem>>, vector<1x1xf32>
    %766 = vector.broadcast %765 : vector<1x1xf32> to vector<1x256xf32>
    %767 = arith.addf %764, %766 : vector<1x256xf32>
    %c0_132 = arith.constant 0 : index
    %c0_133 = arith.constant 0 : index
    %c0_134 = arith.constant 0 : index
    %768 = vector.load %arg33[%c0_132, %c0_133, %c0_134] : memref<1x1x256xf32, #tpu.memory_space<vmem>>, vector<1x1x256xf32>
    %769 = vector.shape_cast %768 : vector<1x1x256xf32> to vector<1x256xf32>
    %770 = vector.shape_cast %767 : vector<1x256xf32> to vector<1x1x256xf32>
    tpu.vector_store %arg33[%c0_132, %c0_133, %c0_134], %770 {strides = array<i32>} : memref<1x1x256xf32, #tpu.memory_space<vmem>>, vector<1x1x256xf32>,
    return
  }
  func.func @transform_0(%arg0: i32) -> (i32, i32, i32) {
    %c0_i32 = arith.constant 0 : i32
    %c0_i32_0 = arith.constant 0 : i32
    %c0_i32_1 = arith.constant 0 : i32
    return %arg0, %c0_i32, %c0_i32_0 : i32, i32, i32
  }
  func.func @transform_1(%arg0: i32) -> (i32, i32) {
    %c0_i32 = arith.constant 0 : i32
    %c0_i32_0 = arith.constant 0 : i32
    %c0_i32_1 = arith.constant 0 : i32
    return %c0_i32, %c0_i32_0 : i32, i32
  }
  func.func @transform_2(%arg0: i32) -> (i32, i32) {
    %c0_i32 = arith.constant 0 : i32
    %c0_i32_0 = arith.constant 0 : i32
    %c0_i32_1 = arith.constant 0 : i32
    return %c0_i32, %c0_i32_0 : i32, i32
  }
  func.func @transform_3(%arg0: i32) -> (i32, i32) {
    %c0_i32 = arith.constant 0 : i32
    %c0_i32_0 = arith.constant 0 : i32
    %c0_i32_1 = arith.constant 0 : i32
    return %c0_i32, %c0_i32_0 : i32, i32
  }
  func.func @transform_4(%arg0: i32) -> (i32, i32) {
    %c0_i32 = arith.constant 0 : i32
    %c0_i32_0 = arith.constant 0 : i32
    %c0_i32_1 = arith.constant 0 : i32
    return %c0_i32, %c0_i32_0 : i32, i32
  }
  func.func @transform_5(%arg0: i32) -> (i32, i32) {
    %c0_i32 = arith.constant 0 : i32
    %c0_i32_0 = arith.constant 0 : i32
    %c0_i32_1 = arith.constant 0 : i32
    return %c0_i32, %c0_i32_0 : i32, i32
  }
  func.func @transform_6(%arg0: i32) -> (i32, i32) {
    %c0_i32 = arith.constant 0 : i32
    %c0_i32_0 = arith.constant 0 : i32
    %c0_i32_1 = arith.constant 0 : i32
    return %c0_i32, %c0_i32_0 : i32, i32
  }
  func.func @transform_7(%arg0: i32) -> (i32, i32) {
    %c0_i32 = arith.constant 0 : i32
    %c0_i32_0 = arith.constant 0 : i32
    %c0_i32_1 = arith.constant 0 : i32
    return %c0_i32, %c0_i32_0 : i32, i32
  }
  func.func @transform_8(%arg0: i32) -> (i32, i32) {
    %c0_i32 = arith.constant 0 : i32
    %c0_i32_0 = arith.constant 0 : i32
    %c0_i32_1 = arith.constant 0 : i32
    return %c0_i32, %c0_i32_0 : i32, i32
  }
  func.func @transform_9(%arg0: i32) -> (i32, i32) {
    %c0_i32 = arith.constant 0 : i32
    %c0_i32_0 = arith.constant 0 : i32
    %c0_i32_1 = arith.constant 0 : i32
    return %c0_i32, %c0_i32_0 : i32, i32
  }
  func.func @transform_10(%arg0: i32) -> (i32, i32) {
    %c0_i32 = arith.constant 0 : i32
    %c0_i32_0 = arith.constant 0 : i32
    %c0_i32_1 = arith.constant 0 : i32
    return %c0_i32, %c0_i32_0 : i32, i32
  }
  func.func @transform_11(%arg0: i32) -> (i32, i32) {
    %c0_i32 = arith.constant 0 : i32
    %c0_i32_0 = arith.constant 0 : i32
    %c0_i32_1 = arith.constant 0 : i32
    return %c0_i32, %c0_i32_0 : i32, i32
  }
  func.func @transform_12(%arg0: i32) -> (i32, i32) {
    %c0_i32 = arith.constant 0 : i32
    %c0_i32_0 = arith.constant 0 : i32
    %c0_i32_1 = arith.constant 0 : i32
    return %c0_i32, %c0_i32_0 : i32, i32
  }
  func.func @transform_13(%arg0: i32) -> (i32, i32) {
    %c0_i32 = arith.constant 0 : i32
    %c0_i32_0 = arith.constant 0 : i32
    %c0_i32_1 = arith.constant 0 : i32
    return %c0_i32, %c0_i32_0 : i32, i32
  }
  func.func @transform_14(%arg0: i32) -> (i32, i32) {
    %c0_i32 = arith.constant 0 : i32
    %c0_i32_0 = arith.constant 0 : i32
    %c0_i32_1 = arith.constant 0 : i32
    return %c0_i32, %c0_i32_0 : i32, i32
  }
  func.func @transform_15(%arg0: i32) -> (i32, i32) {
    %c0_i32 = arith.constant 0 : i32
    %c0_i32_0 = arith.constant 0 : i32
    %c0_i32_1 = arith.constant 0 : i32
    return %c0_i32, %c0_i32_0 : i32, i32
  }
  func.func @transform_16(%arg0: i32) -> (i32, i32) {
    %c0_i32 = arith.constant 0 : i32
    %c0_i32_0 = arith.constant 0 : i32
    %c0_i32_1 = arith.constant 0 : i32
    return %c0_i32, %c0_i32_0 : i32, i32
  }
  func.func @transform_17(%arg0: i32) -> (i32, i32) {
    %c0_i32 = arith.constant 0 : i32
    %c0_i32_0 = arith.constant 0 : i32
    %c0_i32_1 = arith.constant 0 : i32
    return %c0_i32, %c0_i32_0 : i32, i32
  }
  func.func @transform_18(%arg0: i32) -> (i32, i32) {
    %c0_i32 = arith.constant 0 : i32
    %c0_i32_0 = arith.constant 0 : i32
    %c0_i32_1 = arith.constant 0 : i32
    return %c0_i32, %c0_i32_0 : i32, i32
  }
  func.func @transform_19(%arg0: i32) -> (i32, i32) {
    %c0_i32 = arith.constant 0 : i32
    %c0_i32_0 = arith.constant 0 : i32
    %c0_i32_1 = arith.constant 0 : i32
    return %c0_i32, %c0_i32_0 : i32, i32
  }
  func.func @transform_20(%arg0: i32) -> (i32, i32) {
    %c0_i32 = arith.constant 0 : i32
    %c0_i32_0 = arith.constant 0 : i32
    %c0_i32_1 = arith.constant 0 : i32
    return %c0_i32, %c0_i32_0 : i32, i32
  }
  func.func @transform_21(%arg0: i32) -> (i32, i32) {
    %c0_i32 = arith.constant 0 : i32
    %c0_i32_0 = arith.constant 0 : i32
    %c0_i32_1 = arith.constant 0 : i32
    return %c0_i32, %c0_i32_0 : i32, i32
  }
  func.func @transform_22(%arg0: i32) -> (i32, i32) {
    %c0_i32 = arith.constant 0 : i32
    %c0_i32_0 = arith.constant 0 : i32
    %c0_i32_1 = arith.constant 0 : i32
    return %c0_i32, %c0_i32_0 : i32, i32
  }
  func.func @transform_23(%arg0: i32) -> (i32, i32) {
    %c0_i32 = arith.constant 0 : i32
    %c0_i32_0 = arith.constant 0 : i32
    %c0_i32_1 = arith.constant 0 : i32
    return %c0_i32, %c0_i32_0 : i32, i32
  }
  func.func @transform_24(%arg0: i32) -> (i32, i32) {
    %c0_i32 = arith.constant 0 : i32
    %c0_i32_0 = arith.constant 0 : i32
    %c0_i32_1 = arith.constant 0 : i32
    return %c0_i32, %c0_i32_0 : i32, i32
  }
  func.func @transform_25(%arg0: i32) -> (i32, i32) {
    %c0_i32 = arith.constant 0 : i32
    %c0_i32_0 = arith.constant 0 : i32
    %c0_i32_1 = arith.constant 0 : i32
    return %c0_i32, %c0_i32_0 : i32, i32
  }
  func.func @transform_26(%arg0: i32) -> (i32, i32) {
    %c0_i32 = arith.constant 0 : i32
    %c0_i32_0 = arith.constant 0 : i32
    %c0_i32_1 = arith.constant 0 : i32
    return %c0_i32, %c0_i32_0 : i32, i32
  }
  func.func @transform_27(%arg0: i32) -> (i32, i32) {
    %c0_i32 = arith.constant 0 : i32
    %c0_i32_0 = arith.constant 0 : i32
    %c0_i32_1 = arith.constant 0 : i32
    return %c0_i32, %c0_i32_0 : i32, i32
  }
  func.func @transform_28(%arg0: i32) -> (i32, i32) {
    %c0_i32 = arith.constant 0 : i32
    %c0_i32_0 = arith.constant 0 : i32
    %c0_i32_1 = arith.constant 0 : i32
    return %c0_i32, %c0_i32_0 : i32, i32
  }
  func.func @transform_29(%arg0: i32) -> (i32, i32) {
    %c0_i32 = arith.constant 0 : i32
    %c0_i32_0 = arith.constant 0 : i32
    %c0_i32_1 = arith.constant 0 : i32
    return %c0_i32, %c0_i32_0 : i32, i32
  }
  func.func @transform_30(%arg0: i32) -> (i32, i32) {
    %c0_i32 = arith.constant 0 : i32
    %c0_i32_0 = arith.constant 0 : i32
    %c0_i32_1 = arith.constant 0 : i32
    return %c0_i32, %c0_i32_0 : i32, i32
  }
  func.func @transform_31(%arg0: i32) -> (i32, i32) {
    %c0_i32 = arith.constant 0 : i32
    %c0_i32_0 = arith.constant 0 : i32
    %c0_i32_1 = arith.constant 0 : i32
    return %c0_i32, %c0_i32_0 : i32, i32
  }
  func.func @transform_32(%arg0: i32) -> (i32, i32, i32) {
    %c0_i32 = arith.constant 0 : i32
    %c0_i32_0 = arith.constant 0 : i32
    %c0_i32_1 = arith.constant 0 : i32
    return %arg0, %c0_i32, %c0_i32_0 : i32, i32, i32
  }
}

</mosaic_0001>

<llo_original>
// kernel: net4ch_forward.1
$region0: #{net4ch_forward.1}
  #allocation0 [shape = 'u32[]', space=smem, size = 0x4, offset = 0x4, fixed_abs, tag = 'smem constant byte address 0x4 - core index']
  #allocation1 [shape = 'u32[72,128]{1,0:T(1,128)}', space=vmem, size = 0x9000, scoped, tag = 'internal scratch']
  #allocation2 [shape = 'f32[1,1]{1,0:T(1,128)S(1)}', space=vmem, size = 0x200, scoped, tag = 'scoped memory for net4ch_forward.1']
  %s0 = inlined_call_operand.smem [shape: u32[33], index: -1, kind: input, shape index: {}]
  %s1 = sld [smem:[%s0]]
  %s2 = scalar_lea.smem %s0, 1
  %s3 = sld [smem:[%s2]]
  %s4 = scalar_lea.smem %s0, 2
  %s5 = sld [smem:[%s4]]
  %s6 = scalar_lea.smem %s0, 3
  %s7 = sld [smem:[%s6]]
  %s8 = scalar_lea.smem %s0, 4
  %s9 = sld [smem:[%s8]]
  %s10 = scalar_lea.smem %s0, 5
  %s11 = sld [smem:[%s10]]
  %s12 = scalar_lea.smem %s0, 6
  %s13 = sld [smem:[%s12]]
  %s14 = scalar_lea.smem %s0, 7
  %s15 = sld [smem:[%s14]]
  %s16 = scalar_lea.smem %s0, 8
  %s17 = sld [smem:[%s16]]
  %s18 = scalar_lea.smem %s0, 9
  %s19 = sld [smem:[%s18]]
  %s20 = scalar_lea.smem %s0, 10
  %s21 = sld [smem:[%s20]]
  %s22 = scalar_lea.smem %s0, 11
  %s23 = sld [smem:[%s22]]
  %s24 = scalar_lea.smem %s0, 12
  %s25 = sld [smem:[%s24]]
  %s26 = scalar_lea.smem %s0, 13
  %s27 = sld [smem:[%s26]]
  %s28 = scalar_lea.smem %s0, 14
  %s29 = sld [smem:[%s28]]
  %s30 = scalar_lea.smem %s0, 15
  %s31 = sld [smem:[%s30]]
  %s32 = scalar_lea.smem %s0, 16
  %s33 = sld [smem:[%s32]]
  %s34 = scalar_lea.smem %s0, 17
  %s35 = sld [smem:[%s34]]
  %s36 = scalar_lea.smem %s0, 18
  %s37 = sld [smem:[%s36]]
  %s38 = scalar_lea.smem %s0, 19
  %s39 = sld [smem:[%s38]]
  %s40 = scalar_lea.smem %s0, 20
  %s41 = sld [smem:[%s40]]
  %s42 = scalar_lea.smem %s0, 21
  %s43 = sld [smem:[%s42]]
  %s44 = scalar_lea.smem %s0, 22
  %s45 = sld [smem:[%s44]]
  %s46 = scalar_lea.smem %s0, 23
  %s47 = sld [smem:[%s46]]
  %s48 = scalar_lea.smem %s0, 24
  %s49 = sld [smem:[%s48]]
  %s50 = scalar_lea.smem %s0, 25
  %s51 = sld [smem:[%s50]]
  %s52 = scalar_lea.smem %s0, 26
  %s53 = sld [smem:[%s52]]
  %s54 = scalar_lea.smem %s0, 27
  %s55 = sld [smem:[%s54]]
  %s56 = scalar_lea.smem %s0, 28
  %s57 = sld [smem:[%s56]]
  %s58 = scalar_lea.smem %s0, 29
  %s59 = sld [smem:[%s58]]
  %s60 = scalar_lea.smem %s0, 30
  %s61 = sld [smem:[%s60]]
  %s62 = scalar_lea.smem %s0, 31
  %s63 = sld [smem:[%s62]]
  %s64 = scalar_lea.smem %s0, 32
  %s65 = sld [smem:[%s64]]
  %s66 = sld [smem:[#allocation0]]
  $region161: #{net4ch_forward.1} parent=0
    _
  %s68 = ssub.s32 1, %s66
  %s69 = scalar_select 0, %s68, %s66
  %v70 = vstv %s49
  %71 = vst [vmem:[#allocation2] sm:$0x1] %v70
  loop: start=0, step=1, limit=4
  $region2: #{net4ch_forward.1} parent=0 // loop_pre_header
    _
  $region3: #{net4ch_forward.1} parent=0 // loop_header
    %s73 = sphi 0, %s77
    %p74 = scmp.ge.s32.totalorder %s73, 4
    %s83 = sphi 0, %s85
    %s86 = sphi 0, %s83
    %s87 = sphi 0, %s86
    %s103 = sphi 0, %s87
    %s107 = sphi 0, %s107
    %s109 = sphi 0, %s107
    %s110 = sphi 0, %s109
    %s124 = sphi 0, %s110
    %s128 = sphi 0, %s128
    %s130 = sphi 0, %s128
    %s131 = sphi 0, %s130
    %s145 = sphi 0, %s131
    %s149 = sphi 0, %s149
    %s151 = sphi 0, %s149
    %s152 = sphi 0, %s151
    %s166 = sphi 0, %s152
    %s170 = sphi 0, %s170
    %s172 = sphi 0, %s170
    %s173 = sphi 0, %s172
    %s187 = sphi 0, %s173
    %s191 = sphi 0, %s191
    %s193 = sphi 0, %s191
    %s194 = sphi 0, %s193
    %s208 = sphi 0, %s194
    %s212 = sphi 0, %s212
    %s214 = sphi 0, %s212
    %s215 = sphi 0, %s214
    %s229 = sphi 0, %s215
    %s233 = sphi 0, %s233
    %s235 = sphi 0, %s233
    %s236 = sphi 0, %s235
    %s250 = sphi 0, %s236
    %s254 = sphi 0, %s254
    %s256 = sphi 0, %s254
    %s257 = sphi 0, %s256
    %s271 = sphi 0, %s257
    %s275 = sphi 0, %s275
    %s277 = sphi 0, %s275
    %s278 = sphi 0, %s277
    %s292 = sphi 0, %s278
    %s296 = sphi 0, %s296
    %s298 = sphi 0, %s296
    %s299 = sphi 0, %s298
    %s313 = sphi 0, %s299
    %s317 = sphi 0, %s317
    %s319 = sphi 0, %s317
    %s320 = sphi 0, %s319
    %s334 = sphi 0, %s320
    %s338 = sphi 0, %s338
    %s340 = sphi 0, %s338
    %s341 = sphi 0, %s340
    %s355 = sphi 0, %s341
    %s359 = sphi 0, %s359
    %s361 = sphi 0, %s359
    %s362 = sphi 0, %s361
    %s376 = sphi 0, %s362
    %s380 = sphi 0, %s380
    %s382 = sphi 0, %s380
    %s383 = sphi 0, %s382
    %s397 = sphi 0, %s383
    %s401 = sphi 0, %s401
    %s403 = sphi 0, %s401
    %s404 = sphi 0, %s403
    %s418 = sphi 0, %s404
    %s422 = sphi 0, %s422
    %s424 = sphi 0, %s422
    %s425 = sphi 0, %s424
    %s439 = sphi 0, %s425
    %s443 = sphi 0, %s443
    %s445 = sphi 0, %s443
    %s446 = sphi 0, %s445
    %s460 = sphi 0, %s446
    %s464 = sphi 0, %s464
    %s466 = sphi 0, %s464
    %s467 = sphi 0, %s466
    %s481 = sphi 0, %s467
    %s485 = sphi 0, %s485
    %s487 = sphi 0, %s485
    %s488 = sphi 0, %s487
    %s502 = sphi 0, %s488
    %s506 = sphi 0, %s506
    %s508 = sphi 0, %s506
    %s509 = sphi 0, %s508
    %s523 = sphi 0, %s509
    %s527 = sphi 0, %s527
    %s529 = sphi 0, %s527
    %s530 = sphi 0, %s529
    %s544 = sphi 0, %s530
    %s548 = sphi 0, %s548
    %s550 = sphi 0, %s548
    %s551 = sphi 0, %s550
    %s565 = sphi 0, %s551
    %s569 = sphi 0, %s569
    %s571 = sphi 0, %s569
    %s572 = sphi 0, %s571
    %s586 = sphi 0, %s572
    %s590 = sphi 0, %s590
    %s592 = sphi 0, %s590
    %s593 = sphi 0, %s592
    %s607 = sphi 0, %s593
    %s611 = sphi 0, %s611
    %s613 = sphi 0, %s611
    %s614 = sphi 0, %s613
    %s628 = sphi 0, %s614
    %s632 = sphi 0, %s632
    %s634 = sphi 0, %s632
    %s635 = sphi 0, %s634
    %s649 = sphi 0, %s635
    %s653 = sphi 0, %s653
    %s655 = sphi 0, %s653
    %s656 = sphi 0, %s655
    %s670 = sphi 0, %s656
    %s674 = sphi 0, %s674
    %s676 = sphi 0, %s674
    %s677 = sphi 0, %s676
    %s691 = sphi 0, %s677
    %s695 = sphi 0, %s695
    %s697 = sphi 0, %s695
    %s698 = sphi 0, %s697
    %s712 = sphi 0, %s698
    %s716 = sphi 0, %s716
    %s718 = sphi 0, %s716
    %s719 = sphi 0, %s718
    %s733 = sphi 0, %s719
    %s737 = sphi 0, %s737
    %s739 = sphi 0, %s737
    %s740 = sphi 0, %s739
    %s754 = sphi 0, %s740
    %s760 = sphi 0, %s762
    %s763 = sphi 0, %s760
    %s764 = sphi 0, %s763
    %s780 = sphi 0, %s764
  $region4: #{net4ch_forward.1} parent=0 // loop_header_branch
    %76 = sbr.rel (%p74) target = $region8
  $region5: #{net4ch_forward.1} parent=0 // loop_body
    %s78 = ssub.s32 %s73, 1
    %s79 = ssub.s32 %s73, 2
    %s80 = sadd.s32 %s73, 1
    %s81 = ssub.s32 %s73, %s80
    %p82 = scmp.eq.s32.totalorder %s81, 0
    %s84 = sadd.s32 %s83, 1
    %s85 = scalar_select %p82, %s83, %s84
    %p88 = pneg %p82
    %p89 = scmp.eq.s32.totalorder %s73, 1
    %p90 = por %p88, %p89
    %p91 = scmp.ne.s32.totalorder %s83, %s86
    %p92 = scmp.eq.s32.totalorder %s73, 0
    %p93 = por %p91, %p92
    %p94 = scmp.ne.s32.totalorder %s83, %s86
    %p95 = scmp.eq.s32.totalorder %s78, 1
    %p96 = por %p94, %p95
    %p97 = scmp.ne.s32.totalorder %s86, %s87
    %p98 = scmp.eq.s32.totalorder %s78, 0
    %p99 = por %p97, %p98
    %p100 = scmp.ne.s32.totalorder %s86, %s87
    %p101 = scmp.eq.s32.totalorder %s79, 1
    %p102 = por %p100, %p101
    %p104 = scmp.ne.s32.totalorder %s87, %s103
    %p105 = scmp.eq.s32.totalorder %s79, 0
    %p106 = por %p104, %p105
    %s108 = sadd.s32 %s107, 1
    %p111 = scmp.eq.s32.totalorder %s73, 1
    %p112 = scmp.ne.s32.totalorder %s107, %s109
    %p113 = scmp.eq.s32.totalorder %s73, 0
    %p114 = por %p112, %p113
    %p115 = scmp.ne.s32.totalorder %s107, %s109
    %p116 = scmp.eq.s32.totalorder %s78, 1
    %p117 = por %p115, %p116
    %p118 = scmp.ne.s32.totalorder %s109, %s110
    %p119 = scmp.eq.s32.totalorder %s78, 0
    %p120 = por %p118, %p119
    %p121 = scmp.ne.s32.totalorder %s109, %s110
    %p122 = scmp.eq.s32.totalorder %s79, 1
    %p123 = por %p121, %p122
    %p125 = scmp.ne.s32.totalorder %s110, %s124
    %p126 = scmp.eq.s32.totalorder %s79, 0
    %p127 = por %p125, %p126
    %s129 = sadd.s32 %s128, 1
    %p132 = scmp.eq.s32.totalorder %s73, 1
    %p133 = scmp.ne.s32.totalorder %s128, %s130
    %p134 = scmp.eq.s32.totalorder %s73, 0
    %p135 = por %p133, %p134
    %p136 = scmp.ne.s32.totalorder %s128, %s130
    %p137 = scmp.eq.s32.totalorder %s78, 1
    %p138 = por %p136, %p137
    %p139 = scmp.ne.s32.totalorder %s130, %s131
    %p140 = scmp.eq.s32.totalorder %s78, 0
    %p141 = por %p139, %p140
    %p142 = scmp.ne.s32.totalorder %s130, %s131
    %p143 = scmp.eq.s32.totalorder %s79, 1
    %p144 = por %p142, %p143
    %p146 = scmp.ne.s32.totalorder %s131, %s145
    %p147 = scmp.eq.s32.totalorder %s79, 0
    %p148 = por %p146, %p147
    %s150 = sadd.s32 %s149, 1
    %p153 = scmp.eq.s32.totalorder %s73, 1
    %p154 = scmp.ne.s32.totalorder %s149, %s151
    %p155 = scmp.eq.s32.totalorder %s73, 0
    %p156 = por %p154, %p155
    %p157 = scmp.ne.s32.totalorder %s149, %s151
    %p158 = scmp.eq.s32.totalorder %s78, 1
    %p159 = por %p157, %p158
    %p160 = scmp.ne.s32.totalorder %s151, %s152
    %p161 = scmp.eq.s32.totalorder %s78, 0
    %p162 = por %p160, %p161
    %p163 = scmp.ne.s32.totalorder %s151, %s152
    %p164 = scmp.eq.s32.totalorder %s79, 1
    %p165 = por %p163, %p164
    %p167 = scmp.ne.s32.totalorder %s152, %s166
    %p168 = scmp.eq.s32.totalorder %s79, 0
    %p169 = por %p167, %p168
    %s171 = sadd.s32 %s170, 1
    %p174 = scmp.eq.s32.totalorder %s73, 1
    %p175 = scmp.ne.s32.totalorder %s170, %s172
    %p176 = scmp.eq.s32.totalorder %s73, 0
    %p177 = por %p175, %p176
    %p178 = scmp.ne.s32.totalorder %s170, %s172
    %p179 = scmp.eq.s32.totalorder %s78, 1
    %p180 = por %p178, %p179
    %p181 = scmp.ne.s32.totalorder %s172, %s173
    %p182 = scmp.eq.s32.totalorder %s78, 0
    %p183 = por %p181, %p182
    %p184 = scmp.ne.s32.totalorder %s172, %s173
    %p185 = scmp.eq.s32.totalorder %s79, 1
    %p186 = por %p184, %p185
    %p188 = scmp.ne.s32.totalorder %s173, %s187
    %p189 = scmp.eq.s32.totalorder %s79, 0
    %p190 = por %p188, %p189
    %s192 = sadd.s32 %s191, 1
    %p195 = scmp.eq.s32.totalorder %s73, 1
    %p196 = scmp.ne.s32.totalorder %s191, %s193
    %p197 = scmp.eq.s32.totalorder %s73, 0
    %p198 = por %p196, %p197
    %p199 = scmp.ne.s32.totalorder %s191, %s193
    %p200 = scmp.eq.s32.totalorder %s78, 1
    %p201 = por %p199, %p200
    %p202 = scmp.ne.s32.totalorder %s193, %s194
    %p203 = scmp.eq.s32.totalorder %s78, 0
    %p204 = por %p202, %p203
    %p205 = scmp.ne.s32.totalorder %s193, %s194
    %p206 = scmp.eq.s32.totalorder %s79, 1
    %p207 = por %p205, %p206
    %p209 = scmp.ne.s32.totalorder %s194, %s208
    %p210 = scmp.eq.s32.totalorder %s79, 0
    %p211 = por %p209, %p210
    %s213 = sadd.s32 %s212, 1
    %p216 = scmp.eq.s32.totalorder %s73, 1
    %p217 = scmp.ne.s32.totalorder %s212, %s214
    %p218 = scmp.eq.s32.totalorder %s73, 0
    %p219 = por %p217, %p218
    %p220 = scmp.ne.s32.totalorder %s212, %s214
    %p221 = scmp.eq.s32.totalorder %s78, 1
    %p222 = por %p220, %p221
    %p223 = scmp.ne.s32.totalorder %s214, %s215
    %p224 = scmp.eq.s32.totalorder %s78, 0
    %p225 = por %p223, %p224
    %p226 = scmp.ne.s32.totalorder %s214, %s215
    %p227 = scmp.eq.s32.totalorder %s79, 1
    %p228 = por %p226, %p227
    %p230 = scmp.ne.s32.totalorder %s215, %s229
    %p231 = scmp.eq.s32.totalorder %s79, 0
    %p232 = por %p230, %p231
    %s234 = sadd.s32 %s233, 1
    %p237 = scmp.eq.s32.totalorder %s73, 1
    %p238 = scmp.ne.s32.totalorder %s233, %s235
    %p239 = scmp.eq.s32.totalorder %s73, 0
    %p240 = por %p238, %p239
    %p241 = scmp.ne.s32.totalorder %s233, %s235
    %p242 = scmp.eq.s32.totalorder %s78, 1
    %p243 = por %p241, %p242
    %p244 = scmp.ne.s32.totalorder %s235, %s236
    %p245 = scmp.eq.s32.totalorder %s78, 0
    %p246 = por %p244, %p245
    %p247 = scmp.ne.s32.totalorder %s235, %s236
    %p248 = scmp.eq.s32.totalorder %s79, 1
    %p249 = por %p247, %p248
    %p251 = scmp.ne.s32.totalorder %s236, %s250
    %p252 = scmp.eq.s32.totalorder %s79, 0
    %p253 = por %p251, %p252
    %s255 = sadd.s32 %s254, 1
    %p258 = scmp.eq.s32.totalorder %s73, 1
    %p259 = scmp.ne.s32.totalorder %s254, %s256
    %p260 = scmp.eq.s32.totalorder %s73, 0
    %p261 = por %p259, %p260
    %p262 = scmp.ne.s32.totalorder %s254, %s256
    %p263 = scmp.eq.s32.totalorder %s78, 1
    %p264 = por %p262, %p263
    %p265 = scmp.ne.s32.totalorder %s256, %s257
    %p266 = scmp.eq.s32.totalorder %s78, 0
    %p267 = por %p265, %p266
    %p268 = scmp.ne.s32.totalorder %s256, %s257
    %p269 = scmp.eq.s32.totalorder %s79, 1
    %p270 = por %p268, %p269
    %p272 = scmp.ne.s32.totalorder %s257, %s271
    %p273 = scmp.eq.s32.totalorder %s79, 0
    %p274 = por %p272, %p273
    %s276 = sadd.s32 %s275, 1
    %p279 = scmp.eq.s32.totalorder %s73, 1
    %p280 = scmp.ne.s32.totalorder %s275, %s277
    %p281 = scmp.eq.s32.totalorder %s73, 0
    %p282 = por %p280, %p281
    %p283 = scmp.ne.s32.totalorder %s275, %s277
    %p284 = scmp.eq.s32.totalorder %s78, 1
    %p285 = por %p283, %p284
    %p286 = scmp.ne.s32.totalorder %s277, %s278
    %p287 = scmp.eq.s32.totalorder %s78, 0
    %p288 = por %p286, %p287
    %p289 = scmp.ne.s32.totalorder %s277, %s278
    %p290 = scmp.eq.s32.totalorder %s79, 1
    %p291 = por %p289, %p290
    %p293 = scmp.ne.s32.totalorder %s278, %s292
    %p294 = scmp.eq.s32.totalorder %s79, 0
    %p295 = por %p293, %p294
    %s297 = sadd.s32 %s296, 1
    %p300 = scmp.eq.s32.totalorder %s73, 1
    %p301 = scmp.ne.s32.totalorder %s296, %s298
    %p302 = scmp.eq.s32.totalorder %s73, 0
    %p303 = por %p301, %p302
    %p304 = scmp.ne.s32.totalorder %s296, %s298
    %p305 = scmp.eq.s32.totalorder %s78, 1
    %p306 = por %p304, %p305
    %p307 = scmp.ne.s32.totalorder %s298, %s299
    %p308 = scmp.eq.s32.totalorder %s78, 0
    %p309 = por %p307, %p308
    %p310 = scmp.ne.s32.totalorder %s298, %s299
    %p311 = scmp.eq.s32.totalorder %s79, 1
    %p312 = por %p310, %p311
    %p314 = scmp.ne.s32.totalorder %s299, %s313
    %p315 = scmp.eq.s32.totalorder %s79, 0
    %p316 = por %p314, %p315
    %s318 = sadd.s32 %s317, 1
    %p321 = scmp.eq.s32.totalorder %s73, 1
    %p322 = scmp.ne.s32.totalorder %s317, %s319
    %p323 = scmp.eq.s32.totalorder %s73, 0
    %p324 = por %p322, %p323
    %p325 = scmp.ne.s32.totalorder %s317, %s319
    %p326 = scmp.eq.s32.totalorder %s78, 1
    %p327 = por %p325, %p326
    %p328 = scmp.ne.s32.totalorder %s319, %s320
    %p329 = scmp.eq.s32.totalorder %s78, 0
    %p330 = por %p328, %p329
    %p331 = scmp.ne.s32.totalorder %s319, %s320
    %p332 = scmp.eq.s32.totalorder %s79, 1
    %p333 = por %p331, %p332
    %p335 = scmp.ne.s32.totalorder %s320, %s334
    %p336 = scmp.eq.s32.totalorder %s79, 0
    %p337 = por %p335, %p336
    %s339 = sadd.s32 %s338, 1
    %p342 = scmp.eq.s32.totalorder %s73, 1
    %p343 = scmp.ne.s32.totalorder %s338, %s340
    %p344 = scmp.eq.s32.totalorder %s73, 0
    %p345 = por %p343, %p344
    %p346 = scmp.ne.s32.totalorder %s338, %s340
    %p347 = scmp.eq.s32.totalorder %s78, 1
    %p348 = por %p346, %p347
    %p349 = scmp.ne.s32.totalorder %s340, %s341
    %p350 = scmp.eq.s32.totalorder %s78, 0
    %p351 = por %p349, %p350
    %p352 = scmp.ne.s32.totalorder %s340, %s341
    %p353 = scmp.eq.s32.totalorder %s79, 1
    %p354 = por %p352, %p353
    %p356 = scmp.ne.s32.totalorder %s341, %s355
    %p357 = scmp.eq.s32.totalorder %s79, 0
    %p358 = por %p356, %p357
    %s360 = sadd.s32 %s359, 1
    %p363 = scmp.eq.s32.totalorder %s73, 1
    %p364 = scmp.ne.s32.totalorder %s359, %s361
    %p365 = scmp.eq.s32.totalorder %s73, 0
    %p366 = por %p364, %p365
    %p367 = scmp.ne.s32.totalorder %s359, %s361
    %p368 = scmp.eq.s32.totalorder %s78, 1
    %p369 = por %p367, %p368
    %p370 = scmp.ne.s32.totalorder %s361, %s362
    %p371 = scmp.eq.s32.totalorder %s78, 0
    %p372 = por %p370, %p371
    %p373 = scmp.ne.s32.totalorder %s361, %s362
    %p374 = scmp.eq.s32.totalorder %s79, 1
    %p375 = por %p373, %p374
    %p377 = scmp.ne.s32.totalorder %s362, %s376
    %p378 = scmp.eq.s32.totalorder %s79, 0
    %p379 = por %p377, %p378
    %s381 = sadd.s32 %s380, 1
    %p384 = scmp.eq.s32.totalorder %s73, 1
    %p385 = scmp.ne.s32.totalorder %s380, %s382
    %p386 = scmp.eq.s32.totalorder %s73, 0
    %p387 = por %p385, %p386
    %p388 = scmp.ne.s32.totalorder %s380, %s382
    %p389 = scmp.eq.s32.totalorder %s78, 1
    %p390 = por %p388, %p389
    %p391 = scmp.ne.s32.totalorder %s382, %s383
    %p392 = scmp.eq.s32.totalorder %s78, 0
    %p393 = por %p391, %p392
    %p394 = scmp.ne.s32.totalorder %s382, %s383
    %p395 = scmp.eq.s32.totalorder %s79, 1
    %p396 = por %p394, %p395
    %p398 = scmp.ne.s32.totalorder %s383, %s397
    %p399 = scmp.eq.s32.totalorder %s79, 0
    %p400 = por %p398, %p399
    %s402 = sadd.s32 %s401, 1
    %p405 = scmp.eq.s32.totalorder %s73, 1
    %p406 = scmp.ne.s32.totalorder %s401, %s403
    %p407 = scmp.eq.s32.totalorder %s73, 0
    %p408 = por %p406, %p407
    %p409 = scmp.ne.s32.totalorder %s401, %s403
    %p410 = scmp.eq.s32.totalorder %s78, 1
    %p411 = por %p409, %p410
    %p412 = scmp.ne.s32.totalorder %s403, %s404
    %p413 = scmp.eq.s32.totalorder %s78, 0
    %p414 = por %p412, %p413
    %p415 = scmp.ne.s32.totalorder %s403, %s404
    %p416 = scmp.eq.s32.totalorder %s79, 1
    %p417 = por %p415, %p416
    %p419 = scmp.ne.s32.totalorder %s404, %s418
    %p420 = scmp.eq.s32.totalorder %s79, 0
    %p421 = por %p419, %p420
    %s423 = sadd.s32 %s422, 1
    %p426 = scmp.eq.s32.totalorder %s73, 1
    %p427 = scmp.ne.s32.totalorder %s422, %s424
    %p428 = scmp.eq.s32.totalorder %s73, 0
    %p429 = por %p427, %p428
    %p430 = scmp.ne.s32.totalorder %s422, %s424
    %p431 = scmp.eq.s32.totalorder %s78, 1
    %p432 = por %p430, %p431
    %p433 = scmp.ne.s32.totalorder %s424, %s425
    %p434 = scmp.eq.s32.totalorder %s78, 0
    %p435 = por %p433, %p434
    %p436 = scmp.ne.s32.totalorder %s424, %s425
    %p437 = scmp.eq.s32.totalorder %s79, 1
    %p438 = por %p436, %p437
    %p440 = scmp.ne.s32.totalorder %s425, %s439
    %p441 = scmp.eq.s32.totalorder %s79, 0
    %p442 = por %p440, %p441
    %s444 = sadd.s32 %s443, 1
    %p447 = scmp.eq.s32.totalorder %s73, 1
    %p448 = scmp.ne.s32.totalorder %s443, %s445
    %p449 = scmp.eq.s32.totalorder %s73, 0
    %p450 = por %p448, %p449
    %p451 = scmp.ne.s32.totalorder %s443, %s445
    %p452 = scmp.eq.s32.totalorder %s78, 1
    %p453 = por %p451, %p452
    %p454 = scmp.ne.s32.totalorder %s445, %s446
    %p455 = scmp.eq.s32.totalorder %s78, 0
    %p456 = por %p454, %p455
    %p457 = scmp.ne.s32.totalorder %s445, %s446
    %p458 = scmp.eq.s32.totalorder %s79, 1
    %p459 = por %p457, %p458
    %p461 = scmp.ne.s32.totalorder %s446, %s460
    %p462 = scmp.eq.s32.totalorder %s79, 0
    %p463 = por %p461, %p462
    %s465 = sadd.s32 %s464, 1
    %p468 = scmp.eq.s32.totalorder %s73, 1
    %p469 = scmp.ne.s32.totalorder %s464, %s466
    %p470 = scmp.eq.s32.totalorder %s73, 0
    %p471 = por %p469, %p470
    %p472 = scmp.ne.s32.totalorder %s464, %s466
    %p473 = scmp.eq.s32.totalorder %s78, 1
    %p474 = por %p472, %p473
    %p475 = scmp.ne.s32.totalorder %s466, %s467
    %p476 = scmp.eq.s32.totalorder %s78, 0
    %p477 = por %p475, %p476
    %p478 = scmp.ne.s32.totalorder %s466, %s467
    %p479 = scmp.eq.s32.totalorder %s79, 1
    %p480 = por %p478, %p479
    %p482 = scmp.ne.s32.totalorder %s467, %s481
    %p483 = scmp.eq.s32.totalorder %s79, 0
    %p484 = por %p482, %p483
    %s486 = sadd.s32 %s485, 1
    %p489 = scmp.eq.s32.totalorder %s73, 1
    %p490 = scmp.ne.s32.totalorder %s485, %s487
    %p491 = scmp.eq.s32.totalorder %s73, 0
    %p492 = por %p490, %p491
    %p493 = scmp.ne.s32.totalorder %s485, %s487
    %p494 = scmp.eq.s32.totalorder %s78, 1
    %p495 = por %p493, %p494
    %p496 = scmp.ne.s32.totalorder %s487, %s488
    %p497 = scmp.eq.s32.totalorder %s78, 0
    %p498 = por %p496, %p497
    %p499 = scmp.ne.s32.totalorder %s487, %s488
    %p500 = scmp.eq.s32.totalorder %s79, 1
    %p501 = por %p499, %p500
    %p503 = scmp.ne.s32.totalorder %s488, %s502
    %p504 = scmp.eq.s32.totalorder %s79, 0
    %p505 = por %p503, %p504
    %s507 = sadd.s32 %s506, 1
    %p510 = scmp.eq.s32.totalorder %s73, 1
    %p511 = scmp.ne.s32.totalorder %s506, %s508
    %p512 = scmp.eq.s32.totalorder %s73, 0
    %p513 = por %p511, %p512
    %p514 = scmp.ne.s32.totalorder %s506, %s508
    %p515 = scmp.eq.s32.totalorder %s78, 1
    %p516 = por %p514, %p515
    %p517 = scmp.ne.s32.totalorder %s508, %s509
    %p518 = scmp.eq.s32.totalorder %s78, 0
    %p519 = por %p517, %p518
    %p520 = scmp.ne.s32.totalorder %s508, %s509
    %p521 = scmp.eq.s32.totalorder %s79, 1
    %p522 = por %p520, %p521
    %p524 = scmp.ne.s32.totalorder %s509, %s523
    %p525 = scmp.eq.s32.totalorder %s79, 0
    %p526 = por %p524, %p525
    %s528 = sadd.s32 %s527, 1
    %p531 = scmp.eq.s32.totalorder %s73, 1
    %p532 = scmp.ne.s32.totalorder %s527, %s529
    %p533 = scmp.eq.s32.totalorder %s73, 0
    %p534 = por %p532, %p533
    %p535 = scmp.ne.s32.totalorder %s527, %s529
    %p536 = scmp.eq.s32.totalorder %s78, 1
    %p537 = por %p535, %p536
    %p538 = scmp.ne.s32.totalorder %s529, %s530
    %p539 = scmp.eq.s32.totalorder %s78, 0
    %p540 = por %p538, %p539
    %p541 = scmp.ne.s32.totalorder %s529, %s530
    %p542 = scmp.eq.s32.totalorder %s79, 1
    %p543 = por %p541, %p542
    %p545 = scmp.ne.s32.totalorder %s530, %s544
    %p546 = scmp.eq.s32.totalorder %s79, 0
    %p547 = por %p545, %p546
    %s549 = sadd.s32 %s548, 1
    %p552 = scmp.eq.s32.totalorder %s73, 1
    %p553 = scmp.ne.s32.totalorder %s548, %s550
    %p554 = scmp.eq.s32.totalorder %s73, 0
    %p555 = por %p553, %p554
    %p556 = scmp.ne.s32.totalorder %s548, %s550
    %p557 = scmp.eq.s32.totalorder %s78, 1
    %p558 = por %p556, %p557
    %p559 = scmp.ne.s32.totalorder %s550, %s551
    %p560 = scmp.eq.s32.totalorder %s78, 0
    %p561 = por %p559, %p560
    %p562 = scmp.ne.s32.totalorder %s550, %s551
    %p563 = scmp.eq.s32.totalorder %s79, 1
    %p564 = por %p562, %p563
    %p566 = scmp.ne.s32.totalorder %s551, %s565
    %p567 = scmp.eq.s32.totalorder %s79, 0
    %p568 = por %p566, %p567
    %s570 = sadd.s32 %s569, 1
    %p573 = scmp.eq.s32.totalorder %s73, 1
    %p574 = scmp.ne.s32.totalorder %s569, %s571
    %p575 = scmp.eq.s32.totalorder %s73, 0
    %p576 = por %p574, %p575
    %p577 = scmp.ne.s32.totalorder %s569, %s571
    %p578 = scmp.eq.s32.totalorder %s78, 1
    %p579 = por %p577, %p578
    %p580 = scmp.ne.s32.totalorder %s571, %s572
    %p581 = scmp.eq.s32.totalorder %s78, 0
    %p582 = por %p580, %p581
    %p583 = scmp.ne.s32.totalorder %s571, %s572
    %p584 = scmp.eq.s32.totalorder %s79, 1
    %p585 = por %p583, %p584
    %p587 = scmp.ne.s32.totalorder %s572, %s586
    %p588 = scmp.eq.s32.totalorder %s79, 0
    %p589 = por %p587, %p588
    %s591 = sadd.s32 %s590, 1
    %p594 = scmp.eq.s32.totalorder %s73, 1
    %p595 = scmp.ne.s32.totalorder %s590, %s592
    %p596 = scmp.eq.s32.totalorder %s73, 0
    %p597 = por %p595, %p596
    %p598 = scmp.ne.s32.totalorder %s590, %s592
    %p599 = scmp.eq.s32.totalorder %s78, 1
    %p600 = por %p598, %p599
    %p601 = scmp.ne.s32.totalorder %s592, %s593
    %p602 = scmp.eq.s32.totalorder %s78, 0
    %p603 = por %p601, %p602
    %p604 = scmp.ne.s32.totalorder %s592, %s593
    %p605 = scmp.eq.s32.totalorder %s79, 1
    %p606 = por %p604, %p605
    %p608 = scmp.ne.s32.totalorder %s593, %s607
    %p609 = scmp.eq.s32.totalorder %s79, 0
    %p610 = por %p608, %p609
    %s612 = sadd.s32 %s611, 1
    %p615 = scmp.eq.s32.totalorder %s73, 1
    %p616 = scmp.ne.s32.totalorder %s611, %s613
    %p617 = scmp.eq.s32.totalorder %s73, 0
    %p618 = por %p616, %p617
    %p619 = scmp.ne.s32.totalorder %s611, %s613
    %p620 = scmp.eq.s32.totalorder %s78, 1
    %p621 = por %p619, %p620
    %p622 = scmp.ne.s32.totalorder %s613, %s614
    %p623 = scmp.eq.s32.totalorder %s78, 0
    %p624 = por %p622, %p623
    %p625 = scmp.ne.s32.totalorder %s613, %s614
    %p626 = scmp.eq.s32.totalorder %s79, 1
    %p627 = por %p625, %p626
    %p629 = scmp.ne.s32.totalorder %s614, %s628
    %p630 = scmp.eq.s32.totalorder %s79, 0
    %p631 = por %p629, %p630
    %s633 = sadd.s32 %s632, 1
    %p636 = scmp.eq.s32.totalorder %s73, 1
    %p637 = scmp.ne.s32.totalorder %s632, %s634
    %p638 = scmp.eq.s32.totalorder %s73, 0
    %p639 = por %p637, %p638
    %p640 = scmp.ne.s32.totalorder %s632, %s634
    %p641 = scmp.eq.s32.totalorder %s78, 1
    %p642 = por %p640, %p641
    %p643 = scmp.ne.s32.totalorder %s634, %s635
    %p644 = scmp.eq.s32.totalorder %s78, 0
    %p645 = por %p643, %p644
    %p646 = scmp.ne.s32.totalorder %s634, %s635
    %p647 = scmp.eq.s32.totalorder %s79, 1
    %p648 = por %p646, %p647
    %p650 = scmp.ne.s32.totalorder %s635, %s649
    %p651 = scmp.eq.s32.totalorder %s79, 0
    %p652 = por %p650, %p651
    %s654 = sadd.s32 %s653, 1
    %p657 = scmp.eq.s32.totalorder %s73, 1
    %p658 = scmp.ne.s32.totalorder %s653, %s655
    %p659 = scmp.eq.s32.totalorder %s73, 0
    %p660 = por %p658, %p659
    %p661 = scmp.ne.s32.totalorder %s653, %s655
    %p662 = scmp.eq.s32.totalorder %s78, 1
    %p663 = por %p661, %p662
    %p664 = scmp.ne.s32.totalorder %s655, %s656
    %p665 = scmp.eq.s32.totalorder %s78, 0
    %p666 = por %p664, %p665
    %p667 = scmp.ne.s32.totalorder %s655, %s656
    %p668 = scmp.eq.s32.totalorder %s79, 1
    %p669 = por %p667, %p668
    %p671 = scmp.ne.s32.totalorder %s656, %s670
    %p672 = scmp.eq.s32.totalorder %s79, 0
    %p673 = por %p671, %p672
    %s675 = sadd.s32 %s674, 1
    %p678 = scmp.eq.s32.totalorder %s73, 1
    %p679 = scmp.ne.s32.totalorder %s674, %s676
    %p680 = scmp.eq.s32.totalorder %s73, 0
    %p681 = por %p679, %p680
    %p682 = scmp.ne.s32.totalorder %s674, %s676
    %p683 = scmp.eq.s32.totalorder %s78, 1
    %p684 = por %p682, %p683
    %p685 = scmp.ne.s32.totalorder %s676, %s677
    %p686 = scmp.eq.s32.totalorder %s78, 0
    %p687 = por %p685, %p686
    %p688 = scmp.ne.s32.totalorder %s676, %s677
    %p689 = scmp.eq.s32.totalorder %s79, 1
    %p690 = por %p688, %p689
    %p692 = scmp.ne.s32.totalorder %s677, %s691
    %p693 = scmp.eq.s32.totalorder %s79, 0
    %p694 = por %p692, %p693
    %s696 = sadd.s32 %s695, 1
    %p699 = scmp.eq.s32.totalorder %s73, 1
    %p700 = scmp.ne.s32.totalorder %s695, %s697
    %p701 = scmp.eq.s32.totalorder %s73, 0
    %p702 = por %p700, %p701
    %p703 = scmp.ne.s32.totalorder %s695, %s697
    %p704 = scmp.eq.s32.totalorder %s78, 1
    %p705 = por %p703, %p704
    %p706 = scmp.ne.s32.totalorder %s697, %s698
    %p707 = scmp.eq.s32.totalorder %s78, 0
    %p708 = por %p706, %p707
    %p709 = scmp.ne.s32.totalorder %s697, %s698
    %p710 = scmp.eq.s32.totalorder %s79, 1
    %p711 = por %p709, %p710
    %p713 = scmp.ne.s32.totalorder %s698, %s712
    %p714 = scmp.eq.s32.totalorder %s79, 0
    %p715 = por %p713, %p714
    %s717 = sadd.s32 %s716, 1
    %p720 = scmp.eq.s32.totalorder %s73, 1
    %p721 = scmp.ne.s32.totalorder %s716, %s718
    %p722 = scmp.eq.s32.totalorder %s73, 0
    %p723 = por %p721, %p722
    %p724 = scmp.ne.s32.totalorder %s716, %s718
    %p725 = scmp.eq.s32.totalorder %s78, 1
    %p726 = por %p724, %p725
    %p727 = scmp.ne.s32.totalorder %s718, %s719
    %p728 = scmp.eq.s32.totalorder %s78, 0
    %p729 = por %p727, %p728
    %p730 = scmp.ne.s32.totalorder %s718, %s719
    %p731 = scmp.eq.s32.totalorder %s79, 1
    %p732 = por %p730, %p731
    %p734 = scmp.ne.s32.totalorder %s719, %s733
    %p735 = scmp.eq.s32.totalorder %s79, 0
    %p736 = por %p734, %p735
    %s738 = sadd.s32 %s737, 1
    %p741 = scmp.eq.s32.totalorder %s73, 1
    %p742 = scmp.ne.s32.totalorder %s737, %s739
    %p743 = scmp.eq.s32.totalorder %s73, 0
    %p744 = por %p742, %p743
    %p745 = scmp.ne.s32.totalorder %s737, %s739
    %p746 = scmp.eq.s32.totalorder %s78, 1
    %p747 = por %p745, %p746
    %p748 = scmp.ne.s32.totalorder %s739, %s740
    %p749 = scmp.eq.s32.totalorder %s78, 0
    %p750 = por %p748, %p749
    %p751 = scmp.ne.s32.totalorder %s739, %s740
    %p752 = scmp.eq.s32.totalorder %s79, 1
    %p753 = por %p751, %p752
    %p755 = scmp.ne.s32.totalorder %s740, %s754
    %p756 = scmp.eq.s32.totalorder %s79, 0
    %p757 = por %p755, %p756
    %s758 = ssub.s32 %s73, %s80
    %p759 = scmp.eq.s32.totalorder %s758, 0
    %s761 = sadd.s32 %s760, 1
    %s762 = scalar_select %p759, %s760, %s761
    %p765 = pneg %p759
    %p766 = scmp.eq.s32.totalorder %s73, 1
    %p767 = por %p765, %p766
    %p768 = scmp.ne.s32.totalorder %s760, %s763
    %p769 = scmp.eq.s32.totalorder %s73, 0
    %p770 = por %p768, %p769
    %p771 = scmp.ne.s32.totalorder %s760, %s763
    %p772 = scmp.eq.s32.totalorder %s78, 1
    %p773 = por %p771, %p772
    %p774 = scmp.ne.s32.totalorder %s763, %s764
    %p775 = scmp.eq.s32.totalorder %s78, 0
    %p776 = por %p774, %p775
    %p777 = scmp.ne.s32.totalorder %s763, %s764
    %p778 = scmp.eq.s32.totalorder %s79, 1
    %p779 = por %p777, %p778
    %p781 = scmp.ne.s32.totalorder %s764, %s780
    %p782 = scmp.eq.s32.totalorder %s79, 0
    %p783 = por %p781, %p782
    %p784 = scmp.le.s32.totalorder 1, %s73
    %p785 = scmp.lt.s32.totalorder %s73, 3
    %p786 = pnand %p784, %p785
    %p787 = pneg %p786
    // Predicated region
    $region9: #{net4ch_forward.1} parent=5 // pred_check
      _
    $region10: #{net4ch_forward.1} parent=5 // pred_check_branch
      %789 = sbr.rel (%p786) target = $region12
    $region11: #{net4ch_forward.1} parent=5 // pred_region
      %s790 = ssub.s32 %s73, 1
      // Predicated region
      $region13: #{net4ch_forward.1} parent=11 // pred_check
        %p791 = pneg %p120
      $region14: #{net4ch_forward.1} parent=11 // pred_check_branch
        %793 = sbr.rel (%p791) target = $region16
      $region15: #{net4ch_forward.1} parent=11 // pred_region
        _
      $region16: #{net4ch_forward.1} parent=11 // pred_fallthru
        _
      // Predicated region
      $region17: #{net4ch_forward.1} parent=11 // pred_check
        %p794 = pneg %p141
      $region18: #{net4ch_forward.1} parent=11 // pred_check_branch
        %796 = sbr.rel (%p794) target = $region20
      $region19: #{net4ch_forward.1} parent=11 // pred_region
        _
      $region20: #{net4ch_forward.1} parent=11 // pred_fallthru
        _
      // Predicated region
      $region21: #{net4ch_forward.1} parent=11 // pred_check
        %p797 = pneg %p162
      $region22: #{net4ch_forward.1} parent=11 // pred_check_branch
        %799 = sbr.rel (%p797) target = $region24
      $region23: #{net4ch_forward.1} parent=11 // pred_region
        _
      $region24: #{net4ch_forward.1} parent=11 // pred_fallthru
        _
      // Predicated region
      $region25: #{net4ch_forward.1} parent=11 // pred_check
        %p800 = pneg %p183
      $region26: #{net4ch_forward.1} parent=11 // pred_check_branch
        %802 = sbr.rel (%p800) target = $region28
      $region27: #{net4ch_forward.1} parent=11 // pred_region
        _
      $region28: #{net4ch_forward.1} parent=11 // pred_fallthru
        _
      // Predicated region
      $region29: #{net4ch_forward.1} parent=11 // pred_check
        %p803 = pneg %p204
      $region30: #{net4ch_forward.1} parent=11 // pred_check_branch
        %805 = sbr.rel (%p803) target = $region32
      $region31: #{net4ch_forward.1} parent=11 // pred_region
        _
      $region32: #{net4ch_forward.1} parent=11 // pred_fallthru
        _
      // Predicated region
      $region33: #{net4ch_forward.1} parent=11 // pred_check
        %p806 = pneg %p225
      $region34: #{net4ch_forward.1} parent=11 // pred_check_branch
        %808 = sbr.rel (%p806) target = $region36
      $region35: #{net4ch_forward.1} parent=11 // pred_region
        _
      $region36: #{net4ch_forward.1} parent=11 // pred_fallthru
        _
      // Predicated region
      $region37: #{net4ch_forward.1} parent=11 // pred_check
        %p809 = pneg %p246
      $region38: #{net4ch_forward.1} parent=11 // pred_check_branch
        %811 = sbr.rel (%p809) target = $region40
      $region39: #{net4ch_forward.1} parent=11 // pred_region
        _
      $region40: #{net4ch_forward.1} parent=11 // pred_fallthru
        _
      // Predicated region
      $region41: #{net4ch_forward.1} parent=11 // pred_check
        %p812 = pneg %p267
      $region42: #{net4ch_forward.1} parent=11 // pred_check_branch
        %814 = sbr.rel (%p812) target = $region44
      $region43: #{net4ch_forward.1} parent=11 // pred_region
        _
      $region44: #{net4ch_forward.1} parent=11 // pred_fallthru
        _
      // Predicated region
      $region45: #{net4ch_forward.1} parent=11 // pred_check
        %p815 = pneg %p288
      $region46: #{net4ch_forward.1} parent=11 // pred_check_branch
        %817 = sbr.rel (%p815) target = $region48
      $region47: #{net4ch_forward.1} parent=11 // pred_region
        _
      $region48: #{net4ch_forward.1} parent=11 // pred_fallthru
        _
      // Predicated region
      $region49: #{net4ch_forward.1} parent=11 // pred_check
        %p818 = pneg %p309
      $region50: #{net4ch_forward.1} parent=11 // pred_check_branch
        %820 = sbr.rel (%p818) target = $region52
      $region51: #{net4ch_forward.1} parent=11 // pred_region
        _
      $region52: #{net4ch_forward.1} parent=11 // pred_fallthru
        _
      // Predicated region
      $region53: #{net4ch_forward.1} parent=11 // pred_check
        %p821 = pneg %p330
      $region54: #{net4ch_forward.1} parent=11 // pred_check_branch
        %823 = sbr.rel (%p821) target = $region56
      $region55: #{net4ch_forward.1} parent=11 // pred_region
        _
      $region56: #{net4ch_forward.1} parent=11 // pred_fallthru
        _
      // Predicated region
      $region57: #{net4ch_forward.1} parent=11 // pred_check
        %p824 = pneg %p351
      $region58: #{net4ch_forward.1} parent=11 // pred_check_branch
        %826 = sbr.rel (%p824) target = $region60
      $region59: #{net4ch_forward.1} parent=11 // pred_region
        _
      $region60: #{net4ch_forward.1} parent=11 // pred_fallthru
        _
      // Predicated region
      $region61: #{net4ch_forward.1} parent=11 // pred_check
        %p827 = pneg %p372
      $region62: #{net4ch_forward.1} parent=11 // pred_check_branch
        %829 = sbr.rel (%p827) target = $region64
      $region63: #{net4ch_forward.1} parent=11 // pred_region
        _
      $region64: #{net4ch_forward.1} parent=11 // pred_fallthru
        _
      // Predicated region
      $region65: #{net4ch_forward.1} parent=11 // pred_check
        %p830 = pneg %p393
      $region66: #{net4ch_forward.1} parent=11 // pred_check_branch
        %832 = sbr.rel (%p830) target = $region68
      $region67: #{net4ch_forward.1} parent=11 // pred_region
        _
      $region68: #{net4ch_forward.1} parent=11 // pred_fallthru
        _
      // Predicated region
      $region69: #{net4ch_forward.1} parent=11 // pred_check
        %p833 = pneg %p414
      $region70: #{net4ch_forward.1} parent=11 // pred_check_branch
        %835 = sbr.rel (%p833) target = $region72
      $region71: #{net4ch_forward.1} parent=11 // pred_region
        _
      $region72: #{net4ch_forward.1} parent=11 // pred_fallthru
        _
      // Predicated region
      $region73: #{net4ch_forward.1} parent=11 // pred_check
        %p836 = pneg %p435
      $region74: #{net4ch_forward.1} parent=11 // pred_check_branch
        %838 = sbr.rel (%p836) target = $region76
      $region75: #{net4ch_forward.1} parent=11 // pred_region
        _
      $region76: #{net4ch_forward.1} parent=11 // pred_fallthru
        _
      // Predicated region
      $region77: #{net4ch_forward.1} parent=11 // pred_check
        %p839 = pneg %p456
      $region78: #{net4ch_forward.1} parent=11 // pred_check_branch
        %841 = sbr.rel (%p839) target = $region80
      $region79: #{net4ch_forward.1} parent=11 // pred_region
        _
      $region80: #{net4ch_forward.1} parent=11 // pred_fallthru
        _
      // Predicated region
      $region81: #{net4ch_forward.1} parent=11 // pred_check
        %p842 = pneg %p477
      $region82: #{net4ch_forward.1} parent=11 // pred_check_branch
        %844 = sbr.rel (%p842) target = $region84
      $region83: #{net4ch_forward.1} parent=11 // pred_region
        _
      $region84: #{net4ch_forward.1} parent=11 // pred_fallthru
        _
      // Predicated region
      $region85: #{net4ch_forward.1} parent=11 // pred_check
        %p845 = pneg %p498
      $region86: #{net4ch_forward.1} parent=11 // pred_check_branch
        %847 = sbr.rel (%p845) target = $region88
      $region87: #{net4ch_forward.1} parent=11 // pred_region
        _
      $region88: #{net4ch_forward.1} parent=11 // pred_fallthru
        _
      // Predicated region
      $region89: #{net4ch_forward.1} parent=11 // pred_check
        %p848 = pneg %p519
      $region90: #{net4ch_forward.1} parent=11 // pred_check_branch
        %850 = sbr.rel (%p848) target = $region92
      $region91: #{net4ch_forward.1} parent=11 // pred_region
        _
      $region92: #{net4ch_forward.1} parent=11 // pred_fallthru
        _
      // Predicated region
      $region93: #{net4ch_forward.1} parent=11 // pred_check
        %p851 = pneg %p540
      $region94: #{net4ch_forward.1} parent=11 // pred_check_branch
        %853 = sbr.rel (%p851) target = $region96
      $region95: #{net4ch_forward.1} parent=11 // pred_region
        _
      $region96: #{net4ch_forward.1} parent=11 // pred_fallthru
        _
      // Predicated region
      $region97: #{net4ch_forward.1} parent=11 // pred_check
        %p854 = pneg %p561
      $region98: #{net4ch_forward.1} parent=11 // pred_check_branch
        %856 = sbr.rel (%p854) target = $region100
      $region99: #{net4ch_forward.1} parent=11 // pred_region
        _
      $region100: #{net4ch_forward.1} parent=11 // pred_fallthru
        _
      // Predicated region
      $region101: #{net4ch_forward.1} parent=11 // pred_check
        %p857 = pneg %p582
      $region102: #{net4ch_forward.1} parent=11 // pred_check_branch
        %859 = sbr.rel (%p857) target = $region104
      $region103: #{net4ch_forward.1} parent=11 // pred_region
        _
      $region104: #{net4ch_forward.1} parent=11 // pred_fallthru
        _
      // Predicated region
      $region105: #{net4ch_forward.1} parent=11 // pred_check
        %p860 = pneg %p603
      $region106: #{net4ch_forward.1} parent=11 // pred_check_branch
        %862 = sbr.rel (%p860) target = $region108
      $region107: #{net4ch_forward.1} parent=11 // pred_region
        _
      $region108: #{net4ch_forward.1} parent=11 // pred_fallthru
        _
      // Predicated region
      $region109: #{net4ch_forward.1} parent=11 // pred_check
        %p863 = pneg %p624
      $region110: #{net4ch_forward.1} parent=11 // pred_check_branch
        %865 = sbr.rel (%p863) target = $region112
      $region111: #{net4ch_forward.1} parent=11 // pred_region
        _
      $region112: #{net4ch_forward.1} parent=11 // pred_fallthru
        _
      // Predicated region
      $region113: #{net4ch_forward.1} parent=11 // pred_check
        %p866 = pneg %p645
      $region114: #{net4ch_forward.1} parent=11 // pred_check_branch
        %868 = sbr.rel (%p866) target = $region116
      $region115: #{net4ch_forward.1} parent=11 // pred_region
        _
      $region116: #{net4ch_forward.1} parent=11 // pred_fallthru
        _
      // Predicated region
      $region117: #{net4ch_forward.1} parent=11 // pred_check
        %p869 = pneg %p666
      $region118: #{net4ch_forward.1} parent=11 // pred_check_branch
        %871 = sbr.rel (%p869) target = $region120
      $region119: #{net4ch_forward.1} parent=11 // pred_region
        _
      $region120: #{net4ch_forward.1} parent=11 // pred_fallthru
        _
      // Predicated region
      $region121: #{net4ch_forward.1} parent=11 // pred_check
        %p872 = pneg %p687
      $region122: #{net4ch_forward.1} parent=11 // pred_check_branch
        %874 = sbr.rel (%p872) target = $region124
      $region123: #{net4ch_forward.1} parent=11 // pred_region
        _
      $region124: #{net4ch_forward.1} parent=11 // pred_fallthru
        _
      // Predicated region
      $region125: #{net4ch_forward.1} parent=11 // pred_check
        %p875 = pneg %p708
      $region126: #{net4ch_forward.1} parent=11 // pred_check_branch
        %877 = sbr.rel (%p875) target = $region128
      $region127: #{net4ch_forward.1} parent=11 // pred_region
        _
      $region128: #{net4ch_forward.1} parent=11 // pred_fallthru
        _
      // Predicated region
      $region129: #{net4ch_forward.1} parent=11 // pred_check
        %p878 = pneg %p729
      $region130: #{net4ch_forward.1} parent=11 // pred_check_branch
        %880 = sbr.rel (%p878) target = $region132
      $region131: #{net4ch_forward.1} parent=11 // pred_region
        _
      $region132: #{net4ch_forward.1} parent=11 // pred_fallthru
        _
      // Predicated region
      $region133: #{net4ch_forward.1} parent=11 // pred_check
        %p881 = pneg %p750
      $region134: #{net4ch_forward.1} parent=11 // pred_check_branch
        %883 = sbr.rel (%p881) target = $region136
      $region135: #{net4ch_forward.1} parent=11 // pred_region
        _
      $region136: #{net4ch_forward.1} parent=11 // pred_fallthru
        _
    $region12: #{net4ch_forward.1} parent=5 // pred_fallthru
      _
    %p884 = scmp.lt.s32.totalorder %s73, 2
    // Predicated region
    $region137: #{net4ch_forward.1} parent=5 // pred_check
      %p885 = pneg %p884
    $region138: #{net4ch_forward.1} parent=5 // pred_check_branch
      %887 = sbr.rel (%p885) target = $region140
    $region139: #{net4ch_forward.1} parent=5 // pred_region
      // Predicated region
      $region141: #{net4ch_forward.1} parent=139 // pred_check
        %p888 = pneg %p93
      $region142: #{net4ch_forward.1} parent=139 // pred_check_branch
        %890 = sbr.rel (%p888) target = $region144
      $region143: #{net4ch_forward.1} parent=139 // pred_region
        %p891 = scmp.lt.s32.totalorder %s73, 1
        %s892 = scalar_select %p891, %s73, 1
        %s893 = smul.addr %s892, 2
        %s894 = smul.addr %s893, 4
        %s895 = scalar_lea.vmem %s1, %s894
      $region144: #{net4ch_forward.1} parent=139 // pred_fallthru
        _
    $region140: #{net4ch_forward.1} parent=5 // pred_fallthru
      _
    %p896 = scmp.le.s32.totalorder 1, %s73
    %p897 = scmp.lt.s32.totalorder %s73, 3
    %p898 = pnand %p896, %p897
    %p899 = pneg %p898
    // Predicated region
    $region145: #{net4ch_forward.1} parent=5 // pred_check
      _
    $region146: #{net4ch_forward.1} parent=5 // pred_check_branch
      %901 = sbr.rel (%p898) target = $region148
    $region147: #{net4ch_forward.1} parent=5 // pred_region
      %s902 = ssub.s32 %s73, 1
      %p903 = scmp.lt.s32.totalorder %s78, 1
      %s904 = scalar_select %p903, %s78, 1
      %s905 = smul.addr %s904, 2
      %s906 = smul.addr %s905, 4
      %s907 = scalar_lea.vmem %s1, %s906
      %p908 = pneg %p99
      %p909 = pneg %p96
      %p910 = pneg %p120
      %p911 = pneg %p117
      %p912 = pneg %p141
      %p913 = pneg %p138
      %p914 = pneg %p162
      %p915 = pneg %p159
      %p916 = pneg %p183
      %p917 = pneg %p180
      %p918 = pneg %p204
      %p919 = pneg %p201
      %p920 = pneg %p225
      %p921 = pneg %p222
      %p922 = pneg %p246
      %p923 = pneg %p243
      %p924 = pneg %p267
      %p925 = pneg %p264
      %p926 = pneg %p288
      %p927 = pneg %p285
      %p928 = pneg %p309
      %p929 = pneg %p306
      %p930 = pneg %p330
      %p931 = pneg %p327
      %p932 = pneg %p351
      %p933 = pneg %p348
      %p934 = pneg %p372
      %p935 = pneg %p369
      %p936 = pneg %p393
      %p937 = pneg %p390
      %p938 = pneg %p414
      %p939 = pneg %p411
      %p940 = pneg %p435
      %p941 = pneg %p432
      %p942 = pneg %p456
      %p943 = pneg %p453
      %p944 = pneg %p477
      %p945 = pneg %p474
      %p946 = pneg %p498
      %p947 = pneg %p495
      %p948 = pneg %p519
      %p949 = pneg %p516
      %p950 = pneg %p540
      %p951 = pneg %p537
      %p952 = pneg %p561
      %p953 = pneg %p558
      %p954 = pneg %p582
      %p955 = pneg %p579
      %p956 = pneg %p603
      %p957 = pneg %p600
      %p958 = pneg %p624
      %p959 = pneg %p621
      %p960 = pneg %p645
      %p961 = pneg %p642
      %p962 = pneg %p666
      %p963 = pneg %p663
      %p964 = pneg %p687
      %p965 = pneg %p684
      %p966 = pneg %p708
      %p967 = pneg %p705
      %p968 = pneg %p729
      %p969 = pneg %p726
      %p970 = pneg %p750
      %p971 = pneg %p747
      %p972 = pneg %p776
      %p973 = pneg %p773
      %p974 = scmp.lt.s32.totalorder %s78, 1
      %s975 = scalar_select %p974, %s78, 1
      %s976 = smul.addr %s975, 2
      %s977 = scalar_lea.vmem %s65, %s976
      %p978 = scmp.lt.s32.totalorder %s78, 1
      %s979 = scalar_select %p978, %s78, 1
      %s980 = smul.addr %s979, 2
      %s981 = smul.addr %s980, 4
      %s982 = scalar_lea.vmem %s1, %s981
      %p983 = scmp.lt.s32.totalorder %s78, 1
      %s984 = scalar_select %p983, %s78, 1
      %s985 = smul.addr %s984, 2
      %s986 = scalar_lea.vmem %s65, %s985
      %v988 = vld [vmem:[%s51] sm:$0xff]
      %v989 = vld [vmem:[%s51 + $0x8] sm:$0xff]
      %v990 = vld [vmem:[%s51 + $0x10] sm:$0x1]
      %v991 = vld [vmem:[%s51 + $0x18] sm:$0x1]
      %v992 = vld [vmem:[%s53] sm:$0xff]
      %v993 = vld [vmem:[%s53 + $0x8] sm:$0x1]
      %v994 = vld [vmem:[%s55] sm:$0xff]
      %v995 = vld [vmem:[%s55 + $0x8] sm:$0x1]
      %v996 = vld [vmem:[%s982] sm:$0xff]
      %998 = vst [vmem:[#allocation1] ss:$2 sm:$0xff] %v996
      %v999 = vld.sshfl [vmem:[#allocation1] sm:$0xff pattern:$0x75316420]
      %v1000 = vld.sshfl [vmem:[#allocation1 + $0x8] sm:$0xff pattern:$0x75316420]
      %1003 = vrot.lane.b32.xlu0 %v999, 17
      %v1004 = vpop.permute.xlu0 %1003
      %1005 = vrot.lane.b32.xlu0 %v1000, 17
      %v1006 = vpop.permute.xlu0 %1005
      %v1007 = vlaneseq
      %v1008 = vand.u32 %v1007, 127
      %vm1009 = vcmp.lt.s32.totalorder %v1008, 17
      %v1010 = vsel %vm1009, %v1004, %v1006
      %v1011 = vsel %vm1009, %v1006, %v1004
      %v1012 = vperm.slane %v988, 0
      %v1013 = vperm.slane %v989, 0
      %v1014 = vmul.f32 %v1011, %v1012
      %v1015 = vmul.f32 %v1010, %v1013
      %v1016 = vpack.c.bf16 %v1015, %v1014
      %1017 = vst [vmem:[#allocation1] ss:$2 sm:$0xff] %v996
      %v1018 = vld.sshfl [vmem:[#allocation1] sm:$0xff pattern:$0x75316420]
      %v1019 = vld.sshfl [vmem:[#allocation1 + $0x8] sm:$0xff pattern:$0x75316420]
      %1022 = vrot.lane.b32.xlu0 %v1018, 16
      %v1023 = vpop.permute.xlu0 %1022
      %1024 = vrot.lane.b32.xlu0 %v1019, 16
      %v1025 = vpop.permute.xlu0 %1024
      %vm1026 = vcmp.lt.s32.totalorder %v1008, 16
      %v1027 = vsel %vm1026, %v1023, %v1025
      %v1028 = vsel %vm1026, %v1025, %v1023
      %v1029 = vperm.slane %v988, 1
      %v1030 = vperm.slane %v989, 1
      %v1031 = vmul.f32 %v1028, %v1029
      %v1032 = vmul.f32 %v1027, %v1030
      %v1033 = vpack.c.bf16 %v1032, %v1031
      %1034 = vst [vmem:[#allocation1] ss:$2 sm:$0xff] %v996
      %v1035 = vld.sshfl [vmem:[#allocation1] sm:$0xff pattern:$0x75316420]
      %v1036 = vld.sshfl [vmem:[#allocation1 + $0x8] sm:$0xff pattern:$0x75316420]
      %1039 = vrot.lane.b32.xlu0 %v1035, 15
      %v1040 = vpop.permute.xlu0 %1039
      %1041 = vrot.lane.b32.xlu0 %v1036, 15
      %v1042 = vpop.permute.xlu0 %1041
      %vm1043 = vcmp.lt.s32.totalorder %v1008, 15
      %v1044 = vsel %vm1043, %v1040, %v1042
      %v1045 = vsel %vm1043, %v1042, %v1040
      %v1046 = vperm.slane %v988, 2
      %v1047 = vperm.slane %v989, 2
      %v1048 = vmul.f32 %v1045, %v1046
      %v1049 = vmul.f32 %v1044, %v1047
      %v1050 = vpack.c.bf16 %v1049, %v1048
      %1051 = vst [vmem:[#allocation1] ss:$2 sm:$0xff] %v996
      %v1052 = vld.sshfl [vmem:[#allocation1] sm:$0xff pattern:$0x75316420]
      %v1053 = vld.sshfl [vmem:[#allocation1 + $0x8] sm:$0xff pattern:$0x75316420]
      %1056 = vrot.lane.b32.xlu0 %v1052, 1
      %v1057 = vpop.permute.xlu0 %1056
      %1058 = vrot.lane.b32.xlu0 %v1053, 1
      %v1059 = vpop.permute.xlu0 %1058
      %vm1060 = vcmp.lt.s32.totalorder %v1008, 1
      %v1061 = vsel %vm1060, %v1057, %v1059
      %v1062 = vsel %vm1060, %v1059, %v1057
      %v1063 = vperm.slane %v988, 3
      %v1064 = vperm.slane %v989, 3
      %v1065 = vmul.f32 %v1062, %v1063
      %v1066 = vmul.f32 %v1061, %v1064
      %v1067 = vpack.c.bf16 %v1066, %v1065
      %1068 = vst [vmem:[#allocation1] ss:$2 sm:$0xff] %v996
      %v1069 = vld.sshfl [vmem:[#allocation1] sm:$0xff pattern:$0x75316420]
      %v1070 = vld.sshfl [vmem:[#allocation1 + $0x8] sm:$0xff pattern:$0x75316420]
      %v1073 = vpack.c.bf16 %v1070, %v1069
      %1074 = vst [vmem:[#allocation1] ss:$2 sm:$0xff] %v996
      %v1075 = vld.sshfl [vmem:[#allocation1] sm:$0xff pattern:$0x75316420]
      %v1076 = vld.sshfl [vmem:[#allocation1 + $0x8] sm:$0xff pattern:$0x75316420]
      %1079 = vrot.lane.b32.xlu0 %v1075, 127
      %v1080 = vpop.permute.xlu0 %1079
      %1081 = vrot.lane.b32.xlu0 %v1076, 127
      %v1082 = vpop.permute.xlu0 %1081
      %vm1083 = vcmp.lt.s32.totalorder %v1008, 127
      %v1084 = vsel %vm1083, %v1080, %v1082
      %v1085 = vsel %vm1083, %v1082, %v1080
      %v1086 = vperm.slane %v988, 5
      %v1087 = vperm.slane %v989, 5
      %v1088 = vmul.f32 %v1084, %v1086
      %v1089 = vmul.f32 %v1085, %v1087
      %v1090 = vpack.c.bf16 %v1089, %v1088
      %1091 = vst [vmem:[#allocation1] ss:$2 sm:$0xff] %v996
      %v1092 = vld.sshfl [vmem:[#allocation1] sm:$0xff pattern:$0x75316420]
      %v1093 = vld.sshfl [vmem:[#allocation1 + $0x8] sm:$0xff pattern:$0x75316420]
      %1096 = vrot.lane.b32.xlu0 %v1092, 113
      %v1097 = vpop.permute.xlu0 %1096
      %1098 = vrot.lane.b32.xlu0 %v1093, 113
      %v1099 = vpop.permute.xlu0 %1098
      %vm1100 = vcmp.lt.s32.totalorder %v1008, 113
      %v1101 = vsel %vm1100, %v1097, %v1099
      %v1102 = vsel %vm1100, %v1099, %v1097
      %v1103 = vperm.slane %v988, 6
      %v1104 = vperm.slane %v989, 6
      %v1105 = vmul.f32 %v1101, %v1103
      %v1106 = vmul.f32 %v1102, %v1104
      %v1107 = vpack.c.bf16 %v1106, %v1105
      %1108 = vst [vmem:[#allocation1] ss:$2 sm:$0xff] %v996
      %v1109 = vld.sshfl [vmem:[#allocation1] sm:$0xff pattern:$0x75316420]
      %v1110 = vld.sshfl [vmem:[#allocation1 + $0x8] sm:$0xff pattern:$0x75316420]
      %1113 = vrot.lane.b32.xlu0 %v1109, 112
      %v1114 = vpop.permute.xlu0 %1113
      %1115 = vrot.lane.b32.xlu0 %v1110, 112
      %v1116 = vpop.permute.xlu0 %1115
      %vm1117 = vcmp.lt.s32.totalorder %v1008, 112
      %v1118 = vsel %vm1117, %v1114, %v1116
      %v1119 = vsel %vm1117, %v1116, %v1114
      %v1120 = vperm.slane %v988, 7
      %v1121 = vperm.slane %v989, 7
      %v1122 = vmul.f32 %v1118, %v1120
      %v1123 = vmul.f32 %v1119, %v1121
      %v1124 = vpack.c.bf16 %v1123, %v1122
      %1125 = vst [vmem:[#allocation1] ss:$2 sm:$0xff] %v996
      %v1126 = vld.sshfl [vmem:[#allocation1] sm:$0xff pattern:$0x75316420]
      %v1127 = vld.sshfl [vmem:[#allocation1 + $0x8] sm:$0xff pattern:$0x75316420]
      %1130 = vrot.lane.b32.xlu0 %v1126, 111
      %v1131 = vpop.permute.xlu0 %1130
      %1132 = vrot.lane.b32.xlu0 %v1127, 111
      %v1133 = vpop.permute.xlu0 %1132
      %vm1134 = vcmp.lt.s32.totalorder %v1008, 111
      %v1135 = vsel %vm1134, %v1131, %v1133
      %v1136 = vsel %vm1134, %v1133, %v1131
      %v1137 = vperm.slane %v990, 0
      %v1138 = vperm.slane %v991, 0
      %v1139 = vmul.f32 %v1135, %v1137
      %v1140 = vmul.f32 %v1136, %v1138
      %v1141 = vpack.c.bf16 %v1140, %v1139
      %v1143 = vunpack.c.l.b16 %v1016
      %v1144 = vunpack.c.h.b16 %v1016
      %v1145 = vpack.c.b16 %v1143, %v1143
      %v1146 = vpack.c.b16 %v1144, %v1144
      %v1148 = vunpack.c.l.b16 %v1033
      %v1149 = vunpack.c.h.b16 %v1033
      %v1150 = vpack.c.b16 %v1148, %v1148
      %v1151 = vpack.c.b16 %v1149, %v1149
      %v1152 = vrot.slane %v1150, 6
      %v1153 = vrot.slane %v1151, 6
      %v1155 = vunpack.c.l.b16 %v1050
      %v1156 = vunpack.c.h.b16 %v1050
      %v1157 = vpack.c.b16 %v1155, %v1155
      %v1158 = vpack.c.b16 %v1156, %v1156
      %v1160 = vunpack.c.l.b16 %v1067
      %v1161 = vunpack.c.h.b16 %v1067
      %v1162 = vpack.c.b16 %v1160, %v1160
      %v1163 = vpack.c.b16 %v1161, %v1161
      %v1164 = vrot.slane %v1162, 2
      %v1165 = vrot.slane %v1163, 2
      %v1167 = vunpack.c.l.b16 %v1073
      %v1168 = vunpack.c.h.b16 %v1073
      %v1169 = vpack.c.b16 %v1167, %v1167
      %v1170 = vpack.c.b16 %v1168, %v1168
      %v1172 = vunpack.c.l.b16 %v1090
      %v1173 = vunpack.c.h.b16 %v1090
      %v1174 = vpack.c.b16 %v1172, %v1172
      %v1175 = vpack.c.b16 %v1173, %v1173
      %v1176 = vrot.slane %v1174, 6
      %v1177 = vrot.slane %v1175, 6
      %v1179 = vunpack.c.l.b16 %v1107
      %v1180 = vunpack.c.h.b16 %v1107
      %v1181 = vpack.c.b16 %v1179, %v1179
      %v1182 = vpack.c.b16 %v1180, %v1180
      %v1184 = vunpack.c.l.b16 %v1124
      %v1185 = vunpack.c.h.b16 %v1124
      %v1186 = vpack.c.b16 %v1184, %v1184
      %v1187 = vpack.c.b16 %v1185, %v1185
      %v1188 = vrot.slane %v1186, 2
      %v1189 = vrot.slane %v1187, 2
      %v1191 = vunpack.c.l.b16 %v1141
      %v1192 = vunpack.c.h.b16 %v1141
      %v1193 = vpack.c.b16 %v1191, %v1191
      %v1194 = vpack.c.b16 %v1192, %v1192
      %vm1195 = vcmask 1041408
      %v1198 = vsel %vm1195, %v1145, %v1152
      %v1201 = vsel %vm1195, %v1146, %v1153
      %vm1202 = vcmask 1043456
      %v1204 = vsel %vm1202, %v1198, %v1157
      %v1206 = vsel %vm1202, %v1201, %v1158
      %vm1207 = vcmask 1045504
      %v1209 = vsel %vm1207, %v1204, %v1164
      %v1212 = vsel %vm1207, %v1206, %v1165
      %v1216 = vsel %vm1195, %v1169, %v1176
      %v1219 = vsel %vm1195, %v1170, %v1177
      %v1221 = vsel %vm1202, %v1216, %v1181
      %v1223 = vsel %vm1202, %v1219, %v1182
      %v1225 = vsel %vm1207, %v1221, %v1188
      %v1228 = vsel %vm1207, %v1223, %v1189
      %v1230 = vld [vmem:[%s3] sm:$0xf]
      %v1231 = vld [vmem:[%s5] sm:$0xff]
      %1233 = vset.pattern.permute.xlu0 0
      %1234 = vperm.xlu0 %1233, %v1231
      %v1235 = vpop.permute.xlu0 %1234
      %vm1237 = vcmask 293888
      %v1239 = vsel %vm1237, %v1230, 0
      %v1242 = vsel %vm1195, %v1193, 0
      %v1245 = vsel %vm1195, %v1194, 0
      %1247 = vmatpush.bf16.msra.mxu0 0
      %1248 = vmatpush.bf16.msra.mxu0 0
      %1249 = vmatpush.bf16.msra.mxu0 0
      %1250 = vmatpush.bf16.msra.mxu0 0
      %1251 = vmatpush.bf16.msra.mxu0 0
      %1252 = vmatpush.bf16.msra.mxu0 %v1242
      %1253 = vmatpush.bf16.msra.mxu0 %v1225
      %1254 = vmatpush.bf16.msra.mxu0 %v1209
      %1255 = vmatmul.bf16.gmra.mxu0 %v1239
      %v1256 = vpop.f32.mrf.mxu0
      %v1257 = vadd.f32 %v1235, %v1256
      %v1258 = vpop.f32.mrf.mxu0
      %1259 = vdwg.mxu0
      %1260 = vmatpush.bf16.msra.mxu0 0
      %1261 = vmatpush.bf16.msra.mxu0 0
      %1262 = vmatpush.bf16.msra.mxu0 0
      %1263 = vmatpush.bf16.msra.mxu0 0
      %1264 = vmatpush.bf16.msra.mxu0 0
      %1265 = vmatpush.bf16.msra.mxu0 %v1245
      %1266 = vmatpush.bf16.msra.mxu0 %v1228
      %1267 = vmatpush.bf16.msra.mxu0 %v1212
      %1268 = vmatmul.bf16.gmra.mxu0 %v1239
      %v1269 = vpop.f32.mrf.mxu0
      %v1270 = vadd.f32 %v1235, %v1269
      %v1271 = vpop.f32.mrf.mxu0
      %1272 = vdwg.mxu0
      %v1273 = vmax.f32 %v1257, 0.0
      %v1274 = vmax.f32 %v1270, 0.0
      %1275 = vrot.lane.b32.xlu0 %v1273, 17
      %v1276 = vpop.permute.xlu0 %1275
      %1277 = vrot.lane.b32.xlu0 %v1274, 17
      %v1278 = vpop.permute.xlu0 %1277
      %v1279 = vsel %vm1009, %v1276, %v1278
      %v1280 = vsel %vm1009, %v1278, %v1276
      %v1281 = vmul.f32 %v1280, %v1012
      %v1282 = vmul.f32 %v1279, %v1013
      %v1283 = vpack.c.bf16 %v1282, %v1281
      %1284 = vrot.lane.b32.xlu0 %v1273, 16
      %v1285 = vpop.permute.xlu0 %1284
      %1286 = vrot.lane.b32.xlu0 %v1274, 16
      %v1287 = vpop.permute.xlu0 %1286
      %v1288 = vsel %vm1026, %v1285, %v1287
      %v1289 = vsel %vm1026, %v1287, %v1285
      %v1290 = vmul.f32 %v1289, %v1029
      %v1291 = vmul.f32 %v1288, %v1030
      %v1292 = vpack.c.bf16 %v1291, %v1290
      %1293 = vrot.lane.b32.xlu0 %v1273, 15
      %v1294 = vpop.permute.xlu0 %1293
      %1295 = vrot.lane.b32.xlu0 %v1274, 15
      %v1296 = vpop.permute.xlu0 %1295
      %v1297 = vsel %vm1043, %v1294, %v1296
      %v1298 = vsel %vm1043, %v1296, %v1294
      %v1299 = vmul.f32 %v1298, %v1046
      %v1300 = vmul.f32 %v1297, %v1047
      %v1301 = vpack.c.bf16 %v1300, %v1299
      %1302 = vrot.lane.b32.xlu0 %v1273, 1
      %v1303 = vpop.permute.xlu0 %1302
      %1304 = vrot.lane.b32.xlu0 %v1274, 1
      %v1305 = vpop.permute.xlu0 %1304
      %v1306 = vsel %vm1060, %v1303, %v1305
      %v1307 = vsel %vm1060, %v1305, %v1303
      %v1308 = vmul.f32 %v1307, %v1063
      %v1309 = vmul.f32 %v1306, %v1064
      %v1310 = vpack.c.bf16 %v1309, %v1308
      %v1311 = vpack.c.bf16 %v1274, %v1273
      %1312 = vrot.lane.b32.xlu0 %v1273, 127
      %v1313 = vpop.permute.xlu0 %1312
      %1314 = vrot.lane.b32.xlu0 %v1274, 127
      %v1315 = vpop.permute.xlu0 %1314
      %v1316 = vsel %vm1083, %v1313, %v1315
      %v1317 = vsel %vm1083, %v1315, %v1313
      %v1318 = vmul.f32 %v1316, %v1086
      %v1319 = vmul.f32 %v1317, %v1087
      %v1320 = vpack.c.bf16 %v1319, %v1318
      %1321 = vrot.lane.b32.xlu0 %v1273, 113
      %v1322 = vpop.permute.xlu0 %1321
      %1323 = vrot.lane.b32.xlu0 %v1274, 113
      %v1324 = vpop.permute.xlu0 %1323
      %v1325 = vsel %vm1100, %v1322, %v1324
      %v1326 = vsel %vm1100, %v1324, %v1322
      %v1327 = vmul.f32 %v1325, %v1103
      %v1328 = vmul.f32 %v1326, %v1104
      %v1329 = vpack.c.bf16 %v1328, %v1327
      %1330 = vrot.lane.b32.xlu0 %v1273, 112
      %v1331 = vpop.permute.xlu0 %1330
      %1332 = vrot.lane.b32.xlu0 %v1274, 112
      %v1333 = vpop.permute.xlu0 %1332
      %v1334 = vsel %vm1117, %v1331, %v1333
      %v1335 = vsel %vm1117, %v1333, %v1331
      %v1336 = vmul.f32 %v1334, %v1120
      %v1337 = vmul.f32 %v1335, %v1121
      %v1338 = vpack.c.bf16 %v1337, %v1336
      %1339 = vrot.lane.b32.xlu0 %v1273, 111
      %v1340 = vpop.permute.xlu0 %1339
      %1341 = vrot.lane.b32.xlu0 %v1274, 111
      %v1342 = vpop.permute.xlu0 %1341
      %v1343 = vsel %vm1134, %v1340, %v1342
      %v1344 = vsel %vm1134, %v1342, %v1340
      %v1345 = vmul.f32 %v1343, %v1137
      %v1346 = vmul.f32 %v1344, %v1138
      %v1347 = vpack.c.bf16 %v1346, %v1345
      %v1349 = vunpack.c.l.b16 %v1283
      %v1350 = vunpack.c.h.b16 %v1283
      %v1351 = vpack.c.b16 %v1349, %v1349
      %v1352 = vpack.c.b16 %v1350, %v1350
      %v1354 = vunpack.c.l.b16 %v1292
      %v1355 = vunpack.c.h.b16 %v1292
      %v1356 = vpack.c.b16 %v1354, %v1354
      %v1357 = vpack.c.b16 %v1355, %v1355
      %v1359 = vunpack.c.l.b16 %v1301
      %v1360 = vunpack.c.h.b16 %v1301
      %v1361 = vpack.c.b16 %v1359, %v1359
      %v1362 = vpack.c.b16 %v1360, %v1360
      %v1364 = vunpack.c.l.b16 %v1310
      %v1365 = vunpack.c.h.b16 %v1310
      %v1366 = vpack.c.b16 %v1364, %v1364
      %v1367 = vpack.c.b16 %v1365, %v1365
      %v1369 = vunpack.c.l.b16 %v1311
      %v1370 = vunpack.c.h.b16 %v1311
      %v1371 = vpack.c.b16 %v1369, %v1369
      %v1372 = vpack.c.b16 %v1370, %v1370
      %v1374 = vunpack.c.l.b16 %v1320
      %v1375 = vunpack.c.h.b16 %v1320
      %v1376 = vpack.c.b16 %v1374, %v1374
      %v1377 = vpack.c.b16 %v1375, %v1375
      %v1379 = vunpack.c.l.b16 %v1329
      %v1380 = vunpack.c.h.b16 %v1329
      %v1381 = vpack.c.b16 %v1379, %v1379
      %v1382 = vpack.c.b16 %v1380, %v1380
      %v1384 = vunpack.c.l.b16 %v1338
      %v1385 = vunpack.c.h.b16 %v1338
      %v1386 = vpack.c.b16 %v1384, %v1384
      %v1387 = vpack.c.b16 %v1385, %v1385
      %v1389 = vunpack.c.l.b16 %v1347
      %v1390 = vunpack.c.h.b16 %v1347
      %v1391 = vpack.c.b16 %v1389, %v1389
      %v1392 = vpack.c.b16 %v1390, %v1390
      %v1395 = vsel %vm1202, %v1351, %v1356
      %v1399 = vsel %vm1202, %v1352, %v1357
      %v1403 = vsel %vm1202, %v1361, %v1366
      %v1407 = vsel %vm1202, %v1362, %v1367
      %v1411 = vsel %vm1202, %v1371, %v1376
      %v1415 = vsel %vm1202, %v1372, %v1377
      %v1419 = vsel %vm1202, %v1381, %v1386
      %v1423 = vsel %vm1202, %v1382, %v1387
      %v1425 = vld [vmem:[%s7] sm:$0xf]
      %v1426 = vld [vmem:[%s9] sm:$0xff]
      %1428 = vset.pattern.permute.xlu0 0
      %1429 = vperm.xlu0 %1428, %v1426
      %v1430 = vpop.permute.xlu0 %1429
      %vm1432 = vcmask 588800
      %v1434 = vsel %vm1432, %v1425, 0
      %v1437 = vsel %vm1202, %v1391, 0
      %v1440 = vsel %vm1202, %v1392, 0
      %1442 = vmatpush.bf16.msra.mxu0 0
      %1443 = vmatpush.bf16.msra.mxu0 0
      %1444 = vmatpush.bf16.msra.mxu0 0
      %1445 = vmatpush.bf16.msra.mxu0 %v1437
      %1446 = vmatpush.bf16.msra.mxu0 %v1419
      %1447 = vmatpush.bf16.msra.mxu0 %v1411
      %1448 = vmatpush.bf16.msra.mxu0 %v1403
      %1449 = vmatpush.bf16.msra.mxu0 %v1395
      %1450 = vmatmul.bf16.gmra.mxu0 %v1434
      %v1451 = vpop.f32.mrf.mxu0
      %v1452 = vadd.f32 %v1430, %v1451
      %v1453 = vpop.f32.mrf.mxu0
      %1454 = vdwg.mxu0
      %1455 = vmatpush.bf16.msra.mxu0 0
      %1456 = vmatpush.bf16.msra.mxu0 0
      %1457 = vmatpush.bf16.msra.mxu0 0
      %1458 = vmatpush.bf16.msra.mxu0 %v1440
      %1459 = vmatpush.bf16.msra.mxu0 %v1423
      %1460 = vmatpush.bf16.msra.mxu0 %v1415
      %1461 = vmatpush.bf16.msra.mxu0 %v1407
      %1462 = vmatpush.bf16.msra.mxu0 %v1399
      %1463 = vmatmul.bf16.gmra.mxu0 %v1434
      %v1464 = vpop.f32.mrf.mxu0
      %v1465 = vadd.f32 %v1430, %v1464
      %v1466 = vpop.f32.mrf.mxu0
      %1467 = vdwg.mxu0
      %v1468 = vmax.f32 %v1452, 0.0
      %v1469 = vmax.f32 %v1465, 0.0
      %1470 = vrot.lane.b32.xlu0 %v1468, 127
      %v1471 = vpop.permute.xlu0 %1470
      %1472 = vrot.lane.b32.xlu0 %v1469, 127
      %v1473 = vpop.permute.xlu0 %1472
      %v1474 = vsel %vm1083, %v1471, %v1473
      %v1475 = vsel %vm1083, %v1473, %v1471
      %v1476 = vmax.f32 %v1468, %v1474
      %v1477 = vmax.f32 %v1469, %v1475
      %1478 = vrot.lane.b32.xlu0 %v1476, 112
      %v1479 = vpop.permute.xlu0 %1478
      %1480 = vrot.lane.b32.xlu0 %v1477, 112
      %v1481 = vpop.permute.xlu0 %1480
      %v1482 = vsel %vm1117, %v1479, %v1481
      %v1483 = vsel %vm1117, %v1481, %v1479
      %v1484 = vmax.f32 %v1476, %v1482
      %v1485 = vmax.f32 %v1477, %v1483
      %v1486 = vpack.c.bf16 %v1484, %v1484
      %v1487 = vpack.c.bf16 %v1485, %v1485
      %v1488 = vld [vmem:[%s57] sm:$0xf]
      %v1489 = vld [vmem:[%s57 + $0x4] sm:$0xf]
      %v1490 = vld [vmem:[%s57 + $0x8] sm:$0xf]
      %v1491 = vld [vmem:[%s57 + $0xc] sm:$0xf]
      %v1492 = vld [vmem:[%s57 + $0x10] sm:$0xf]
      %v1493 = vld [vmem:[%s57 + $0x14] sm:$0xf]
      %v1494 = vld [vmem:[%s57 + $0x18] sm:$0xf]
      %v1495 = vld [vmem:[%s57 + $0x1c] sm:$0xf]
      %v1496 = vld [vmem:[%s57 + $0x20] sm:$0xf]
      %v1497 = vld [vmem:[%s57 + $0x24] sm:$0xf]
      %v1498 = vld [vmem:[%s57 + $0x28] sm:$0xf]
      %v1499 = vld [vmem:[%s57 + $0x2c] sm:$0xf]
      %v1500 = vld [vmem:[%s57 + $0x30] sm:$0xf]
      %v1501 = vld [vmem:[%s57 + $0x34] sm:$0xf]
      %v1502 = vld [vmem:[%s57 + $0x38] sm:$0xf]
      %v1503 = vld [vmem:[%s57 + $0x3c] sm:$0xf]
      %v1504 = vld [vmem:[%s57 + $0x40] sm:$0xf]
      %v1505 = vld [vmem:[%s57 + $0x44] sm:$0xf]
      %v1506 = vld [vmem:[%s57 + $0x48] sm:$0xf]
      %v1507 = vld [vmem:[%s57 + $0x4c] sm:$0xf]
      %v1508 = vld [vmem:[%s57 + $0x50] sm:$0xf]
      %v1509 = vld [vmem:[%s57 + $0x54] sm:$0xf]
      %v1510 = vld [vmem:[%s57 + $0x58] sm:$0xf]
      %v1511 = vld [vmem:[%s57 + $0x5c] sm:$0xf]
      %v1512 = vld [vmem:[%s57 + $0x60] sm:$0xf]
      %v1513 = vld [vmem:[%s57 + $0x64] sm:$0xf]
      %v1514 = vld [vmem:[%s57 + $0x68] sm:$0xf]
      %v1515 = vld [vmem:[%s57 + $0x6c] sm:$0xf]
      %v1516 = vld [vmem:[%s57 + $0x70] sm:$0xf]
      %v1517 = vld [vmem:[%s57 + $0x74] sm:$0xf]
      %v1518 = vld [vmem:[%s57 + $0x78] sm:$0xf]
      %v1519 = vld [vmem:[%s57 + $0x7c] sm:$0xf]
      %v1552 = vunpack.c.l.b16 %v1488
      %v1553 = vunpack.c.l.b16 %v1489
      %v1554 = vunpack.c.l.b16 %v1490
      %v1555 = vunpack.c.l.b16 %v1491
      %v1556 = vunpack.c.l.b16 %v1492
      %v1557 = vunpack.c.l.b16 %v1493
      %v1558 = vunpack.c.l.b16 %v1494
      %v1559 = vunpack.c.l.b16 %v1495
      %v1560 = vunpack.c.l.b16 %v1496
      %v1561 = vunpack.c.l.b16 %v1497
      %v1562 = vunpack.c.l.b16 %v1498
      %v1563 = vunpack.c.l.b16 %v1499
      %v1564 = vunpack.c.l.b16 %v1500
      %v1565 = vunpack.c.l.b16 %v1501
      %v1566 = vunpack.c.l.b16 %v1502
      %v1567 = vunpack.c.l.b16 %v1503
      %v1568 = vunpack.c.l.b16 %v1504
      %v1569 = vunpack.c.l.b16 %v1505
      %v1570 = vunpack.c.l.b16 %v1506
      %v1571 = vunpack.c.l.b16 %v1507
      %v1572 = vunpack.c.l.b16 %v1508
      %v1573 = vunpack.c.l.b16 %v1509
      %v1574 = vunpack.c.l.b16 %v1510
      %v1575 = vunpack.c.l.b16 %v1511
      %v1576 = vunpack.c.l.b16 %v1512
      %v1577 = vunpack.c.l.b16 %v1513
      %v1578 = vunpack.c.l.b16 %v1514
      %v1579 = vunpack.c.l.b16 %v1515
      %v1580 = vunpack.c.l.b16 %v1516
      %v1581 = vunpack.c.l.b16 %v1517
      %v1582 = vunpack.c.l.b16 %v1518
      %v1583 = vunpack.c.l.b16 %v1519
      %v1584 = vpack.c.b16 %v1553, %v1552
      %v1585 = vpack.c.b16 %v1555, %v1554
      %v1586 = vpack.c.b16 %v1557, %v1556
      %v1587 = vpack.c.b16 %v1559, %v1558
      %v1588 = vpack.c.b16 %v1561, %v1560
      %v1589 = vpack.c.b16 %v1563, %v1562
      %v1590 = vpack.c.b16 %v1565, %v1564
      %v1591 = vpack.c.b16 %v1567, %v1566
      %v1592 = vpack.c.b16 %v1569, %v1568
      %v1593 = vpack.c.b16 %v1571, %v1570
      %v1594 = vpack.c.b16 %v1573, %v1572
      %v1595 = vpack.c.b16 %v1575, %v1574
      %v1596 = vpack.c.b16 %v1577, %v1576
      %v1597 = vpack.c.b16 %v1579, %v1578
      %v1598 = vpack.c.b16 %v1581, %v1580
      %v1599 = vpack.c.b16 %v1583, %v1582
      %1616 = vmatpush.bf16.msra.mxu0 %v1591
      %1617 = vmatpush.bf16.msra.mxu0 %v1590
      %1618 = vmatpush.bf16.msra.mxu0 %v1589
      %1619 = vmatpush.bf16.msra.mxu0 %v1588
      %1620 = vmatpush.bf16.msra.mxu0 %v1587
      %1621 = vmatpush.bf16.msra.mxu0 %v1586
      %1622 = vmatpush.bf16.msra.mxu0 %v1585
      %1623 = vmatpush.bf16.msra.mxu0 %v1584
      %1624 = vmatmul.bf16.gmra.mxu0 %v1486
      %v1625 = vpop.f32.mrf.mxu0
      %v1626 = vadd.f32 0.0, %v1625
      %v1627 = vpop.f32.mrf.mxu0
      %1628 = vdwg.mxu0
      %1629 = vmatpush.bf16.msra.mxu0 %v1599
      %1630 = vmatpush.bf16.msra.mxu0 %v1598
      %1631 = vmatpush.bf16.msra.mxu0 %v1597
      %1632 = vmatpush.bf16.msra.mxu0 %v1596
      %1633 = vmatpush.bf16.msra.mxu0 %v1595
      %1634 = vmatpush.bf16.msra.mxu0 %v1594
      %1635 = vmatpush.bf16.msra.mxu0 %v1593
      %1636 = vmatpush.bf16.msra.mxu0 %v1592
      %1637 = vmatmul.bf16.gmra.mxu0 %v1487
      %v1638 = vpop.f32.mrf.mxu0
      %v1639 = vadd.f32 %v1626, %v1638
      %v1640 = vpop.f32.mrf.mxu0
      %1641 = vdwg.mxu0
      %1643 = vrot.lane.b32.xlu0 %v1639, 73
      %v1644 = vpop.permute.xlu0 %1643
      %1646 = vrot.lane.b32.xlu0 %v1639, 9
      %v1647 = vpop.permute.xlu0 %1646
      %vm1649 = vcmask 72704
      %v1650 = vsel %vm1649, %v1644, %v1647
      %v1651 = vperm.slane %v992, 0
      %v1652 = vmul.f32 %v1650, %v1651
      %v1653 = vpack.c.bf16 %v1652, %v1652
      %1654 = vrot.lane.b32.xlu0 %v1639, 72
      %v1655 = vpop.permute.xlu0 %1654
      %1657 = vrot.lane.b32.xlu0 %v1639, 8
      %v1658 = vpop.permute.xlu0 %1657
      %vm1660 = vcmask 64512
      %v1661 = vsel %vm1660, %v1655, %v1658
      %v1662 = vperm.slane %v992, 1
      %v1663 = vmul.f32 %v1661, %v1662
      %v1664 = vpack.c.bf16 %v1663, %v1663
      %1665 = vrot.lane.b32.xlu0 %v1639, 71
      %v1666 = vpop.permute.xlu0 %1665
      %1668 = vrot.lane.b32.xlu0 %v1639, 7
      %v1669 = vpop.permute.xlu0 %1668
      %vm1671 = vcmask 56320
      %v1672 = vsel %vm1671, %v1666, %v1669
      %v1673 = vperm.slane %v992, 2
      %v1674 = vmul.f32 %v1672, %v1673
      %v1675 = vpack.c.bf16 %v1674, %v1674
      %1676 = vrot.lane.b32.xlu0 %v1639, 65
      %v1677 = vpop.permute.xlu0 %1676
      %1679 = vrot.lane.b32.xlu0 %v1639, 1
      %v1680 = vpop.permute.xlu0 %1679
      %vm1682 = vcmask 7168
      %v1683 = vsel %vm1682, %v1677, %v1680
      %v1684 = vperm.slane %v992, 3
      %v1685 = vmul.f32 %v1683, %v1684
      %v1686 = vpack.c.bf16 %v1685, %v1685
      %v1687 = vpack.c.bf16 %v1639, %v1639
      %1688 = vrot.lane.b32.xlu0 %v1639, 127
      %v1689 = vpop.permute.xlu0 %1688
      %1691 = vrot.lane.b32.xlu0 %v1639, 63
      %v1692 = vpop.permute.xlu0 %1691
      %vm1694 = vcmask 515072
      %v1695 = vsel %vm1694, %v1689, %v1692
      %v1696 = vperm.slane %v992, 5
      %v1697 = vmul.f32 %v1695, %v1696
      %v1698 = vpack.c.bf16 %v1697, %v1697
      %1699 = vrot.lane.b32.xlu0 %v1639, 121
      %v1700 = vpop.permute.xlu0 %1699
      %1702 = vrot.lane.b32.xlu0 %v1639, 57
      %v1703 = vpop.permute.xlu0 %1702
      %vm1705 = vcmask 465920
      %v1706 = vsel %vm1705, %v1700, %v1703
      %v1707 = vperm.slane %v992, 6
      %v1708 = vmul.f32 %v1706, %v1707
      %v1709 = vpack.c.bf16 %v1708, %v1708
      %1710 = vrot.lane.b32.xlu0 %v1639, 120
      %v1711 = vpop.permute.xlu0 %1710
      %1713 = vrot.lane.b32.xlu0 %v1639, 56
      %v1714 = vpop.permute.xlu0 %1713
      %vm1716 = vcmask 457728
      %v1717 = vsel %vm1716, %v1711, %v1714
      %v1718 = vperm.slane %v992, 7
      %v1719 = vmul.f32 %v1717, %v1718
      %v1720 = vpack.c.bf16 %v1719, %v1719
      %1721 = vrot.lane.b32.xlu0 %v1639, 119
      %v1722 = vpop.permute.xlu0 %1721
      %1724 = vrot.lane.b32.xlu0 %v1639, 55
      %v1725 = vpop.permute.xlu0 %1724
      %vm1727 = vcmask 449536
      %v1728 = vsel %vm1727, %v1722, %v1725
      %v1729 = vperm.slane %v993, 0
      %v1730 = vmul.f32 %v1728, %v1729
      %v1731 = vpack.c.bf16 %v1730, %v1730
      %v1733 = vunpack.c.l.b16 %v1664
      %v1734 = vpack.c.b16 %v1733, %v1733
      %v1736 = vunpack.c.l.b16 %v1686
      %v1737 = vpack.c.b16 %v1736, %v1736
      %v1739 = vunpack.c.l.b16 %v1698
      %v1740 = vpack.c.b16 %v1739, %v1739
      %v1742 = vunpack.c.l.b16 %v1720
      %v1743 = vpack.c.b16 %v1742, %v1742
      %v1746 = vsel %vm1202, %v1653, %v1734
      %v1750 = vsel %vm1202, %v1675, %v1737
      %v1754 = vsel %vm1202, %v1687, %v1740
      %v1758 = vsel %vm1202, %v1709, %v1743
      %v1760 = vld [vmem:[%s11] sm:$0xf]
      %v1761 = vld [vmem:[%s11 + $0x4] sm:$0xf]
      %v1762 = vld [vmem:[%s13] sm:$0xff]
      %v1763 = vld [vmem:[%s13 + $0x8] sm:$0xff]
      %1765 = vset.pattern.permute.xlu0 0
      %1766 = vperm.xlu0 %1765, %v1762
      %v1767 = vpop.permute.xlu0 %1766
      %1770 = vset.pattern.permute.xlu0 0
      %1771 = vperm.xlu0 %1770, %v1763
      %v1772 = vpop.permute.xlu0 %1771
      %v1776 = vunpack.c.l.b16 %v1760
      %v1777 = vunpack.c.l.b16 %v1761
      %v1778 = vpack.c.b16 %v1777, %v1776
      %v1780 = vsel %vm1432, %v1778, 0
      %v1783 = vsel %vm1202, %v1731, 0
      %1785 = vmatpush.bf16.msra.mxu0 0
      %1786 = vmatpush.bf16.msra.mxu0 0
      %1787 = vmatpush.bf16.msra.mxu0 0
      %1788 = vmatpush.bf16.msra.mxu0 %v1783
      %1789 = vmatpush.bf16.msra.mxu0 %v1758
      %1790 = vmatpush.bf16.msra.mxu0 %v1754
      %1791 = vmatpush.bf16.msra.mxu0 %v1750
      %1792 = vmatpush.bf16.msra.mxu0 %v1746
      %1793 = vmatmul.bf16.gmra.mxu0 %v1780
      %v1794 = vpop.f32.mrf.mxu0
      %v1795 = vadd.f32 %v1767, %v1794
      %v1796 = vpop.f32.mrf.mxu0
      %v1797 = vadd.f32 %v1772, %v1796
      %1798 = vdwg.mxu0
      %v1799 = vmax.f32 %v1795, 0.0
      %v1800 = vmax.f32 %v1797, 0.0
      %1803 = vrot.lane.b32.xlu0 %v1799, 73
      %v1804 = vpop.permute.xlu0 %1803
      %1805 = vrot.lane.b32.xlu0 %v1800, 73
      %v1806 = vpop.permute.xlu0 %1805
      %1809 = vrot.lane.b32.xlu0 %v1799, 9
      %v1810 = vpop.permute.xlu0 %1809
      %1811 = vrot.lane.b32.xlu0 %v1800, 9
      %v1812 = vpop.permute.xlu0 %1811
      %v1815 = vsel %vm1649, %v1804, %v1810
      %v1816 = vsel %vm1649, %v1806, %v1812
      %v1817 = vmul.f32 %v1815, %v1651
      %v1818 = vmul.f32 %v1816, %v1651
      %v1819 = vpack.c.bf16 %v1817, %v1817
      %v1820 = vpack.c.bf16 %v1818, %v1818
      %1821 = vrot.lane.b32.xlu0 %v1799, 72
      %v1822 = vpop.permute.xlu0 %1821
      %1823 = vrot.lane.b32.xlu0 %v1800, 72
      %v1824 = vpop.permute.xlu0 %1823
      %1827 = vrot.lane.b32.xlu0 %v1799, 8
      %v1828 = vpop.permute.xlu0 %1827
      %1829 = vrot.lane.b32.xlu0 %v1800, 8
      %v1830 = vpop.permute.xlu0 %1829
      %v1833 = vsel %vm1660, %v1822, %v1828
      %v1834 = vsel %vm1660, %v1824, %v1830
      %v1835 = vmul.f32 %v1833, %v1662
      %v1836 = vmul.f32 %v1834, %v1662
      %v1837 = vpack.c.bf16 %v1835, %v1835
      %v1838 = vpack.c.bf16 %v1836, %v1836
      %1839 = vrot.lane.b32.xlu0 %v1799, 71
      %v1840 = vpop.permute.xlu0 %1839
      %1841 = vrot.lane.b32.xlu0 %v1800, 71
      %v1842 = vpop.permute.xlu0 %1841
      %1845 = vrot.lane.b32.xlu0 %v1799, 7
      %v1846 = vpop.permute.xlu0 %1845
      %1847 = vrot.lane.b32.xlu0 %v1800, 7
      %v1848 = vpop.permute.xlu0 %1847
      %v1851 = vsel %vm1671, %v1840, %v1846
      %v1852 = vsel %vm1671, %v1842, %v1848
      %v1853 = vmul.f32 %v1851, %v1673
      %v1854 = vmul.f32 %v1852, %v1673
      %v1855 = vpack.c.bf16 %v1853, %v1853
      %v1856 = vpack.c.bf16 %v1854, %v1854
      %1857 = vrot.lane.b32.xlu0 %v1799, 65
      %v1858 = vpop.permute.xlu0 %1857
      %1859 = vrot.lane.b32.xlu0 %v1800, 65
      %v1860 = vpop.permute.xlu0 %1859
      %1863 = vrot.lane.b32.xlu0 %v1799, 1
      %v1864 = vpop.permute.xlu0 %1863
      %1865 = vrot.lane.b32.xlu0 %v1800, 1
      %v1866 = vpop.permute.xlu0 %1865
      %v1869 = vsel %vm1682, %v1858, %v1864
      %v1870 = vsel %vm1682, %v1860, %v1866
      %v1871 = vmul.f32 %v1869, %v1684
      %v1872 = vmul.f32 %v1870, %v1684
      %v1873 = vpack.c.bf16 %v1871, %v1871
      %v1874 = vpack.c.bf16 %v1872, %v1872
      %v1875 = vpack.c.bf16 %v1799, %v1799
      %v1876 = vpack.c.bf16 %v1800, %v1800
      %1877 = vrot.lane.b32.xlu0 %v1799, 127
      %v1878 = vpop.permute.xlu0 %1877
      %1879 = vrot.lane.b32.xlu0 %v1800, 127
      %v1880 = vpop.permute.xlu0 %1879
      %1883 = vrot.lane.b32.xlu0 %v1799, 63
      %v1884 = vpop.permute.xlu0 %1883
      %1885 = vrot.lane.b32.xlu0 %v1800, 63
      %v1886 = vpop.permute.xlu0 %1885
      %v1889 = vsel %vm1694, %v1878, %v1884
      %v1890 = vsel %vm1694, %v1880, %v1886
      %v1891 = vmul.f32 %v1889, %v1696
      %v1892 = vmul.f32 %v1890, %v1696
      %v1893 = vpack.c.bf16 %v1891, %v1891
      %v1894 = vpack.c.bf16 %v1892, %v1892
      %1895 = vrot.lane.b32.xlu0 %v1799, 121
      %v1896 = vpop.permute.xlu0 %1895
      %1897 = vrot.lane.b32.xlu0 %v1800, 121
      %v1898 = vpop.permute.xlu0 %1897
      %1901 = vrot.lane.b32.xlu0 %v1799, 57
      %v1902 = vpop.permute.xlu0 %1901
      %1903 = vrot.lane.b32.xlu0 %v1800, 57
      %v1904 = vpop.permute.xlu0 %1903
      %v1907 = vsel %vm1705, %v1896, %v1902
      %v1908 = vsel %vm1705, %v1898, %v1904
      %v1909 = vmul.f32 %v1907, %v1707
      %v1910 = vmul.f32 %v1908, %v1707
      %v1911 = vpack.c.bf16 %v1909, %v1909
      %v1912 = vpack.c.bf16 %v1910, %v1910
      %1913 = vrot.lane.b32.xlu0 %v1799, 120
      %v1914 = vpop.permute.xlu0 %1913
      %1915 = vrot.lane.b32.xlu0 %v1800, 120
      %v1916 = vpop.permute.xlu0 %1915
      %1919 = vrot.lane.b32.xlu0 %v1799, 56
      %v1920 = vpop.permute.xlu0 %1919
      %1921 = vrot.lane.b32.xlu0 %v1800, 56
      %v1922 = vpop.permute.xlu0 %1921
      %v1925 = vsel %vm1716, %v1914, %v1920
      %v1926 = vsel %vm1716, %v1916, %v1922
      %v1927 = vmul.f32 %v1925, %v1718
      %v1928 = vmul.f32 %v1926, %v1718
      %v1929 = vpack.c.bf16 %v1927, %v1927
      %v1930 = vpack.c.bf16 %v1928, %v1928
      %1931 = vrot.lane.b32.xlu0 %v1799, 119
      %v1932 = vpop.permute.xlu0 %1931
      %1933 = vrot.lane.b32.xlu0 %v1800, 119
      %v1934 = vpop.permute.xlu0 %1933
      %1937 = vrot.lane.b32.xlu0 %v1799, 55
      %v1938 = vpop.permute.xlu0 %1937
      %1939 = vrot.lane.b32.xlu0 %v1800, 55
      %v1940 = vpop.permute.xlu0 %1939
      %v1943 = vsel %vm1727, %v1932, %v1938
      %v1944 = vsel %vm1727, %v1934, %v1940
      %v1945 = vmul.f32 %v1943, %v1729
      %v1946 = vmul.f32 %v1944, %v1729
      %v1947 = vpack.c.bf16 %v1945, %v1945
      %v1948 = vpack.c.bf16 %v1946, %v1946
      %v1951 = vunpack.c.l.b16 %v1819
      %v1952 = vunpack.c.l.b16 %v1820
      %v1953 = vpack.c.b16 %v1952, %v1951
      %v1957 = vunpack.c.l.b16 %v1837
      %v1958 = vunpack.c.l.b16 %v1838
      %v1959 = vpack.c.b16 %v1958, %v1957
      %v1963 = vunpack.c.l.b16 %v1855
      %v1964 = vunpack.c.l.b16 %v1856
      %v1965 = vpack.c.b16 %v1964, %v1963
      %v1969 = vunpack.c.l.b16 %v1873
      %v1970 = vunpack.c.l.b16 %v1874
      %v1971 = vpack.c.b16 %v1970, %v1969
      %v1975 = vunpack.c.l.b16 %v1875
      %v1976 = vunpack.c.l.b16 %v1876
      %v1977 = vpack.c.b16 %v1976, %v1975
      %v1981 = vunpack.c.l.b16 %v1893
      %v1982 = vunpack.c.l.b16 %v1894
      %v1983 = vpack.c.b16 %v1982, %v1981
      %v1987 = vunpack.c.l.b16 %v1911
      %v1988 = vunpack.c.l.b16 %v1912
      %v1989 = vpack.c.b16 %v1988, %v1987
      %v1993 = vunpack.c.l.b16 %v1929
      %v1994 = vunpack.c.l.b16 %v1930
      %v1995 = vpack.c.b16 %v1994, %v1993
      %v1999 = vunpack.c.l.b16 %v1947
      %v2000 = vunpack.c.l.b16 %v1948
      %v2001 = vpack.c.b16 %v2000, %v1999
      %v2003 = vld [vmem:[%s15] sm:$0xff]
      %v2004 = vld [vmem:[%s15 + $0x8] sm:$0xff]
      %v2005 = vld [vmem:[%s17] sm:$0xff]
      %v2006 = vld [vmem:[%s17 + $0x8] sm:$0xff]
      %2008 = vset.pattern.permute.xlu0 0
      %2009 = vperm.xlu0 %2008, %v2005
      %v2010 = vpop.permute.xlu0 %2009
      %2013 = vset.pattern.permute.xlu0 0
      %2014 = vperm.xlu0 %2013, %v2006
      %v2015 = vpop.permute.xlu0 %2014
      %v2019 = vunpack.c.l.b16 %v2003
      %v2020 = vunpack.c.h.b16 %v2003
      %v2021 = vunpack.c.l.b16 %v2004
      %v2022 = vunpack.c.h.b16 %v2004
      %v2023 = vpack.c.b16 %v2021, %v2019
      %v2024 = vpack.c.b16 %v2022, %v2020
      %vm2026 = vcmask 130048
      %v2028 = vsel %vm2026, %v2024, 0
      %2030 = vmatpush.bf16.msra.mxu0 %v1995
      %2031 = vmatpush.bf16.msra.mxu0 %v1989
      %2032 = vmatpush.bf16.msra.mxu0 %v1983
      %2033 = vmatpush.bf16.msra.mxu0 %v1977
      %2034 = vmatpush.bf16.msra.mxu0 %v1971
      %2035 = vmatpush.bf16.msra.mxu0 %v1965
      %2036 = vmatpush.bf16.msra.mxu0 %v1959
      %2037 = vmatpush.bf16.msra.mxu0 %v1953
      %2038 = vmatmul.bf16.gmra.mxu0 %v2023
      %v2039 = vpop.f32.mrf.mxu0
      %v2040 = vadd.f32 %v2010, %v2039
      %v2041 = vpop.f32.mrf.mxu0
      %v2042 = vadd.f32 %v2015, %v2041
      %2043 = vdwg.mxu0
      %2044 = vmatpush.bf16.msra.mxu0 0
      %2045 = vmatpush.bf16.msra.mxu0 0
      %2046 = vmatpush.bf16.msra.mxu0 0
      %2047 = vmatpush.bf16.msra.mxu0 0
      %2048 = vmatpush.bf16.msra.mxu0 0
      %2049 = vmatpush.bf16.msra.mxu0 0
      %2050 = vmatpush.bf16.msra.mxu0 0
      %2051 = vmatpush.bf16.msra.mxu0 %v2001
      %2052 = vmatmul.bf16.gmra.mxu0 %v2028
      %v2053 = vpop.f32.mrf.mxu0
      %v2054 = vadd.f32 %v2040, %v2053
      %v2055 = vpop.f32.mrf.mxu0
      %v2056 = vadd.f32 %v2042, %v2055
      %2057 = vdwg.mxu0
      %v2058 = vmax.f32 %v2054, 0.0
      %v2059 = vmax.f32 %v2056, 0.0
      %2062 = vrot.lane.b32.xlu0 %v2058, 127
      %v2063 = vpop.permute.xlu0 %2062
      %2064 = vrot.lane.b32.xlu0 %v2059, 127
      %v2065 = vpop.permute.xlu0 %2064
      %2068 = vrot.lane.b32.xlu0 %v2058, 63
      %v2069 = vpop.permute.xlu0 %2068
      %2070 = vrot.lane.b32.xlu0 %v2059, 63
      %v2071 = vpop.permute.xlu0 %2070
      %v2074 = vsel %vm1694, %v2063, %v2069
      %v2075 = vsel %vm1694, %v2065, %v2071
      %v2076 = vmax.f32 %v2058, %v2074
      %v2077 = vmax.f32 %v2059, %v2075
      %2080 = vrot.lane.b32.xlu0 %v2076, 120
      %v2081 = vpop.permute.xlu0 %2080
      %2082 = vrot.lane.b32.xlu0 %v2077, 120
      %v2083 = vpop.permute.xlu0 %2082
      %2086 = vrot.lane.b32.xlu0 %v2076, 56
      %v2087 = vpop.permute.xlu0 %2086
      %2088 = vrot.lane.b32.xlu0 %v2077, 56
      %v2089 = vpop.permute.xlu0 %2088
      %v2092 = vsel %vm1716, %v2081, %v2087
      %v2093 = vsel %vm1716, %v2083, %v2089
      %v2094 = vmax.f32 %v2076, %v2092
      %v2095 = vmax.f32 %v2077, %v2093
      %v2096 = vpack.c.bf16 %v2095, %v2094
      %v2097 = vld [vmem:[%s59] sm:$0xf]
      %v2098 = vld [vmem:[%s59 + $0x4] sm:$0xf]
      %v2099 = vld [vmem:[%s59 + $0x8] sm:$0xf]
      %v2100 = vld [vmem:[%s59 + $0xc] sm:$0xf]
      %v2101 = vld [vmem:[%s59 + $0x10] sm:$0xf]
      %v2102 = vld [vmem:[%s59 + $0x14] sm:$0xf]
      %v2103 = vld [vmem:[%s59 + $0x18] sm:$0xf]
      %v2104 = vld [vmem:[%s59 + $0x1c] sm:$0xf]
      %v2113 = vunpack.c.l.b16 %v2097
      %v2114 = vunpack.c.l.b16 %v2098
      %v2115 = vunpack.c.l.b16 %v2099
      %v2116 = vunpack.c.l.b16 %v2100
      %v2117 = vunpack.c.l.b16 %v2101
      %v2118 = vunpack.c.l.b16 %v2102
      %v2119 = vunpack.c.l.b16 %v2103
      %v2120 = vunpack.c.l.b16 %v2104
      %v2121 = vpack.c.b16 %v2114, %v2113
      %v2122 = vpack.c.b16 %v2116, %v2115
      %v2123 = vpack.c.b16 %v2118, %v2117
      %v2124 = vpack.c.b16 %v2120, %v2119
      %vm2129 = vcmask 523264
      %v2131 = vsel %vm2129, %v2096, 0
      %2133 = vmatpush.bf16.msra.mxu0 0
      %2134 = vmatpush.bf16.msra.mxu0 0
      %2135 = vmatpush.bf16.msra.mxu0 0
      %2136 = vmatpush.bf16.msra.mxu0 0
      %2137 = vmatpush.bf16.msra.mxu0 %v2124
      %2138 = vmatpush.bf16.msra.mxu0 %v2123
      %2139 = vmatpush.bf16.msra.mxu0 %v2122
      %2140 = vmatpush.bf16.msra.mxu0 %v2121
      %2141 = vmatmul.bf16.gmra.mxu0 %v2131
      %v2142 = vpop.f32.mrf.mxu0
      %v2143 = vadd.f32 0.0, %v2142
      %v2144 = vpop.f32.mrf.mxu0
      %v2145 = vadd.f32 0.0, %v2144
      %2146 = vdwg.mxu0
      %2149 = vrot.lane.b32.xlu0 %v2143, 117
      %v2150 = vpop.permute.xlu0 %2149
      %2151 = vrot.lane.b32.xlu0 %v2145, 117
      %v2152 = vpop.permute.xlu0 %2151
      %2155 = vrot.lane.b32.xlu0 %v2143, 5
      %v2156 = vpop.permute.xlu0 %2155
      %2157 = vrot.lane.b32.xlu0 %v2145, 5
      %v2158 = vpop.permute.xlu0 %2157
      %vm2161 = vcmask 39936
      %v2162 = vsel %vm2161, %v2150, %v2156
      %v2163 = vsel %vm2161, %v2152, %v2158
      %v2164 = vperm.slane %v994, 0
      %v2165 = vmul.f32 %v2162, %v2164
      %v2166 = vmul.f32 %v2163, %v2164
      %v2167 = vpack.c.bf16 %v2165, %v2165
      %v2168 = vpack.c.bf16 %v2166, %v2166
      %2169 = vrot.lane.b32.xlu0 %v2143, 116
      %v2170 = vpop.permute.xlu0 %2169
      %2171 = vrot.lane.b32.xlu0 %v2145, 116
      %v2172 = vpop.permute.xlu0 %2171
      %2175 = vrot.lane.b32.xlu0 %v2143, 4
      %v2176 = vpop.permute.xlu0 %2175
      %2177 = vrot.lane.b32.xlu0 %v2145, 4
      %v2178 = vpop.permute.xlu0 %2177
      %vm2181 = vcmask 31744
      %v2182 = vsel %vm2181, %v2170, %v2176
      %v2183 = vsel %vm2181, %v2172, %v2178
      %v2184 = vperm.slane %v994, 1
      %v2185 = vmul.f32 %v2182, %v2184
      %v2186 = vmul.f32 %v2183, %v2184
      %v2187 = vpack.c.bf16 %v2185, %v2185
      %v2188 = vpack.c.bf16 %v2186, %v2186
      %2189 = vrot.lane.b32.xlu0 %v2143, 115
      %v2190 = vpop.permute.xlu0 %2189
      %2191 = vrot.lane.b32.xlu0 %v2145, 115
      %v2192 = vpop.permute.xlu0 %2191
      %2195 = vrot.lane.b32.xlu0 %v2143, 3
      %v2196 = vpop.permute.xlu0 %2195
      %2197 = vrot.lane.b32.xlu0 %v2145, 3
      %v2198 = vpop.permute.xlu0 %2197
      %vm2201 = vcmask 23552
      %v2202 = vsel %vm2201, %v2190, %v2196
      %v2203 = vsel %vm2201, %v2192, %v2198
      %v2204 = vperm.slane %v994, 2
      %v2205 = vmul.f32 %v2202, %v2204
      %v2206 = vmul.f32 %v2203, %v2204
      %v2207 = vpack.c.bf16 %v2205, %v2205
      %v2208 = vpack.c.bf16 %v2206, %v2206
      %2209 = vrot.lane.b32.xlu0 %v2143, 113
      %v2210 = vpop.permute.xlu0 %2209
      %2211 = vrot.lane.b32.xlu0 %v2145, 113
      %v2212 = vpop.permute.xlu0 %2211
      %2215 = vrot.lane.b32.xlu0 %v2143, 1
      %v2216 = vpop.permute.xlu0 %2215
      %2217 = vrot.lane.b32.xlu0 %v2145, 1
      %v2218 = vpop.permute.xlu0 %2217
      %v2221 = vsel %vm1682, %v2210, %v2216
      %v2222 = vsel %vm1682, %v2212, %v2218
      %v2223 = vperm.slane %v994, 3
      %v2224 = vmul.f32 %v2221, %v2223
      %v2225 = vmul.f32 %v2222, %v2223
      %v2226 = vpack.c.bf16 %v2224, %v2224
      %v2227 = vpack.c.bf16 %v2225, %v2225
      %v2228 = vpack.c.bf16 %v2143, %v2143
      %v2229 = vpack.c.bf16 %v2145, %v2145
      %2230 = vrot.lane.b32.xlu0 %v2143, 127
      %v2231 = vpop.permute.xlu0 %2230
      %2232 = vrot.lane.b32.xlu0 %v2145, 127
      %v2233 = vpop.permute.xlu0 %2232
      %2236 = vrot.lane.b32.xlu0 %v2143, 15
      %v2237 = vpop.permute.xlu0 %2236
      %2238 = vrot.lane.b32.xlu0 %v2145, 15
      %v2239 = vpop.permute.xlu0 %2238
      %vm2242 = vcmask 121856
      %v2243 = vsel %vm2242, %v2231, %v2237
      %v2244 = vsel %vm2242, %v2233, %v2239
      %v2245 = vperm.slane %v994, 5
      %v2246 = vmul.f32 %v2243, %v2245
      %v2247 = vmul.f32 %v2244, %v2245
      %v2248 = vpack.c.bf16 %v2246, %v2246
      %v2249 = vpack.c.bf16 %v2247, %v2247
      %2250 = vrot.lane.b32.xlu0 %v2143, 125
      %v2251 = vpop.permute.xlu0 %2250
      %2252 = vrot.lane.b32.xlu0 %v2145, 125
      %v2253 = vpop.permute.xlu0 %2252
      %2256 = vrot.lane.b32.xlu0 %v2143, 13
      %v2257 = vpop.permute.xlu0 %2256
      %2258 = vrot.lane.b32.xlu0 %v2145, 13
      %v2259 = vpop.permute.xlu0 %2258
      %vm2262 = vcmask 105472
      %v2263 = vsel %vm2262, %v2251, %v2257
      %v2264 = vsel %vm2262, %v2253, %v2259
      %v2265 = vperm.slane %v994, 6
      %v2266 = vmul.f32 %v2263, %v2265
      %v2267 = vmul.f32 %v2264, %v2265
      %v2268 = vpack.c.bf16 %v2266, %v2266
      %v2269 = vpack.c.bf16 %v2267, %v2267
      %2270 = vrot.lane.b32.xlu0 %v2143, 124
      %v2271 = vpop.permute.xlu0 %2270
      %2272 = vrot.lane.b32.xlu0 %v2145, 124
      %v2273 = vpop.permute.xlu0 %2272
      %2276 = vrot.lane.b32.xlu0 %v2143, 12
      %v2277 = vpop.permute.xlu0 %2276
      %2278 = vrot.lane.b32.xlu0 %v2145, 12
      %v2279 = vpop.permute.xlu0 %2278
      %vm2282 = vcmask 97280
      %v2283 = vsel %vm2282, %v2271, %v2277
      %v2284 = vsel %vm2282, %v2273, %v2279
      %v2285 = vperm.slane %v994, 7
      %v2286 = vmul.f32 %v2283, %v2285
      %v2287 = vmul.f32 %v2284, %v2285
      %v2288 = vpack.c.bf16 %v2286, %v2286
      %v2289 = vpack.c.bf16 %v2287, %v2287
      %2290 = vrot.lane.b32.xlu0 %v2143, 123
      %v2291 = vpop.permute.xlu0 %2290
      %2292 = vrot.lane.b32.xlu0 %v2145, 123
      %v2293 = vpop.permute.xlu0 %2292
      %2296 = vrot.lane.b32.xlu0 %v2143, 11
      %v2297 = vpop.permute.xlu0 %2296
      %2298 = vrot.lane.b32.xlu0 %v2145, 11
      %v2299 = vpop.permute.xlu0 %2298
      %vm2302 = vcmask 89088
      %v2303 = vsel %vm2302, %v2291, %v2297
      %v2304 = vsel %vm2302, %v2293, %v2299
      %v2305 = vperm.slane %v995, 0
      %v2306 = vmul.f32 %v2303, %v2305
      %v2307 = vmul.f32 %v2304, %v2305
      %v2308 = vpack.c.bf16 %v2306, %v2306
      %v2309 = vpack.c.bf16 %v2307, %v2307
      %v2312 = vunpack.c.l.b16 %v2167
      %v2313 = vunpack.c.l.b16 %v2168
      %v2314 = vpack.c.b16 %v2313, %v2312
      %v2318 = vunpack.c.l.b16 %v2187
      %v2319 = vunpack.c.l.b16 %v2188
      %v2320 = vpack.c.b16 %v2319, %v2318
      %v2324 = vunpack.c.l.b16 %v2207
      %v2325 = vunpack.c.l.b16 %v2208
      %v2326 = vpack.c.b16 %v2325, %v2324
      %v2330 = vunpack.c.l.b16 %v2226
      %v2331 = vunpack.c.l.b16 %v2227
      %v2332 = vpack.c.b16 %v2331, %v2330
      %v2336 = vunpack.c.l.b16 %v2228
      %v2337 = vunpack.c.l.b16 %v2229
      %v2338 = vpack.c.b16 %v2337, %v2336
      %v2342 = vunpack.c.l.b16 %v2248
      %v2343 = vunpack.c.l.b16 %v2249
      %v2344 = vpack.c.b16 %v2343, %v2342
      %v2348 = vunpack.c.l.b16 %v2268
      %v2349 = vunpack.c.l.b16 %v2269
      %v2350 = vpack.c.b16 %v2349, %v2348
      %v2354 = vunpack.c.l.b16 %v2288
      %v2355 = vunpack.c.l.b16 %v2289
      %v2356 = vpack.c.b16 %v2355, %v2354
      %v2360 = vunpack.c.l.b16 %v2308
      %v2361 = vunpack.c.l.b16 %v2309
      %v2362 = vpack.c.b16 %v2361, %v2360
      %v2364 = vld [vmem:[%s19] sm:$0xff]
      %v2365 = vld [vmem:[%s19 + $0x8] sm:$0xff]
      %v2366 = vld [vmem:[%s19 + $0x10] sm:$0xff]
      %v2367 = vld [vmem:[%s19 + $0x18] sm:$0xff]
      %v2368 = vld [vmem:[%s21] sm:$0xff]
      %v2369 = vld [vmem:[%s21 + $0x8] sm:$0xff]
      %v2370 = vld [vmem:[%s21 + $0x10] sm:$0xff]
      %v2371 = vld [vmem:[%s21 + $0x18] sm:$0xff]
      %2373 = vset.pattern.permute.xlu0 0
      %2374 = vperm.xlu0 %2373, %v2368
      %v2375 = vpop.permute.xlu0 %2374
      %2378 = vset.pattern.permute.xlu0 0
      %2379 = vperm.xlu0 %2378, %v2369
      %v2380 = vpop.permute.xlu0 %2379
      %2383 = vset.pattern.permute.xlu0 0
      %2384 = vperm.xlu0 %2383, %v2370
      %v2385 = vpop.permute.xlu0 %2384
      %2388 = vset.pattern.permute.xlu0 0
      %2389 = vperm.xlu0 %2388, %v2371
      %v2390 = vpop.permute.xlu0 %2389
      %v2396 = vunpack.c.l.b16 %v2364
      %v2397 = vunpack.c.h.b16 %v2364
      %v2398 = vunpack.c.l.b16 %v2365
      %v2399 = vunpack.c.h.b16 %v2365
      %v2400 = vunpack.c.l.b16 %v2366
      %v2401 = vunpack.c.h.b16 %v2366
      %v2402 = vunpack.c.l.b16 %v2367
      %v2403 = vunpack.c.h.b16 %v2367
      %v2404 = vpack.c.b16 %v2398, %v2396
      %v2405 = vpack.c.b16 %v2399, %v2397
      %v2406 = vpack.c.b16 %v2402, %v2400
      %v2407 = vpack.c.b16 %v2403, %v2401
      %v2411 = vsel %vm2026, %v2405, 0
      %v2414 = vsel %vm2026, %v2407, 0
      %2416 = vmatpush.bf16.msra.mxu0 %v2356
      %2417 = vmatpush.bf16.msra.mxu0 %v2350
      %2418 = vmatpush.bf16.msra.mxu0 %v2344
      %2419 = vmatpush.bf16.msra.mxu0 %v2338
      %2420 = vmatpush.bf16.msra.mxu0 %v2332
      %2421 = vmatpush.bf16.msra.mxu0 %v2326
      %2422 = vmatpush.bf16.msra.mxu0 %v2320
      %2423 = vmatpush.bf16.msra.mxu0 %v2314
      %2424 = vmatmul.bf16.gmra.mxu0 %v2404
      %v2425 = vpop.f32.mrf.mxu0
      %v2426 = vadd.f32 %v2375, %v2425
      %v2427 = vpop.f32.mrf.mxu0
      %v2428 = vadd.f32 %v2380, %v2427
      %2429 = vmatmul.bf16.gmra.mxu0 %v2406
      %v2430 = vpop.f32.mrf.mxu0
      %v2431 = vadd.f32 %v2385, %v2430
      %v2432 = vpop.f32.mrf.mxu0
      %v2433 = vadd.f32 %v2390, %v2432
      %2434 = vdwg.mxu0
      %2435 = vmatpush.bf16.msra.mxu0 0
      %2436 = vmatpush.bf16.msra.mxu0 0
      %2437 = vmatpush.bf16.msra.mxu0 0
      %2438 = vmatpush.bf16.msra.mxu0 0
      %2439 = vmatpush.bf16.msra.mxu0 0
      %2440 = vmatpush.bf16.msra.mxu0 0
      %2441 = vmatpush.bf16.msra.mxu0 0
      %2442 = vmatpush.bf16.msra.mxu0 %v2362
      %2443 = vmatmul.bf16.gmra.mxu0 %v2411
      %v2444 = vpop.f32.mrf.mxu0
      %v2445 = vadd.f32 %v2426, %v2444
      %v2446 = vpop.f32.mrf.mxu0
      %v2447 = vadd.f32 %v2428, %v2446
      %2448 = vmatmul.bf16.gmra.mxu0 %v2414
      %v2449 = vpop.f32.mrf.mxu0
      %v2450 = vadd.f32 %v2431, %v2449
      %v2451 = vpop.f32.mrf.mxu0
      %v2452 = vadd.f32 %v2433, %v2451
      %2453 = vdwg.mxu0
      %v2454 = vmax.f32 %v2445, 0.0
      %v2455 = vmax.f32 %v2447, 0.0
      %v2456 = vmax.f32 %v2450, 0.0
      %v2457 = vmax.f32 %v2452, 0.0
      %2462 = vrot.lane.b32.xlu0 %v2454, 117
      %v2463 = vpop.permute.xlu0 %2462
      %2464 = vrot.lane.b32.xlu0 %v2455, 117
      %v2465 = vpop.permute.xlu0 %2464
      %2466 = vrot.lane.b32.xlu0 %v2456, 117
      %v2467 = vpop.permute.xlu0 %2466
      %2468 = vrot.lane.b32.xlu0 %v2457, 117
      %v2469 = vpop.permute.xlu0 %2468
      %2474 = vrot.lane.b32.xlu0 %v2454, 5
      %v2475 = vpop.permute.xlu0 %2474
      %2476 = vrot.lane.b32.xlu0 %v2455, 5
      %v2477 = vpop.permute.xlu0 %2476
      %2478 = vrot.lane.b32.xlu0 %v2456, 5
      %v2479 = vpop.permute.xlu0 %2478
      %2480 = vrot.lane.b32.xlu0 %v2457, 5
      %v2481 = vpop.permute.xlu0 %2480
      %v2486 = vsel %vm2161, %v2463, %v2475
      %v2487 = vsel %vm2161, %v2465, %v2477
      %v2488 = vsel %vm2161, %v2467, %v2479
      %v2489 = vsel %vm2161, %v2469, %v2481
      %v2490 = vmul.f32 %v2486, %v2164
      %v2491 = vmul.f32 %v2487, %v2164
      %v2492 = vmul.f32 %v2488, %v2164
      %v2493 = vmul.f32 %v2489, %v2164
      %v2494 = vpack.c.bf16 %v2490, %v2490
      %v2495 = vpack.c.bf16 %v2491, %v2491
      %v2496 = vpack.c.bf16 %v2492, %v2492
      %v2497 = vpack.c.bf16 %v2493, %v2493
      %2498 = vrot.lane.b32.xlu0 %v2454, 116
      %v2499 = vpop.permute.xlu0 %2498
      %2500 = vrot.lane.b32.xlu0 %v2455, 116
      %v2501 = vpop.permute.xlu0 %2500
      %2502 = vrot.lane.b32.xlu0 %v2456, 116
      %v2503 = vpop.permute.xlu0 %2502
      %2504 = vrot.lane.b32.xlu0 %v2457, 116
      %v2505 = vpop.permute.xlu0 %2504
      %2510 = vrot.lane.b32.xlu0 %v2454, 4
      %v2511 = vpop.permute.xlu0 %2510
      %2512 = vrot.lane.b32.xlu0 %v2455, 4
      %v2513 = vpop.permute.xlu0 %2512
      %2514 = vrot.lane.b32.xlu0 %v2456, 4
      %v2515 = vpop.permute.xlu0 %2514
      %2516 = vrot.lane.b32.xlu0 %v2457, 4
      %v2517 = vpop.permute.xlu0 %2516
      %v2522 = vsel %vm2181, %v2499, %v2511
      %v2523 = vsel %vm2181, %v2501, %v2513
      %v2524 = vsel %vm2181, %v2503, %v2515
      %v2525 = vsel %vm2181, %v2505, %v2517
      %v2526 = vmul.f32 %v2522, %v2184
      %v2527 = vmul.f32 %v2523, %v2184
      %v2528 = vmul.f32 %v2524, %v2184
      %v2529 = vmul.f32 %v2525, %v2184
      %v2530 = vpack.c.bf16 %v2526, %v2526
      %v2531 = vpack.c.bf16 %v2527, %v2527
      %v2532 = vpack.c.bf16 %v2528, %v2528
      %v2533 = vpack.c.bf16 %v2529, %v2529
      %2534 = vrot.lane.b32.xlu0 %v2454, 115
      %v2535 = vpop.permute.xlu0 %2534
      %2536 = vrot.lane.b32.xlu0 %v2455, 115
      %v2537 = vpop.permute.xlu0 %2536
      %2538 = vrot.lane.b32.xlu0 %v2456, 115
      %v2539 = vpop.permute.xlu0 %2538
      %2540 = vrot.lane.b32.xlu0 %v2457, 115
      %v2541 = vpop.permute.xlu0 %2540
      %2546 = vrot.lane.b32.xlu0 %v2454, 3
      %v2547 = vpop.permute.xlu0 %2546
      %2548 = vrot.lane.b32.xlu0 %v2455, 3
      %v2549 = vpop.permute.xlu0 %2548
      %2550 = vrot.lane.b32.xlu0 %v2456, 3
      %v2551 = vpop.permute.xlu0 %2550
      %2552 = vrot.lane.b32.xlu0 %v2457, 3
      %v2553 = vpop.permute.xlu0 %2552
      %v2558 = vsel %vm2201, %v2535, %v2547
      %v2559 = vsel %vm2201, %v2537, %v2549
      %v2560 = vsel %vm2201, %v2539, %v2551
      %v2561 = vsel %vm2201, %v2541, %v2553
      %v2562 = vmul.f32 %v2558, %v2204
      %v2563 = vmul.f32 %v2559, %v2204
      %v2564 = vmul.f32 %v2560, %v2204
      %v2565 = vmul.f32 %v2561, %v2204
      %v2566 = vpack.c.bf16 %v2562, %v2562
      %v2567 = vpack.c.bf16 %v2563, %v2563
      %v2568 = vpack.c.bf16 %v2564, %v2564
      %v2569 = vpack.c.bf16 %v2565, %v2565
      %2570 = vrot.lane.b32.xlu0 %v2454, 113
      %v2571 = vpop.permute.xlu0 %2570
      %2572 = vrot.lane.b32.xlu0 %v2455, 113
      %v2573 = vpop.permute.xlu0 %2572
      %2574 = vrot.lane.b32.xlu0 %v2456, 113
      %v2575 = vpop.permute.xlu0 %2574
      %2576 = vrot.lane.b32.xlu0 %v2457, 113
      %v2577 = vpop.permute.xlu0 %2576
      %2582 = vrot.lane.b32.xlu0 %v2454, 1
      %v2583 = vpop.permute.xlu0 %2582
      %2584 = vrot.lane.b32.xlu0 %v2455, 1
      %v2585 = vpop.permute.xlu0 %2584
      %2586 = vrot.lane.b32.xlu0 %v2456, 1
      %v2587 = vpop.permute.xlu0 %2586
      %2588 = vrot.lane.b32.xlu0 %v2457, 1
      %v2589 = vpop.permute.xlu0 %2588
      %v2594 = vsel %vm1682, %v2571, %v2583
      %v2595 = vsel %vm1682, %v2573, %v2585
      %v2596 = vsel %vm1682, %v2575, %v2587
      %v2597 = vsel %vm1682, %v2577, %v2589
      %v2598 = vmul.f32 %v2594, %v2223
      %v2599 = vmul.f32 %v2595, %v2223
      %v2600 = vmul.f32 %v2596, %v2223
      %v2601 = vmul.f32 %v2597, %v2223
      %v2602 = vpack.c.bf16 %v2598, %v2598
      %v2603 = vpack.c.bf16 %v2599, %v2599
      %v2604 = vpack.c.bf16 %v2600, %v2600
      %v2605 = vpack.c.bf16 %v2601, %v2601
      %v2606 = vpack.c.bf16 %v2454, %v2454
      %v2607 = vpack.c.bf16 %v2455, %v2455
      %v2608 = vpack.c.bf16 %v2456, %v2456
      %v2609 = vpack.c.bf16 %v2457, %v2457
      %2610 = vrot.lane.b32.xlu0 %v2454, 127
      %v2611 = vpop.permute.xlu0 %2610
      %2612 = vrot.lane.b32.xlu0 %v2455, 127
      %v2613 = vpop.permute.xlu0 %2612
      %2614 = vrot.lane.b32.xlu0 %v2456, 127
      %v2615 = vpop.permute.xlu0 %2614
      %2616 = vrot.lane.b32.xlu0 %v2457, 127
      %v2617 = vpop.permute.xlu0 %2616
      %2622 = vrot.lane.b32.xlu0 %v2454, 15
      %v2623 = vpop.permute.xlu0 %2622
      %2624 = vrot.lane.b32.xlu0 %v2455, 15
      %v2625 = vpop.permute.xlu0 %2624
      %2626 = vrot.lane.b32.xlu0 %v2456, 15
      %v2627 = vpop.permute.xlu0 %2626
      %2628 = vrot.lane.b32.xlu0 %v2457, 15
      %v2629 = vpop.permute.xlu0 %2628
      %v2634 = vsel %vm2242, %v2611, %v2623
      %v2635 = vsel %vm2242, %v2613, %v2625
      %v2636 = vsel %vm2242, %v2615, %v2627
      %v2637 = vsel %vm2242, %v2617, %v2629
      %v2638 = vmul.f32 %v2634, %v2245
      %v2639 = vmul.f32 %v2635, %v2245
      %v2640 = vmul.f32 %v2636, %v2245
      %v2641 = vmul.f32 %v2637, %v2245
      %v2642 = vpack.c.bf16 %v2638, %v2638
      %v2643 = vpack.c.bf16 %v2639, %v2639
      %v2644 = vpack.c.bf16 %v2640, %v2640
      %v2645 = vpack.c.bf16 %v2641, %v2641
      %2646 = vrot.lane.b32.xlu0 %v2454, 125
      %v2647 = vpop.permute.xlu0 %2646
      %2648 = vrot.lane.b32.xlu0 %v2455, 125
      %v2649 = vpop.permute.xlu0 %2648
      %2650 = vrot.lane.b32.xlu0 %v2456, 125
      %v2651 = vpop.permute.xlu0 %2650
      %2652 = vrot.lane.b32.xlu0 %v2457, 125
      %v2653 = vpop.permute.xlu0 %2652
      %2658 = vrot.lane.b32.xlu0 %v2454, 13
      %v2659 = vpop.permute.xlu0 %2658
      %2660 = vrot.lane.b32.xlu0 %v2455, 13
      %v2661 = vpop.permute.xlu0 %2660
      %2662 = vrot.lane.b32.xlu0 %v2456, 13
      %v2663 = vpop.permute.xlu0 %2662
      %2664 = vrot.lane.b32.xlu0 %v2457, 13
      %v2665 = vpop.permute.xlu0 %2664
      %v2670 = vsel %vm2262, %v2647, %v2659
      %v2671 = vsel %vm2262, %v2649, %v2661
      %v2672 = vsel %vm2262, %v2651, %v2663
      %v2673 = vsel %vm2262, %v2653, %v2665
      %v2674 = vmul.f32 %v2670, %v2265
      %v2675 = vmul.f32 %v2671, %v2265
      %v2676 = vmul.f32 %v2672, %v2265
      %v2677 = vmul.f32 %v2673, %v2265
      %v2678 = vpack.c.bf16 %v2674, %v2674
      %v2679 = vpack.c.bf16 %v2675, %v2675
      %v2680 = vpack.c.bf16 %v2676, %v2676
      %v2681 = vpack.c.bf16 %v2677, %v2677
      %2682 = vrot.lane.b32.xlu0 %v2454, 124
      %v2683 = vpop.permute.xlu0 %2682
      %2684 = vrot.lane.b32.xlu0 %v2455, 124
      %v2685 = vpop.permute.xlu0 %2684
      %2686 = vrot.lane.b32.xlu0 %v2456, 124
      %v2687 = vpop.permute.xlu0 %2686
      %2688 = vrot.lane.b32.xlu0 %v2457, 124
      %v2689 = vpop.permute.xlu0 %2688
      %2694 = vrot.lane.b32.xlu0 %v2454, 12
      %v2695 = vpop.permute.xlu0 %2694
      %2696 = vrot.lane.b32.xlu0 %v2455, 12
      %v2697 = vpop.permute.xlu0 %2696
      %2698 = vrot.lane.b32.xlu0 %v2456, 12
      %v2699 = vpop.permute.xlu0 %2698
      %2700 = vrot.lane.b32.xlu0 %v2457, 12
      %v2701 = vpop.permute.xlu0 %2700
      %v2706 = vsel %vm2282, %v2683, %v2695
      %v2707 = vsel %vm2282, %v2685, %v2697
      %v2708 = vsel %vm2282, %v2687, %v2699
      %v2709 = vsel %vm2282, %v2689, %v2701
      %v2710 = vmul.f32 %v2706, %v2285
      %v2711 = vmul.f32 %v2707, %v2285
      %v2712 = vmul.f32 %v2708, %v2285
      %v2713 = vmul.f32 %v2709, %v2285
      %v2714 = vpack.c.bf16 %v2710, %v2710
      %v2715 = vpack.c.bf16 %v2711, %v2711
      %v2716 = vpack.c.bf16 %v2712, %v2712
      %v2717 = vpack.c.bf16 %v2713, %v2713
      %2718 = vrot.lane.b32.xlu0 %v2454, 123
      %v2719 = vpop.permute.xlu0 %2718
      %2720 = vrot.lane.b32.xlu0 %v2455, 123
      %v2721 = vpop.permute.xlu0 %2720
      %2722 = vrot.lane.b32.xlu0 %v2456, 123
      %v2723 = vpop.permute.xlu0 %2722
      %2724 = vrot.lane.b32.xlu0 %v2457, 123
      %v2725 = vpop.permute.xlu0 %2724
      %2730 = vrot.lane.b32.xlu0 %v2454, 11
      %v2731 = vpop.permute.xlu0 %2730
      %2732 = vrot.lane.b32.xlu0 %v2455, 11
      %v2733 = vpop.permute.xlu0 %2732
      %2734 = vrot.lane.b32.xlu0 %v2456, 11
      %v2735 = vpop.permute.xlu0 %2734
      %2736 = vrot.lane.b32.xlu0 %v2457, 11
      %v2737 = vpop.permute.xlu0 %2736
      %v2742 = vsel %vm2302, %v2719, %v2731
      %v2743 = vsel %vm2302, %v2721, %v2733
      %v2744 = vsel %vm2302, %v2723, %v2735
      %v2745 = vsel %vm2302, %v2725, %v2737
      %v2746 = vmul.f32 %v2742, %v2305
      %v2747 = vmul.f32 %v2743, %v2305
      %v2748 = vmul.f32 %v2744, %v2305
      %v2749 = vmul.f32 %v2745, %v2305
      %v2750 = vpack.c.bf16 %v2746, %v2746
      %v2751 = vpack.c.bf16 %v2747, %v2747
      %v2752 = vpack.c.bf16 %v2748, %v2748
      %v2753 = vpack.c.bf16 %v2749, %v2749
      %v2758 = vunpack.c.l.b16 %v2494
      %v2759 = vunpack.c.l.b16 %v2495
      %v2760 = vunpack.c.l.b16 %v2496
      %v2761 = vunpack.c.l.b16 %v2497
      %v2762 = vpack.c.b16 %v2759, %v2758
      %v2763 = vpack.c.b16 %v2761, %v2760
      %v2770 = vunpack.c.l.b16 %v2530
      %v2771 = vunpack.c.l.b16 %v2531
      %v2772 = vunpack.c.l.b16 %v2532
      %v2773 = vunpack.c.l.b16 %v2533
      %v2774 = vpack.c.b16 %v2771, %v2770
      %v2775 = vpack.c.b16 %v2773, %v2772
      %v2782 = vunpack.c.l.b16 %v2566
      %v2783 = vunpack.c.l.b16 %v2567
      %v2784 = vunpack.c.l.b16 %v2568
      %v2785 = vunpack.c.l.b16 %v2569
      %v2786 = vpack.c.b16 %v2783, %v2782
      %v2787 = vpack.c.b16 %v2785, %v2784
      %v2794 = vunpack.c.l.b16 %v2602
      %v2795 = vunpack.c.l.b16 %v2603
      %v2796 = vunpack.c.l.b16 %v2604
      %v2797 = vunpack.c.l.b16 %v2605
      %v2798 = vpack.c.b16 %v2795, %v2794
      %v2799 = vpack.c.b16 %v2797, %v2796
      %v2806 = vunpack.c.l.b16 %v2606
      %v2807 = vunpack.c.l.b16 %v2607
      %v2808 = vunpack.c.l.b16 %v2608
      %v2809 = vunpack.c.l.b16 %v2609
      %v2810 = vpack.c.b16 %v2807, %v2806
      %v2811 = vpack.c.b16 %v2809, %v2808
      %v2818 = vunpack.c.l.b16 %v2642
      %v2819 = vunpack.c.l.b16 %v2643
      %v2820 = vunpack.c.l.b16 %v2644
      %v2821 = vunpack.c.l.b16 %v2645
      %v2822 = vpack.c.b16 %v2819, %v2818
      %v2823 = vpack.c.b16 %v2821, %v2820
      %v2830 = vunpack.c.l.b16 %v2678
      %v2831 = vunpack.c.l.b16 %v2679
      %v2832 = vunpack.c.l.b16 %v2680
      %v2833 = vunpack.c.l.b16 %v2681
      %v2834 = vpack.c.b16 %v2831, %v2830
      %v2835 = vpack.c.b16 %v2833, %v2832
      %v2842 = vunpack.c.l.b16 %v2714
      %v2843 = vunpack.c.l.b16 %v2715
      %v2844 = vunpack.c.l.b16 %v2716
      %v2845 = vunpack.c.l.b16 %v2717
      %v2846 = vpack.c.b16 %v2843, %v2842
      %v2847 = vpack.c.b16 %v2845, %v2844
      %v2854 = vunpack.c.l.b16 %v2750
      %v2855 = vunpack.c.l.b16 %v2751
      %v2856 = vunpack.c.l.b16 %v2752
      %v2857 = vunpack.c.l.b16 %v2753
      %v2858 = vpack.c.b16 %v2855, %v2854
      %v2859 = vpack.c.b16 %v2857, %v2856
      %v2862 = vld [vmem:[%s23] sm:$0xff]
      %v2863 = vld [vmem:[%s23 + $0x8] sm:$0xf]
      %v2864 = vld [vmem:[%s23 + $0xc] sm:$0xff]
      %v2865 = vld [vmem:[%s23 + $0x14] sm:$0xf]
      %v2866 = vld [vmem:[%s23 + $0x18] sm:$0xff]
      %v2867 = vld [vmem:[%s23 + $0x20] sm:$0xf]
      %v2868 = vld [vmem:[%s23 + $0x24] sm:$0xff]
      %v2869 = vld [vmem:[%s23 + $0x2c] sm:$0xf]
      %v2870 = vld [vmem:[%s25] sm:$0xff]
      %v2871 = vld [vmem:[%s25 + $0x8] sm:$0xff]
      %v2872 = vld [vmem:[%s25 + $0x10] sm:$0xff]
      %v2873 = vld [vmem:[%s25 + $0x18] sm:$0xff]
      %2875 = vset.pattern.permute.xlu0 0
      %2876 = vperm.xlu0 %2875, %v2870
      %v2877 = vpop.permute.xlu0 %2876
      %2880 = vset.pattern.permute.xlu0 0
      %2881 = vperm.xlu0 %2880, %v2871
      %v2882 = vpop.permute.xlu0 %2881
      %2885 = vset.pattern.permute.xlu0 0
      %2886 = vperm.xlu0 %2885, %v2872
      %v2887 = vpop.permute.xlu0 %2886
      %2890 = vset.pattern.permute.xlu0 0
      %2891 = vperm.xlu0 %2890, %v2873
      %v2892 = vpop.permute.xlu0 %2891
      %v2902 = vunpack.c.l.b16 %v2862
      %v2903 = vunpack.c.h.b16 %v2862
      %v2904 = vunpack.c.l.b16 %v2863
      %v2905 = vunpack.c.l.b16 %v2864
      %v2906 = vunpack.c.h.b16 %v2864
      %v2907 = vunpack.c.l.b16 %v2865
      %v2908 = vunpack.c.l.b16 %v2866
      %v2909 = vunpack.c.h.b16 %v2866
      %v2910 = vunpack.c.l.b16 %v2867
      %v2911 = vunpack.c.l.b16 %v2868
      %v2912 = vunpack.c.h.b16 %v2868
      %v2913 = vunpack.c.l.b16 %v2869
      %v2914 = vpack.c.b16 %v2905, %v2902
      %v2915 = vpack.c.b16 %v2906, %v2903
      %v2916 = vpack.c.b16 %v2907, %v2904
      %v2917 = vpack.c.b16 %v2911, %v2908
      %v2918 = vpack.c.b16 %v2912, %v2909
      %v2919 = vpack.c.b16 %v2913, %v2910
      %vm2924 = vcmask 261120
      %v2926 = vsel %vm2924, %v2916, 0
      %v2929 = vsel %vm2924, %v2919, 0
      %2931 = vmatpush.bf16.msra.mxu0 %v2799
      %2932 = vmatpush.bf16.msra.mxu0 %v2798
      %2933 = vmatpush.bf16.msra.mxu0 %v2787
      %2934 = vmatpush.bf16.msra.mxu0 %v2786
      %2935 = vmatpush.bf16.msra.mxu0 %v2775
      %2936 = vmatpush.bf16.msra.mxu0 %v2774
      %2937 = vmatpush.bf16.msra.mxu0 %v2763
      %2938 = vmatpush.bf16.msra.mxu0 %v2762
      %2939 = vmatmul.bf16.gmra.mxu0 %v2914
      %v2940 = vpop.f32.mrf.mxu0
      %v2941 = vadd.f32 %v2877, %v2940
      %v2942 = vpop.f32.mrf.mxu0
      %v2943 = vadd.f32 %v2882, %v2942
      %2944 = vmatmul.bf16.gmra.mxu0 %v2917
      %v2945 = vpop.f32.mrf.mxu0
      %v2946 = vadd.f32 %v2887, %v2945
      %v2947 = vpop.f32.mrf.mxu0
      %v2948 = vadd.f32 %v2892, %v2947
      %2949 = vdwg.mxu0
      %2950 = vmatpush.bf16.msra.mxu0 %v2847
      %2951 = vmatpush.bf16.msra.mxu0 %v2846
      %2952 = vmatpush.bf16.msra.mxu0 %v2835
      %2953 = vmatpush.bf16.msra.mxu0 %v2834
      %2954 = vmatpush.bf16.msra.mxu0 %v2823
      %2955 = vmatpush.bf16.msra.mxu0 %v2822
      %2956 = vmatpush.bf16.msra.mxu0 %v2811
      %2957 = vmatpush.bf16.msra.mxu0 %v2810
      %2958 = vmatmul.bf16.gmra.mxu0 %v2915
      %v2959 = vpop.f32.mrf.mxu0
      %v2960 = vadd.f32 %v2941, %v2959
      %v2961 = vpop.f32.mrf.mxu0
      %v2962 = vadd.f32 %v2943, %v2961
      %2963 = vmatmul.bf16.gmra.mxu0 %v2918
      %v2964 = vpop.f32.mrf.mxu0
      %v2965 = vadd.f32 %v2946, %v2964
      %v2966 = vpop.f32.mrf.mxu0
      %v2967 = vadd.f32 %v2948, %v2966
      %2968 = vdwg.mxu0
      %2969 = vmatpush.bf16.msra.mxu0 0
      %2970 = vmatpush.bf16.msra.mxu0 0
      %2971 = vmatpush.bf16.msra.mxu0 0
      %2972 = vmatpush.bf16.msra.mxu0 0
      %2973 = vmatpush.bf16.msra.mxu0 0
      %2974 = vmatpush.bf16.msra.mxu0 0
      %2975 = vmatpush.bf16.msra.mxu0 %v2859
      %2976 = vmatpush.bf16.msra.mxu0 %v2858
      %2977 = vmatmul.bf16.gmra.mxu0 %v2926
      %v2978 = vpop.f32.mrf.mxu0
      %v2979 = vadd.f32 %v2960, %v2978
      %v2980 = vpop.f32.mrf.mxu0
      %v2981 = vadd.f32 %v2962, %v2980
      %2982 = vmatmul.bf16.gmra.mxu0 %v2929
      %v2983 = vpop.f32.mrf.mxu0
      %v2984 = vadd.f32 %v2965, %v2983
      %v2985 = vpop.f32.mrf.mxu0
      %v2986 = vadd.f32 %v2967, %v2985
      %2987 = vdwg.mxu0
      %v2988 = vmax.f32 %v2979, 0.0
      %v2989 = vmax.f32 %v2981, 0.0
      %v2990 = vmax.f32 %v2984, 0.0
      %v2991 = vmax.f32 %v2986, 0.0
      %v2992 = vpack.c.bf16 %v2989, %v2988
      %v2993 = vpack.c.bf16 %v2991, %v2990
      %v2994 = vld [vmem:[%s61] sm:$0xf]
      %v2995 = vld [vmem:[%s61 + $0x4] sm:$0xf]
      %v2998 = vunpack.c.l.b16 %v2994
      %v2999 = vunpack.c.l.b16 %v2995
      %v3000 = vpack.c.b16 %v2999, %v2998
      %v3003 = vsel %vm2026, %v2992, 0
      %v3006 = vsel %vm2026, %v2993, 0
      %3008 = vmatpush.bf16.msra.mxu0 0
      %3009 = vmatpush.bf16.msra.mxu0 0
      %3010 = vmatpush.bf16.msra.mxu0 0
      %3011 = vmatpush.bf16.msra.mxu0 0
      %3012 = vmatpush.bf16.msra.mxu0 0
      %3013 = vmatpush.bf16.msra.mxu0 0
      %3014 = vmatpush.bf16.msra.mxu0 0
      %3015 = vmatpush.bf16.msra.mxu0 %v3000
      %3016 = vmatmul.bf16.gmra.mxu0 %v3003
      %v3017 = vpop.f32.mrf.mxu0
      %v3018 = vadd.f32 0.0, %v3017
      %v3019 = vpop.f32.mrf.mxu0
      %v3020 = vadd.f32 0.0, %v3019
      %3021 = vmatmul.bf16.gmra.mxu0 %v3006
      %v3022 = vpop.f32.mrf.mxu0
      %v3023 = vadd.f32 0.0, %v3022
      %v3024 = vpop.f32.mrf.mxu0
      %v3025 = vadd.f32 0.0, %v3024
      %3026 = vdwg.mxu0
      %3031 = vrot.lane.b32.xlu0 %v3018, 73
      %v3032 = vpop.permute.xlu0 %3031
      %3033 = vrot.lane.b32.xlu0 %v3020, 73
      %v3034 = vpop.permute.xlu0 %3033
      %3035 = vrot.lane.b32.xlu0 %v3023, 73
      %v3036 = vpop.permute.xlu0 %3035
      %3037 = vrot.lane.b32.xlu0 %v3025, 73
      %v3038 = vpop.permute.xlu0 %3037
      %3043 = vrot.lane.b32.xlu0 %v3018, 9
      %v3044 = vpop.permute.xlu0 %3043
      %3045 = vrot.lane.b32.xlu0 %v3020, 9
      %v3046 = vpop.permute.xlu0 %3045
      %3047 = vrot.lane.b32.xlu0 %v3023, 9
      %v3048 = vpop.permute.xlu0 %3047
      %3049 = vrot.lane.b32.xlu0 %v3025, 9
      %v3050 = vpop.permute.xlu0 %3049
      %v3055 = vsel %vm1649, %v3032, %v3044
      %v3056 = vsel %vm1649, %v3034, %v3046
      %v3057 = vsel %vm1649, %v3036, %v3048
      %v3058 = vsel %vm1649, %v3038, %v3050
      %v3059 = vmul.f32 %v3055, %v1651
      %v3060 = vmul.f32 %v3056, %v1651
      %v3061 = vmul.f32 %v3057, %v1651
      %v3062 = vmul.f32 %v3058, %v1651
      %v3063 = vpack.c.bf16 %v3059, %v3059
      %v3064 = vpack.c.bf16 %v3060, %v3060
      %v3065 = vpack.c.bf16 %v3061, %v3061
      %v3066 = vpack.c.bf16 %v3062, %v3062
      %3067 = vrot.lane.b32.xlu0 %v3018, 72
      %v3068 = vpop.permute.xlu0 %3067
      %3069 = vrot.lane.b32.xlu0 %v3020, 72
      %v3070 = vpop.permute.xlu0 %3069
      %3071 = vrot.lane.b32.xlu0 %v3023, 72
      %v3072 = vpop.permute.xlu0 %3071
      %3073 = vrot.lane.b32.xlu0 %v3025, 72
      %v3074 = vpop.permute.xlu0 %3073
      %3079 = vrot.lane.b32.xlu0 %v3018, 8
      %v3080 = vpop.permute.xlu0 %3079
      %3081 = vrot.lane.b32.xlu0 %v3020, 8
      %v3082 = vpop.permute.xlu0 %3081
      %3083 = vrot.lane.b32.xlu0 %v3023, 8
      %v3084 = vpop.permute.xlu0 %3083
      %3085 = vrot.lane.b32.xlu0 %v3025, 8
      %v3086 = vpop.permute.xlu0 %3085
      %v3091 = vsel %vm1660, %v3068, %v3080
      %v3092 = vsel %vm1660, %v3070, %v3082
      %v3093 = vsel %vm1660, %v3072, %v3084
      %v3094 = vsel %vm1660, %v3074, %v3086
      %v3095 = vmul.f32 %v3091, %v1662
      %v3096 = vmul.f32 %v3092, %v1662
      %v3097 = vmul.f32 %v3093, %v1662
      %v3098 = vmul.f32 %v3094, %v1662
      %v3099 = vpack.c.bf16 %v3095, %v3095
      %v3100 = vpack.c.bf16 %v3096, %v3096
      %v3101 = vpack.c.bf16 %v3097, %v3097
      %v3102 = vpack.c.bf16 %v3098, %v3098
      %3103 = vrot.lane.b32.xlu0 %v3018, 71
      %v3104 = vpop.permute.xlu0 %3103
      %3105 = vrot.lane.b32.xlu0 %v3020, 71
      %v3106 = vpop.permute.xlu0 %3105
      %3107 = vrot.lane.b32.xlu0 %v3023, 71
      %v3108 = vpop.permute.xlu0 %3107
      %3109 = vrot.lane.b32.xlu0 %v3025, 71
      %v3110 = vpop.permute.xlu0 %3109
      %3115 = vrot.lane.b32.xlu0 %v3018, 7
      %v3116 = vpop.permute.xlu0 %3115
      %3117 = vrot.lane.b32.xlu0 %v3020, 7
      %v3118 = vpop.permute.xlu0 %3117
      %3119 = vrot.lane.b32.xlu0 %v3023, 7
      %v3120 = vpop.permute.xlu0 %3119
      %3121 = vrot.lane.b32.xlu0 %v3025, 7
      %v3122 = vpop.permute.xlu0 %3121
      %v3127 = vsel %vm1671, %v3104, %v3116
      %v3128 = vsel %vm1671, %v3106, %v3118
      %v3129 = vsel %vm1671, %v3108, %v3120
      %v3130 = vsel %vm1671, %v3110, %v3122
      %v3131 = vmul.f32 %v3127, %v1673
      %v3132 = vmul.f32 %v3128, %v1673
      %v3133 = vmul.f32 %v3129, %v1673
      %v3134 = vmul.f32 %v3130, %v1673
      %v3135 = vpack.c.bf16 %v3131, %v3131
      %v3136 = vpack.c.bf16 %v3132, %v3132
      %v3137 = vpack.c.bf16 %v3133, %v3133
      %v3138 = vpack.c.bf16 %v3134, %v3134
      %3139 = vrot.lane.b32.xlu0 %v3018, 65
      %v3140 = vpop.permute.xlu0 %3139
      %3141 = vrot.lane.b32.xlu0 %v3020, 65
      %v3142 = vpop.permute.xlu0 %3141
      %3143 = vrot.lane.b32.xlu0 %v3023, 65
      %v3144 = vpop.permute.xlu0 %3143
      %3145 = vrot.lane.b32.xlu0 %v3025, 65
      %v3146 = vpop.permute.xlu0 %3145
      %3151 = vrot.lane.b32.xlu0 %v3018, 1
      %v3152 = vpop.permute.xlu0 %3151
      %3153 = vrot.lane.b32.xlu0 %v3020, 1
      %v3154 = vpop.permute.xlu0 %3153
      %3155 = vrot.lane.b32.xlu0 %v3023, 1
      %v3156 = vpop.permute.xlu0 %3155
      %3157 = vrot.lane.b32.xlu0 %v3025, 1
      %v3158 = vpop.permute.xlu0 %3157
      %v3163 = vsel %vm1682, %v3140, %v3152
      %v3164 = vsel %vm1682, %v3142, %v3154
      %v3165 = vsel %vm1682, %v3144, %v3156
      %v3166 = vsel %vm1682, %v3146, %v3158
      %v3167 = vmul.f32 %v3163, %v1684
      %v3168 = vmul.f32 %v3164, %v1684
      %v3169 = vmul.f32 %v3165, %v1684
      %v3170 = vmul.f32 %v3166, %v1684
      %v3171 = vpack.c.bf16 %v3167, %v3167
      %v3172 = vpack.c.bf16 %v3168, %v3168
      %v3173 = vpack.c.bf16 %v3169, %v3169
      %v3174 = vpack.c.bf16 %v3170, %v3170
      %v3175 = vpack.c.bf16 %v3018, %v3018
      %v3176 = vpack.c.bf16 %v3020, %v3020
      %v3177 = vpack.c.bf16 %v3023, %v3023
      %v3178 = vpack.c.bf16 %v3025, %v3025
      %3179 = vrot.lane.b32.xlu0 %v3018, 127
      %v3180 = vpop.permute.xlu0 %3179
      %3181 = vrot.lane.b32.xlu0 %v3020, 127
      %v3182 = vpop.permute.xlu0 %3181
      %3183 = vrot.lane.b32.xlu0 %v3023, 127
      %v3184 = vpop.permute.xlu0 %3183
      %3185 = vrot.lane.b32.xlu0 %v3025, 127
      %v3186 = vpop.permute.xlu0 %3185
      %3191 = vrot.lane.b32.xlu0 %v3018, 63
      %v3192 = vpop.permute.xlu0 %3191
      %3193 = vrot.lane.b32.xlu0 %v3020, 63
      %v3194 = vpop.permute.xlu0 %3193
      %3195 = vrot.lane.b32.xlu0 %v3023, 63
      %v3196 = vpop.permute.xlu0 %3195
      %3197 = vrot.lane.b32.xlu0 %v3025, 63
      %v3198 = vpop.permute.xlu0 %3197
      %v3203 = vsel %vm1694, %v3180, %v3192
      %v3204 = vsel %vm1694, %v3182, %v3194
      %v3205 = vsel %vm1694, %v3184, %v3196
      %v3206 = vsel %vm1694, %v3186, %v3198
      %v3207 = vmul.f32 %v3203, %v1696
      %v3208 = vmul.f32 %v3204, %v1696
      %v3209 = vmul.f32 %v3205, %v1696
      %v3210 = vmul.f32 %v3206, %v1696
      %v3211 = vpack.c.bf16 %v3207, %v3207
      %v3212 = vpack.c.bf16 %v3208, %v3208
      %v3213 = vpack.c.bf16 %v3209, %v3209
      %v3214 = vpack.c.bf16 %v3210, %v3210
      %3215 = vrot.lane.b32.xlu0 %v3018, 121
      %v3216 = vpop.permute.xlu0 %3215
      %3217 = vrot.lane.b32.xlu0 %v3020, 121
      %v3218 = vpop.permute.xlu0 %3217
      %3219 = vrot.lane.b32.xlu0 %v3023, 121
      %v3220 = vpop.permute.xlu0 %3219
      %3221 = vrot.lane.b32.xlu0 %v3025, 121
      %v3222 = vpop.permute.xlu0 %3221
      %3227 = vrot.lane.b32.xlu0 %v3018, 57
      %v3228 = vpop.permute.xlu0 %3227
      %3229 = vrot.lane.b32.xlu0 %v3020, 57
      %v3230 = vpop.permute.xlu0 %3229
      %3231 = vrot.lane.b32.xlu0 %v3023, 57
      %v3232 = vpop.permute.xlu0 %3231
      %3233 = vrot.lane.b32.xlu0 %v3025, 57
      %v3234 = vpop.permute.xlu0 %3233
      %v3239 = vsel %vm1705, %v3216, %v3228
      %v3240 = vsel %vm1705, %v3218, %v3230
      %v3241 = vsel %vm1705, %v3220, %v3232
      %v3242 = vsel %vm1705, %v3222, %v3234
      %v3243 = vmul.f32 %v3239, %v1707
      %v3244 = vmul.f32 %v3240, %v1707
      %v3245 = vmul.f32 %v3241, %v1707
      %v3246 = vmul.f32 %v3242, %v1707
      %v3247 = vpack.c.bf16 %v3243, %v3243
      %v3248 = vpack.c.bf16 %v3244, %v3244
      %v3249 = vpack.c.bf16 %v3245, %v3245
      %v3250 = vpack.c.bf16 %v3246, %v3246
      %3251 = vrot.lane.b32.xlu0 %v3018, 120
      %v3252 = vpop.permute.xlu0 %3251
      %3253 = vrot.lane.b32.xlu0 %v3020, 120
      %v3254 = vpop.permute.xlu0 %3253
      %3255 = vrot.lane.b32.xlu0 %v3023, 120
      %v3256 = vpop.permute.xlu0 %3255
      %3257 = vrot.lane.b32.xlu0 %v3025, 120
      %v3258 = vpop.permute.xlu0 %3257
      %3263 = vrot.lane.b32.xlu0 %v3018, 56
      %v3264 = vpop.permute.xlu0 %3263
      %3265 = vrot.lane.b32.xlu0 %v3020, 56
      %v3266 = vpop.permute.xlu0 %3265
      %3267 = vrot.lane.b32.xlu0 %v3023, 56
      %v3268 = vpop.permute.xlu0 %3267
      %3269 = vrot.lane.b32.xlu0 %v3025, 56
      %v3270 = vpop.permute.xlu0 %3269
      %v3275 = vsel %vm1716, %v3252, %v3264
      %v3276 = vsel %vm1716, %v3254, %v3266
      %v3277 = vsel %vm1716, %v3256, %v3268
      %v3278 = vsel %vm1716, %v3258, %v3270
      %v3279 = vmul.f32 %v3275, %v1718
      %v3280 = vmul.f32 %v3276, %v1718
      %v3281 = vmul.f32 %v3277, %v1718
      %v3282 = vmul.f32 %v3278, %v1718
      %v3283 = vpack.c.bf16 %v3279, %v3279
      %v3284 = vpack.c.bf16 %v3280, %v3280
      %v3285 = vpack.c.bf16 %v3281, %v3281
      %v3286 = vpack.c.bf16 %v3282, %v3282
      %3287 = vrot.lane.b32.xlu0 %v3018, 119
      %v3288 = vpop.permute.xlu0 %3287
      %3289 = vrot.lane.b32.xlu0 %v3020, 119
      %v3290 = vpop.permute.xlu0 %3289
      %3291 = vrot.lane.b32.xlu0 %v3023, 119
      %v3292 = vpop.permute.xlu0 %3291
      %3293 = vrot.lane.b32.xlu0 %v3025, 119
      %v3294 = vpop.permute.xlu0 %3293
      %3299 = vrot.lane.b32.xlu0 %v3018, 55
      %v3300 = vpop.permute.xlu0 %3299
      %3301 = vrot.lane.b32.xlu0 %v3020, 55
      %v3302 = vpop.permute.xlu0 %3301
      %3303 = vrot.lane.b32.xlu0 %v3023, 55
      %v3304 = vpop.permute.xlu0 %3303
      %3305 = vrot.lane.b32.xlu0 %v3025, 55
      %v3306 = vpop.permute.xlu0 %3305
      %v3311 = vsel %vm1727, %v3288, %v3300
      %v3312 = vsel %vm1727, %v3290, %v3302
      %v3313 = vsel %vm1727, %v3292, %v3304
      %v3314 = vsel %vm1727, %v3294, %v3306
      %v3315 = vmul.f32 %v3311, %v1729
      %v3316 = vmul.f32 %v3312, %v1729
      %v3317 = vmul.f32 %v3313, %v1729
      %v3318 = vmul.f32 %v3314, %v1729
      %v3319 = vpack.c.bf16 %v3315, %v3315
      %v3320 = vpack.c.bf16 %v3316, %v3316
      %v3321 = vpack.c.bf16 %v3317, %v3317
      %v3322 = vpack.c.bf16 %v3318, %v3318
      %v3327 = vunpack.c.l.b16 %v3063
      %v3328 = vunpack.c.l.b16 %v3064
      %v3329 = vunpack.c.l.b16 %v3065
      %v3330 = vunpack.c.l.b16 %v3066
      %v3331 = vpack.c.b16 %v3328, %v3327
      %v3332 = vpack.c.b16 %v3330, %v3329
      %v3339 = vunpack.c.l.b16 %v3099
      %v3340 = vunpack.c.l.b16 %v3100
      %v3341 = vunpack.c.l.b16 %v3101
      %v3342 = vunpack.c.l.b16 %v3102
      %v3343 = vpack.c.b16 %v3340, %v3339
      %v3344 = vpack.c.b16 %v3342, %v3341
      %v3351 = vunpack.c.l.b16 %v3135
      %v3352 = vunpack.c.l.b16 %v3136
      %v3353 = vunpack.c.l.b16 %v3137
      %v3354 = vunpack.c.l.b16 %v3138
      %v3355 = vpack.c.b16 %v3352, %v3351
      %v3356 = vpack.c.b16 %v3354, %v3353
      %v3363 = vunpack.c.l.b16 %v3171
      %v3364 = vunpack.c.l.b16 %v3172
      %v3365 = vunpack.c.l.b16 %v3173
      %v3366 = vunpack.c.l.b16 %v3174
      %v3367 = vpack.c.b16 %v3364, %v3363
      %v3368 = vpack.c.b16 %v3366, %v3365
      %v3375 = vunpack.c.l.b16 %v3175
      %v3376 = vunpack.c.l.b16 %v3176
      %v3377 = vunpack.c.l.b16 %v3177
      %v3378 = vunpack.c.l.b16 %v3178
      %v3379 = vpack.c.b16 %v3376, %v3375
      %v3380 = vpack.c.b16 %v3378, %v3377
      %v3387 = vunpack.c.l.b16 %v3211
      %v3388 = vunpack.c.l.b16 %v3212
      %v3389 = vunpack.c.l.b16 %v3213
      %v3390 = vunpack.c.l.b16 %v3214
      %v3391 = vpack.c.b16 %v3388, %v3387
      %v3392 = vpack.c.b16 %v3390, %v3389
      %v3399 = vunpack.c.l.b16 %v3247
      %v3400 = vunpack.c.l.b16 %v3248
      %v3401 = vunpack.c.l.b16 %v3249
      %v3402 = vunpack.c.l.b16 %v3250
      %v3403 = vpack.c.b16 %v3400, %v3399
      %v3404 = vpack.c.b16 %v3402, %v3401
      %v3411 = vunpack.c.l.b16 %v3283
      %v3412 = vunpack.c.l.b16 %v3284
      %v3413 = vunpack.c.l.b16 %v3285
      %v3414 = vunpack.c.l.b16 %v3286
      %v3415 = vpack.c.b16 %v3412, %v3411
      %v3416 = vpack.c.b16 %v3414, %v3413
      %v3423 = vunpack.c.l.b16 %v3319
      %v3424 = vunpack.c.l.b16 %v3320
      %v3425 = vunpack.c.l.b16 %v3321
      %v3426 = vunpack.c.l.b16 %v3322
      %v3427 = vpack.c.b16 %v3424, %v3423
      %v3428 = vpack.c.b16 %v3426, %v3425
      %v3431 = vld [vmem:[%s27] sm:$0xff]
      %v3432 = vld [vmem:[%s27 + $0x8] sm:$0xf]
      %v3433 = vld [vmem:[%s27 + $0xc] sm:$0xff]
      %v3434 = vld [vmem:[%s27 + $0x14] sm:$0xf]
      %3435 = vrot.lane.b32.xlu0 %v2058, 73
      %v3436 = vpop.permute.xlu0 %3435
      %3437 = vrot.lane.b32.xlu0 %v2059, 73
      %v3438 = vpop.permute.xlu0 %3437
      %3441 = vrot.lane.b32.xlu0 %v2058, 9
      %v3442 = vpop.permute.xlu0 %3441
      %3443 = vrot.lane.b32.xlu0 %v2059, 9
      %v3444 = vpop.permute.xlu0 %3443
      %v3447 = vsel %vm1649, %v3436, %v3442
      %v3448 = vsel %vm1649, %v3438, %v3444
      %v3449 = vmul.f32 %v3447, %v1651
      %v3450 = vmul.f32 %v3448, %v1651
      %v3451 = vpack.c.bf16 %v3449, %v3449
      %v3452 = vpack.c.bf16 %v3450, %v3450
      %3453 = vrot.lane.b32.xlu0 %v2058, 72
      %v3454 = vpop.permute.xlu0 %3453
      %3455 = vrot.lane.b32.xlu0 %v2059, 72
      %v3456 = vpop.permute.xlu0 %3455
      %3459 = vrot.lane.b32.xlu0 %v2058, 8
      %v3460 = vpop.permute.xlu0 %3459
      %3461 = vrot.lane.b32.xlu0 %v2059, 8
      %v3462 = vpop.permute.xlu0 %3461
      %v3465 = vsel %vm1660, %v3454, %v3460
      %v3466 = vsel %vm1660, %v3456, %v3462
      %v3467 = vmul.f32 %v3465, %v1662
      %v3468 = vmul.f32 %v3466, %v1662
      %v3469 = vpack.c.bf16 %v3467, %v3467
      %v3470 = vpack.c.bf16 %v3468, %v3468
      %3471 = vrot.lane.b32.xlu0 %v2058, 71
      %v3472 = vpop.permute.xlu0 %3471
      %3473 = vrot.lane.b32.xlu0 %v2059, 71
      %v3474 = vpop.permute.xlu0 %3473
      %3477 = vrot.lane.b32.xlu0 %v2058, 7
      %v3478 = vpop.permute.xlu0 %3477
      %3479 = vrot.lane.b32.xlu0 %v2059, 7
      %v3480 = vpop.permute.xlu0 %3479
      %v3483 = vsel %vm1671, %v3472, %v3478
      %v3484 = vsel %vm1671, %v3474, %v3480
      %v3485 = vmul.f32 %v3483, %v1673
      %v3486 = vmul.f32 %v3484, %v1673
      %v3487 = vpack.c.bf16 %v3485, %v3485
      %v3488 = vpack.c.bf16 %v3486, %v3486
      %3489 = vrot.lane.b32.xlu0 %v2058, 65
      %v3490 = vpop.permute.xlu0 %3489
      %3491 = vrot.lane.b32.xlu0 %v2059, 65
      %v3492 = vpop.permute.xlu0 %3491
      %3495 = vrot.lane.b32.xlu0 %v2058, 1
      %v3496 = vpop.permute.xlu0 %3495
      %3497 = vrot.lane.b32.xlu0 %v2059, 1
      %v3498 = vpop.permute.xlu0 %3497
      %v3501 = vsel %vm1682, %v3490, %v3496
      %v3502 = vsel %vm1682, %v3492, %v3498
      %v3503 = vmul.f32 %v3501, %v1684
      %v3504 = vmul.f32 %v3502, %v1684
      %v3505 = vpack.c.bf16 %v3503, %v3503
      %v3506 = vpack.c.bf16 %v3504, %v3504
      %v3507 = vpack.c.bf16 %v2058, %v2058
      %v3508 = vpack.c.bf16 %v2059, %v2059
      %v3509 = vmul.f32 %v2074, %v1696
      %v3510 = vmul.f32 %v2075, %v1696
      %v3511 = vpack.c.bf16 %v3509, %v3509
      %v3512 = vpack.c.bf16 %v3510, %v3510
      %3513 = vrot.lane.b32.xlu0 %v2058, 121
      %v3514 = vpop.permute.xlu0 %3513
      %3515 = vrot.lane.b32.xlu0 %v2059, 121
      %v3516 = vpop.permute.xlu0 %3515
      %3519 = vrot.lane.b32.xlu0 %v2058, 57
      %v3520 = vpop.permute.xlu0 %3519
      %3521 = vrot.lane.b32.xlu0 %v2059, 57
      %v3522 = vpop.permute.xlu0 %3521
      %v3525 = vsel %vm1705, %v3514, %v3520
      %v3526 = vsel %vm1705, %v3516, %v3522
      %v3527 = vmul.f32 %v3525, %v1707
      %v3528 = vmul.f32 %v3526, %v1707
      %v3529 = vpack.c.bf16 %v3527, %v3527
      %v3530 = vpack.c.bf16 %v3528, %v3528
      %3531 = vrot.lane.b32.xlu0 %v2058, 120
      %v3532 = vpop.permute.xlu0 %3531
      %3533 = vrot.lane.b32.xlu0 %v2059, 120
      %v3534 = vpop.permute.xlu0 %3533
      %3537 = vrot.lane.b32.xlu0 %v2058, 56
      %v3538 = vpop.permute.xlu0 %3537
      %3539 = vrot.lane.b32.xlu0 %v2059, 56
      %v3540 = vpop.permute.xlu0 %3539
      %v3543 = vsel %vm1716, %v3532, %v3538
      %v3544 = vsel %vm1716, %v3534, %v3540
      %v3545 = vmul.f32 %v3543, %v1718
      %v3546 = vmul.f32 %v3544, %v1718
      %v3547 = vpack.c.bf16 %v3545, %v3545
      %v3548 = vpack.c.bf16 %v3546, %v3546
      %3549 = vrot.lane.b32.xlu0 %v2058, 119
      %v3550 = vpop.permute.xlu0 %3549
      %3551 = vrot.lane.b32.xlu0 %v2059, 119
      %v3552 = vpop.permute.xlu0 %3551
      %3555 = vrot.lane.b32.xlu0 %v2058, 55
      %v3556 = vpop.permute.xlu0 %3555
      %3557 = vrot.lane.b32.xlu0 %v2059, 55
      %v3558 = vpop.permute.xlu0 %3557
      %v3561 = vsel %vm1727, %v3550, %v3556
      %v3562 = vsel %vm1727, %v3552, %v3558
      %v3563 = vmul.f32 %v3561, %v1729
      %v3564 = vmul.f32 %v3562, %v1729
      %v3565 = vpack.c.bf16 %v3563, %v3563
      %v3566 = vpack.c.bf16 %v3564, %v3564
      %v3569 = vunpack.c.l.b16 %v3451
      %v3570 = vunpack.c.l.b16 %v3452
      %v3571 = vpack.c.b16 %v3570, %v3569
      %v3575 = vunpack.c.l.b16 %v3469
      %v3576 = vunpack.c.l.b16 %v3470
      %v3577 = vpack.c.b16 %v3576, %v3575
      %v3581 = vunpack.c.l.b16 %v3487
      %v3582 = vunpack.c.l.b16 %v3488
      %v3583 = vpack.c.b16 %v3582, %v3581
      %v3587 = vunpack.c.l.b16 %v3505
      %v3588 = vunpack.c.l.b16 %v3506
      %v3589 = vpack.c.b16 %v3588, %v3587
      %v3593 = vunpack.c.l.b16 %v3507
      %v3594 = vunpack.c.l.b16 %v3508
      %v3595 = vpack.c.b16 %v3594, %v3593
      %v3599 = vunpack.c.l.b16 %v3511
      %v3600 = vunpack.c.l.b16 %v3512
      %v3601 = vpack.c.b16 %v3600, %v3599
      %v3605 = vunpack.c.l.b16 %v3529
      %v3606 = vunpack.c.l.b16 %v3530
      %v3607 = vpack.c.b16 %v3606, %v3605
      %v3611 = vunpack.c.l.b16 %v3547
      %v3612 = vunpack.c.l.b16 %v3548
      %v3613 = vpack.c.b16 %v3612, %v3611
      %v3617 = vunpack.c.l.b16 %v3565
      %v3618 = vunpack.c.l.b16 %v3566
      %v3619 = vpack.c.b16 %v3618, %v3617
      %v3621 = vld [vmem:[%s29] sm:$0xff]
      %v3622 = vld [vmem:[%s29 + $0x8] sm:$0xff]
      %v3625 = vunpack.c.l.b16 %v3621
      %v3626 = vunpack.c.h.b16 %v3621
      %v3627 = vunpack.c.l.b16 %v3622
      %v3628 = vunpack.c.h.b16 %v3622
      %v3629 = vpack.c.b16 %v3627, %v3625
      %v3630 = vpack.c.b16 %v3628, %v3626
      %v3633 = vsel %vm2026, %v3630, 0
      %3635 = vmatpush.bf16.msra.mxu0 %v3613
      %3636 = vmatpush.bf16.msra.mxu0 %v3607
      %3637 = vmatpush.bf16.msra.mxu0 %v3601
      %3638 = vmatpush.bf16.msra.mxu0 %v3595
      %3639 = vmatpush.bf16.msra.mxu0 %v3589
      %3640 = vmatpush.bf16.msra.mxu0 %v3583
      %3641 = vmatpush.bf16.msra.mxu0 %v3577
      %3642 = vmatpush.bf16.msra.mxu0 %v3571
      %3643 = vmatmul.bf16.gmra.mxu0 %v3629
      %v3644 = vpop.f32.mrf.mxu0
      %v3645 = vadd.f32 0.0, %v3644
      %v3646 = vpop.f32.mrf.mxu0
      %v3647 = vadd.f32 0.0, %v3646
      %3648 = vdwg.mxu0
      %3649 = vmatpush.bf16.msra.mxu0 0
      %3650 = vmatpush.bf16.msra.mxu0 0
      %3651 = vmatpush.bf16.msra.mxu0 0
      %3652 = vmatpush.bf16.msra.mxu0 0
      %3653 = vmatpush.bf16.msra.mxu0 0
      %3654 = vmatpush.bf16.msra.mxu0 0
      %3655 = vmatpush.bf16.msra.mxu0 0
      %3656 = vmatpush.bf16.msra.mxu0 %v3619
      %3657 = vmatmul.bf16.gmra.mxu0 %v3633
      %v3658 = vpop.f32.mrf.mxu0
      %v3659 = vadd.f32 %v3645, %v3658
      %v3660 = vpop.f32.mrf.mxu0
      %v3661 = vadd.f32 %v3647, %v3660
      %3662 = vdwg.mxu0
      %v3667 = vunpack.c.l.b16 %v3431
      %v3668 = vunpack.c.h.b16 %v3431
      %v3669 = vunpack.c.l.b16 %v3432
      %v3670 = vunpack.c.l.b16 %v3433
      %v3671 = vunpack.c.h.b16 %v3433
      %v3672 = vunpack.c.l.b16 %v3434
      %v3673 = vpack.c.b16 %v3670, %v3667
      %v3674 = vpack.c.b16 %v3671, %v3668
      %v3675 = vpack.c.b16 %v3672, %v3669
      %v3679 = vsel %vm2924, %v3675, 0
      %3681 = vmatpush.bf16.msra.mxu0 %v3368
      %3682 = vmatpush.bf16.msra.mxu0 %v3367
      %3683 = vmatpush.bf16.msra.mxu0 %v3356
      %3684 = vmatpush.bf16.msra.mxu0 %v3355
      %3685 = vmatpush.bf16.msra.mxu0 %v3344
      %3686 = vmatpush.bf16.msra.mxu0 %v3343
      %3687 = vmatpush.bf16.msra.mxu0 %v3332
      %3688 = vmatpush.bf16.msra.mxu0 %v3331
      %3689 = vmatmul.bf16.gmra.mxu0 %v3673
      %v3690 = vpop.f32.mrf.mxu0
      %v3691 = vadd.f32 %v3659, %v3690
      %v3692 = vpop.f32.mrf.mxu0
      %v3693 = vadd.f32 %v3661, %v3692
      %3694 = vdwg.mxu0
      %3695 = vmatpush.bf16.msra.mxu0 %v3416
      %3696 = vmatpush.bf16.msra.mxu0 %v3415
      %3697 = vmatpush.bf16.msra.mxu0 %v3404
      %3698 = vmatpush.bf16.msra.mxu0 %v3403
      %3699 = vmatpush.bf16.msra.mxu0 %v3392
      %3700 = vmatpush.bf16.msra.mxu0 %v3391
      %3701 = vmatpush.bf16.msra.mxu0 %v3380
      %3702 = vmatpush.bf16.msra.mxu0 %v3379
      %3703 = vmatmul.bf16.gmra.mxu0 %v3674
      %v3704 = vpop.f32.mrf.mxu0
      %v3705 = vadd.f32 %v3691, %v3704
      %v3706 = vpop.f32.mrf.mxu0
      %v3707 = vadd.f32 %v3693, %v3706
      %3708 = vdwg.mxu0
      %3709 = vmatpush.bf16.msra.mxu0 0
      %3710 = vmatpush.bf16.msra.mxu0 0
      %3711 = vmatpush.bf16.msra.mxu0 0
      %3712 = vmatpush.bf16.msra.mxu0 0
      %3713 = vmatpush.bf16.msra.mxu0 0
      %3714 = vmatpush.bf16.msra.mxu0 0
      %3715 = vmatpush.bf16.msra.mxu0 %v3428
      %3716 = vmatpush.bf16.msra.mxu0 %v3427
      %3717 = vmatmul.bf16.gmra.mxu0 %v3679
      %v3718 = vpop.f32.mrf.mxu0
      %v3719 = vadd.f32 %v3705, %v3718
      %v3720 = vpop.f32.mrf.mxu0
      %v3721 = vadd.f32 %v3707, %v3720
      %3722 = vdwg.mxu0
      %v3723 = vld [vmem:[%s31] sm:$0xff]
      %v3724 = vld [vmem:[%s31 + $0x8] sm:$0xff]
      %3726 = vset.pattern.permute.xlu0 0
      %3727 = vperm.xlu0 %3726, %v3723
      %v3728 = vpop.permute.xlu0 %3727
      %3731 = vset.pattern.permute.xlu0 0
      %3732 = vperm.xlu0 %3731, %v3724
      %v3733 = vpop.permute.xlu0 %3732
      %v3735 = vadd.f32 %v3719, %v3728
      %v3736 = vadd.f32 %v3721, %v3733
      %v3737 = vmax.f32 %v3735, 0.0
      %v3738 = vmax.f32 %v3736, 0.0
      %3741 = vrot.lane.b32.xlu0 %v3737, 73
      %v3742 = vpop.permute.xlu0 %3741
      %3743 = vrot.lane.b32.xlu0 %v3738, 73
      %v3744 = vpop.permute.xlu0 %3743
      %3747 = vrot.lane.b32.xlu0 %v3737, 9
      %v3748 = vpop.permute.xlu0 %3747
      %3749 = vrot.lane.b32.xlu0 %v3738, 9
      %v3750 = vpop.permute.xlu0 %3749
      %v3753 = vsel %vm1649, %v3742, %v3748
      %v3754 = vsel %vm1649, %v3744, %v3750
      %v3755 = vmul.f32 %v3753, %v1651
      %v3756 = vmul.f32 %v3754, %v1651
      %v3757 = vpack.c.bf16 %v3755, %v3755
      %v3758 = vpack.c.bf16 %v3756, %v3756
      %3759 = vrot.lane.b32.xlu0 %v3737, 72
      %v3760 = vpop.permute.xlu0 %3759
      %3761 = vrot.lane.b32.xlu0 %v3738, 72
      %v3762 = vpop.permute.xlu0 %3761
      %3765 = vrot.lane.b32.xlu0 %v3737, 8
      %v3766 = vpop.permute.xlu0 %3765
      %3767 = vrot.lane.b32.xlu0 %v3738, 8
      %v3768 = vpop.permute.xlu0 %3767
      %v3771 = vsel %vm1660, %v3760, %v3766
      %v3772 = vsel %vm1660, %v3762, %v3768
      %v3773 = vmul.f32 %v3771, %v1662
      %v3774 = vmul.f32 %v3772, %v1662
      %v3775 = vpack.c.bf16 %v3773, %v3773
      %v3776 = vpack.c.bf16 %v3774, %v3774
      %3777 = vrot.lane.b32.xlu0 %v3737, 71
      %v3778 = vpop.permute.xlu0 %3777
      %3779 = vrot.lane.b32.xlu0 %v3738, 71
      %v3780 = vpop.permute.xlu0 %3779
      %3783 = vrot.lane.b32.xlu0 %v3737, 7
      %v3784 = vpop.permute.xlu0 %3783
      %3785 = vrot.lane.b32.xlu0 %v3738, 7
      %v3786 = vpop.permute.xlu0 %3785
      %v3789 = vsel %vm1671, %v3778, %v3784
      %v3790 = vsel %vm1671, %v3780, %v3786
      %v3791 = vmul.f32 %v3789, %v1673
      %v3792 = vmul.f32 %v3790, %v1673
      %v3793 = vpack.c.bf16 %v3791, %v3791
      %v3794 = vpack.c.bf16 %v3792, %v3792
      %3795 = vrot.lane.b32.xlu0 %v3737, 65
      %v3796 = vpop.permute.xlu0 %3795
      %3797 = vrot.lane.b32.xlu0 %v3738, 65
      %v3798 = vpop.permute.xlu0 %3797
      %3801 = vrot.lane.b32.xlu0 %v3737, 1
      %v3802 = vpop.permute.xlu0 %3801
      %3803 = vrot.lane.b32.xlu0 %v3738, 1
      %v3804 = vpop.permute.xlu0 %3803
      %v3807 = vsel %vm1682, %v3796, %v3802
      %v3808 = vsel %vm1682, %v3798, %v3804
      %v3809 = vmul.f32 %v3807, %v1684
      %v3810 = vmul.f32 %v3808, %v1684
      %v3811 = vpack.c.bf16 %v3809, %v3809
      %v3812 = vpack.c.bf16 %v3810, %v3810
      %v3813 = vpack.c.bf16 %v3737, %v3737
      %v3814 = vpack.c.bf16 %v3738, %v3738
      %3815 = vrot.lane.b32.xlu0 %v3737, 127
      %v3816 = vpop.permute.xlu0 %3815
      %3817 = vrot.lane.b32.xlu0 %v3738, 127
      %v3818 = vpop.permute.xlu0 %3817
      %3821 = vrot.lane.b32.xlu0 %v3737, 63
      %v3822 = vpop.permute.xlu0 %3821
      %3823 = vrot.lane.b32.xlu0 %v3738, 63
      %v3824 = vpop.permute.xlu0 %3823
      %v3827 = vsel %vm1694, %v3816, %v3822
      %v3828 = vsel %vm1694, %v3818, %v3824
      %v3829 = vmul.f32 %v3827, %v1696
      %v3830 = vmul.f32 %v3828, %v1696
      %v3831 = vpack.c.bf16 %v3829, %v3829
      %v3832 = vpack.c.bf16 %v3830, %v3830
      %3833 = vrot.lane.b32.xlu0 %v3737, 121
      %v3834 = vpop.permute.xlu0 %3833
      %3835 = vrot.lane.b32.xlu0 %v3738, 121
      %v3836 = vpop.permute.xlu0 %3835
      %3839 = vrot.lane.b32.xlu0 %v3737, 57
      %v3840 = vpop.permute.xlu0 %3839
      %3841 = vrot.lane.b32.xlu0 %v3738, 57
      %v3842 = vpop.permute.xlu0 %3841
      %v3845 = vsel %vm1705, %v3834, %v3840
      %v3846 = vsel %vm1705, %v3836, %v3842
      %v3847 = vmul.f32 %v3845, %v1707
      %v3848 = vmul.f32 %v3846, %v1707
      %v3849 = vpack.c.bf16 %v3847, %v3847
      %v3850 = vpack.c.bf16 %v3848, %v3848
      %3851 = vrot.lane.b32.xlu0 %v3737, 120
      %v3852 = vpop.permute.xlu0 %3851
      %3853 = vrot.lane.b32.xlu0 %v3738, 120
      %v3854 = vpop.permute.xlu0 %3853
      %3857 = vrot.lane.b32.xlu0 %v3737, 56
      %v3858 = vpop.permute.xlu0 %3857
      %3859 = vrot.lane.b32.xlu0 %v3738, 56
      %v3860 = vpop.permute.xlu0 %3859
      %v3863 = vsel %vm1716, %v3852, %v3858
      %v3864 = vsel %vm1716, %v3854, %v3860
      %v3865 = vmul.f32 %v3863, %v1718
      %v3866 = vmul.f32 %v3864, %v1718
      %v3867 = vpack.c.bf16 %v3865, %v3865
      %v3868 = vpack.c.bf16 %v3866, %v3866
      %3869 = vrot.lane.b32.xlu0 %v3737, 119
      %v3870 = vpop.permute.xlu0 %3869
      %3871 = vrot.lane.b32.xlu0 %v3738, 119
      %v3872 = vpop.permute.xlu0 %3871
      %3875 = vrot.lane.b32.xlu0 %v3737, 55
      %v3876 = vpop.permute.xlu0 %3875
      %3877 = vrot.lane.b32.xlu0 %v3738, 55
      %v3878 = vpop.permute.xlu0 %3877
      %v3881 = vsel %vm1727, %v3870, %v3876
      %v3882 = vsel %vm1727, %v3872, %v3878
      %v3883 = vmul.f32 %v3881, %v1729
      %v3884 = vmul.f32 %v3882, %v1729
      %v3885 = vpack.c.bf16 %v3883, %v3883
      %v3886 = vpack.c.bf16 %v3884, %v3884
      %v3889 = vunpack.c.l.b16 %v3757
      %v3890 = vunpack.c.l.b16 %v3758
      %v3891 = vpack.c.b16 %v3890, %v3889
      %v3895 = vunpack.c.l.b16 %v3775
      %v3896 = vunpack.c.l.b16 %v3776
      %v3897 = vpack.c.b16 %v3896, %v3895
      %v3901 = vunpack.c.l.b16 %v3793
      %v3902 = vunpack.c.l.b16 %v3794
      %v3903 = vpack.c.b16 %v3902, %v3901
      %v3907 = vunpack.c.l.b16 %v3811
      %v3908 = vunpack.c.l.b16 %v3812
      %v3909 = vpack.c.b16 %v3908, %v3907
      %v3913 = vunpack.c.l.b16 %v3813
      %v3914 = vunpack.c.l.b16 %v3814
      %v3915 = vpack.c.b16 %v3914, %v3913
      %v3919 = vunpack.c.l.b16 %v3831
      %v3920 = vunpack.c.l.b16 %v3832
      %v3921 = vpack.c.b16 %v3920, %v3919
      %v3925 = vunpack.c.l.b16 %v3849
      %v3926 = vunpack.c.l.b16 %v3850
      %v3927 = vpack.c.b16 %v3926, %v3925
      %v3931 = vunpack.c.l.b16 %v3867
      %v3932 = vunpack.c.l.b16 %v3868
      %v3933 = vpack.c.b16 %v3932, %v3931
      %v3937 = vunpack.c.l.b16 %v3885
      %v3938 = vunpack.c.l.b16 %v3886
      %v3939 = vpack.c.b16 %v3938, %v3937
      %v3941 = vld [vmem:[%s33] sm:$0xff]
      %v3942 = vld [vmem:[%s33 + $0x8] sm:$0xff]
      %v3943 = vld [vmem:[%s35] sm:$0xff]
      %v3944 = vld [vmem:[%s35 + $0x8] sm:$0xff]
      %3946 = vset.pattern.permute.xlu0 0
      %3947 = vperm.xlu0 %3946, %v3943
      %v3948 = vpop.permute.xlu0 %3947
      %3951 = vset.pattern.permute.xlu0 0
      %3952 = vperm.xlu0 %3951, %v3944
      %v3953 = vpop.permute.xlu0 %3952
      %v3957 = vunpack.c.l.b16 %v3941
      %v3958 = vunpack.c.h.b16 %v3941
      %v3959 = vunpack.c.l.b16 %v3942
      %v3960 = vunpack.c.h.b16 %v3942
      %v3961 = vpack.c.b16 %v3959, %v3957
      %v3962 = vpack.c.b16 %v3960, %v3958
      %v3965 = vsel %vm2026, %v3962, 0
      %3967 = vmatpush.bf16.msra.mxu0 %v3933
      %3968 = vmatpush.bf16.msra.mxu0 %v3927
      %3969 = vmatpush.bf16.msra.mxu0 %v3921
      %3970 = vmatpush.bf16.msra.mxu0 %v3915
      %3971 = vmatpush.bf16.msra.mxu0 %v3909
      %3972 = vmatpush.bf16.msra.mxu0 %v3903
      %3973 = vmatpush.bf16.msra.mxu0 %v3897
      %3974 = vmatpush.bf16.msra.mxu0 %v3891
      %3975 = vmatmul.bf16.gmra.mxu0 %v3961
      %v3976 = vpop.f32.mrf.mxu0
      %v3977 = vadd.f32 %v3948, %v3976
      %v3978 = vpop.f32.mrf.mxu0
      %v3979 = vadd.f32 %v3953, %v3978
      %3980 = vdwg.mxu0
      %3981 = vmatpush.bf16.msra.mxu0 0
      %3982 = vmatpush.bf16.msra.mxu0 0
      %3983 = vmatpush.bf16.msra.mxu0 0
      %3984 = vmatpush.bf16.msra.mxu0 0
      %3985 = vmatpush.bf16.msra.mxu0 0
      %3986 = vmatpush.bf16.msra.mxu0 0
      %3987 = vmatpush.bf16.msra.mxu0 0
      %3988 = vmatpush.bf16.msra.mxu0 %v3939
      %3989 = vmatmul.bf16.gmra.mxu0 %v3965
      %v3990 = vpop.f32.mrf.mxu0
      %v3991 = vadd.f32 %v3977, %v3990
      %v3992 = vpop.f32.mrf.mxu0
      %v3993 = vadd.f32 %v3979, %v3992
      %3994 = vdwg.mxu0
      %v3995 = vmax.f32 %v3991, 0.0
      %v3996 = vmax.f32 %v3993, 0.0
      %v3997 = vpack.c.bf16 %v3996, %v3995
      %v3998 = vld [vmem:[%s63] sm:$0xff]
      %v3999 = vld [vmem:[%s63 + $0x8] sm:$0xff]
      %v4000 = vld [vmem:[%s63 + $0x10] sm:$0xff]
      %v4001 = vld [vmem:[%s63 + $0x18] sm:$0xff]
      %v4002 = vld [vmem:[%s63 + $0x20] sm:$0xff]
      %v4003 = vld [vmem:[%s63 + $0x28] sm:$0xff]
      %v4004 = vld [vmem:[%s63 + $0x30] sm:$0xff]
      %v4005 = vld [vmem:[%s63 + $0x38] sm:$0xff]
      %v4014 = vunpack.c.l.b16 %v3998
      %v4015 = vunpack.c.h.b16 %v3998
      %v4016 = vunpack.c.l.b16 %v3999
      %v4017 = vunpack.c.h.b16 %v3999
      %v4018 = vunpack.c.l.b16 %v4000
      %v4019 = vunpack.c.h.b16 %v4000
      %v4020 = vunpack.c.l.b16 %v4001
      %v4021 = vunpack.c.h.b16 %v4001
      %v4022 = vunpack.c.l.b16 %v4002
      %v4023 = vunpack.c.h.b16 %v4002
      %v4024 = vunpack.c.l.b16 %v4003
      %v4025 = vunpack.c.h.b16 %v4003
      %v4026 = vunpack.c.l.b16 %v4004
      %v4027 = vunpack.c.h.b16 %v4004
      %v4028 = vunpack.c.l.b16 %v4005
      %v4029 = vunpack.c.h.b16 %v4005
      %v4030 = vpack.c.b16 %v4016, %v4014
      %v4031 = vpack.c.b16 %v4017, %v4015
      %v4032 = vpack.c.b16 %v4020, %v4018
      %v4033 = vpack.c.b16 %v4021, %v4019
      %v4034 = vpack.c.b16 %v4024, %v4022
      %v4035 = vpack.c.b16 %v4025, %v4023
      %v4036 = vpack.c.b16 %v4028, %v4026
      %v4037 = vpack.c.b16 %v4029, %v4027
      %v4047 = vsel %vm2129, %v3997, 0
      %4049 = vmatpush.bf16.msra.mxu0 0
      %4050 = vmatpush.bf16.msra.mxu0 0
      %4051 = vmatpush.bf16.msra.mxu0 0
      %4052 = vmatpush.bf16.msra.mxu0 0
      %4053 = vmatpush.bf16.msra.mxu0 %v4036
      %4054 = vmatpush.bf16.msra.mxu0 %v4034
      %4055 = vmatpush.bf16.msra.mxu0 %v4032
      %4056 = vmatpush.bf16.msra.mxu0 %v4030
      %4057 = vmatmul.bf16.gmra.mxu0 %v4047
      %v4058 = vpop.f32.mrf.mxu0
      %v4059 = vadd.f32 0.0, %v4058
      %v4060 = vpop.f32.mrf.mxu0
      %v4061 = vadd.f32 0.0, %v4060
      %4062 = vdwg.mxu0
      %4063 = vmatpush.bf16.msra.mxu0 0
      %4064 = vmatpush.bf16.msra.mxu0 0
      %4065 = vmatpush.bf16.msra.mxu0 0
      %4066 = vmatpush.bf16.msra.mxu0 0
      %4067 = vmatpush.bf16.msra.mxu0 %v4037
      %4068 = vmatpush.bf16.msra.mxu0 %v4035
      %4069 = vmatpush.bf16.msra.mxu0 %v4033
      %4070 = vmatpush.bf16.msra.mxu0 %v4031
      %4071 = vmatmul.bf16.gmra.mxu0 %v4047
      %v4072 = vpop.f32.mrf.mxu0
      %v4073 = vadd.f32 0.0, %v4072
      %v4074 = vpop.f32.mrf.mxu0
      %v4075 = vadd.f32 0.0, %v4074
      %4076 = vdwg.mxu0
      %4077 = vrot.lane.b32.xlu0 %v4059, 17
      %v4078 = vpop.permute.xlu0 %4077
      %4079 = vrot.lane.b32.xlu0 %v4061, 17
      %v4080 = vpop.permute.xlu0 %4079
      %4081 = vrot.lane.b32.xlu0 %v4073, 17
      %v4082 = vpop.permute.xlu0 %4081
      %4083 = vrot.lane.b32.xlu0 %v4075, 17
      %v4084 = vpop.permute.xlu0 %4083
      %v4085 = vsel %vm1009, %v4078, %v4082
      %v4086 = vsel %vm1009, %v4080, %v4084
      %v4087 = vsel %vm1009, %v4082, %v4078
      %v4088 = vsel %vm1009, %v4084, %v4080
      %v4089 = vmul.f32 %v4087, %v1012
      %v4090 = vmul.f32 %v4085, %v1013
      %v4091 = vmul.f32 %v4088, %v1012
      %v4092 = vmul.f32 %v4086, %v1013
      %v4093 = vpack.c.bf16 %v4090, %v4089
      %v4094 = vpack.c.bf16 %v4092, %v4091
      %4095 = vrot.lane.b32.xlu0 %v4059, 16
      %v4096 = vpop.permute.xlu0 %4095
      %4097 = vrot.lane.b32.xlu0 %v4061, 16
      %v4098 = vpop.permute.xlu0 %4097
      %4099 = vrot.lane.b32.xlu0 %v4073, 16
      %v4100 = vpop.permute.xlu0 %4099
      %4101 = vrot.lane.b32.xlu0 %v4075, 16
      %v4102 = vpop.permute.xlu0 %4101
      %v4103 = vsel %vm1026, %v4096, %v4100
      %v4104 = vsel %vm1026, %v4098, %v4102
      %v4105 = vsel %vm1026, %v4100, %v4096
      %v4106 = vsel %vm1026, %v4102, %v4098
      %v4107 = vmul.f32 %v4105, %v1029
      %v4108 = vmul.f32 %v4103, %v1030
      %v4109 = vmul.f32 %v4106, %v1029
      %v4110 = vmul.f32 %v4104, %v1030
      %v4111 = vpack.c.bf16 %v4108, %v4107
      %v4112 = vpack.c.bf16 %v4110, %v4109
      %4113 = vrot.lane.b32.xlu0 %v4059, 15
      %v4114 = vpop.permute.xlu0 %4113
      %4115 = vrot.lane.b32.xlu0 %v4061, 15
      %v4116 = vpop.permute.xlu0 %4115
      %4117 = vrot.lane.b32.xlu0 %v4073, 15
      %v4118 = vpop.permute.xlu0 %4117
      %4119 = vrot.lane.b32.xlu0 %v4075, 15
      %v4120 = vpop.permute.xlu0 %4119
      %v4121 = vsel %vm1043, %v4114, %v4118
      %v4122 = vsel %vm1043, %v4116, %v4120
      %v4123 = vsel %vm1043, %v4118, %v4114
      %v4124 = vsel %vm1043, %v4120, %v4116
      %v4125 = vmul.f32 %v4123, %v1046
      %v4126 = vmul.f32 %v4121, %v1047
      %v4127 = vmul.f32 %v4124, %v1046
      %v4128 = vmul.f32 %v4122, %v1047
      %v4129 = vpack.c.bf16 %v4126, %v4125
      %v4130 = vpack.c.bf16 %v4128, %v4127
      %4131 = vrot.lane.b32.xlu0 %v4059, 1
      %v4132 = vpop.permute.xlu0 %4131
      %4133 = vrot.lane.b32.xlu0 %v4061, 1
      %v4134 = vpop.permute.xlu0 %4133
      %4135 = vrot.lane.b32.xlu0 %v4073, 1
      %v4136 = vpop.permute.xlu0 %4135
      %4137 = vrot.lane.b32.xlu0 %v4075, 1
      %v4138 = vpop.permute.xlu0 %4137
      %v4139 = vsel %vm1060, %v4132, %v4136
      %v4140 = vsel %vm1060, %v4134, %v4138
      %v4141 = vsel %vm1060, %v4136, %v4132
      %v4142 = vsel %vm1060, %v4138, %v4134
      %v4143 = vmul.f32 %v4141, %v1063
      %v4144 = vmul.f32 %v4139, %v1064
      %v4145 = vmul.f32 %v4142, %v1063
      %v4146 = vmul.f32 %v4140, %v1064
      %v4147 = vpack.c.bf16 %v4144, %v4143
      %v4148 = vpack.c.bf16 %v4146, %v4145
      %v4149 = vpack.c.bf16 %v4073, %v4059
      %v4150 = vpack.c.bf16 %v4075, %v4061
      %4151 = vrot.lane.b32.xlu0 %v4059, 127
      %v4152 = vpop.permute.xlu0 %4151
      %4153 = vrot.lane.b32.xlu0 %v4061, 127
      %v4154 = vpop.permute.xlu0 %4153
      %4155 = vrot.lane.b32.xlu0 %v4073, 127
      %v4156 = vpop.permute.xlu0 %4155
      %4157 = vrot.lane.b32.xlu0 %v4075, 127
      %v4158 = vpop.permute.xlu0 %4157
      %v4159 = vsel %vm1083, %v4152, %v4156
      %v4160 = vsel %vm1083, %v4154, %v4158
      %v4161 = vsel %vm1083, %v4156, %v4152
      %v4162 = vsel %vm1083, %v4158, %v4154
      %v4163 = vmul.f32 %v4159, %v1086
      %v4164 = vmul.f32 %v4161, %v1087
      %v4165 = vmul.f32 %v4160, %v1086
      %v4166 = vmul.f32 %v4162, %v1087
      %v4167 = vpack.c.bf16 %v4164, %v4163
      %v4168 = vpack.c.bf16 %v4166, %v4165
      %4169 = vrot.lane.b32.xlu0 %v4059, 113
      %v4170 = vpop.permute.xlu0 %4169
      %4171 = vrot.lane.b32.xlu0 %v4061, 113
      %v4172 = vpop.permute.xlu0 %4171
      %4173 = vrot.lane.b32.xlu0 %v4073, 113
      %v4174 = vpop.permute.xlu0 %4173
      %4175 = vrot.lane.b32.xlu0 %v4075, 113
      %v4176 = vpop.permute.xlu0 %4175
      %v4177 = vsel %vm1100, %v4170, %v4174
      %v4178 = vsel %vm1100, %v4172, %v4176
      %v4179 = vsel %vm1100, %v4174, %v4170
      %v4180 = vsel %vm1100, %v4176, %v4172
      %v4181 = vmul.f32 %v4177, %v1103
      %v4182 = vmul.f32 %v4179, %v1104
      %v4183 = vmul.f32 %v4178, %v1103
      %v4184 = vmul.f32 %v4180, %v1104
      %v4185 = vpack.c.bf16 %v4182, %v4181
      %v4186 = vpack.c.bf16 %v4184, %v4183
      %4187 = vrot.lane.b32.xlu0 %v4059, 112
      %v4188 = vpop.permute.xlu0 %4187
      %4189 = vrot.lane.b32.xlu0 %v4061, 112
      %v4190 = vpop.permute.xlu0 %4189
      %4191 = vrot.lane.b32.xlu0 %v4073, 112
      %v4192 = vpop.permute.xlu0 %4191
      %4193 = vrot.lane.b32.xlu0 %v4075, 112
      %v4194 = vpop.permute.xlu0 %4193
      %v4195 = vsel %vm1117, %v4188, %v4192
      %v4196 = vsel %vm1117, %v4190, %v4194
      %v4197 = vsel %vm1117, %v4192, %v4188
      %v4198 = vsel %vm1117, %v4194, %v4190
      %v4199 = vmul.f32 %v4195, %v1120
      %v4200 = vmul.f32 %v4197, %v1121
      %v4201 = vmul.f32 %v4196, %v1120
      %v4202 = vmul.f32 %v4198, %v1121
      %v4203 = vpack.c.bf16 %v4200, %v4199
      %v4204 = vpack.c.bf16 %v4202, %v4201
      %4205 = vrot.lane.b32.xlu0 %v4059, 111
      %v4206 = vpop.permute.xlu0 %4205
      %4207 = vrot.lane.b32.xlu0 %v4061, 111
      %v4208 = vpop.permute.xlu0 %4207
      %4209 = vrot.lane.b32.xlu0 %v4073, 111
      %v4210 = vpop.permute.xlu0 %4209
      %4211 = vrot.lane.b32.xlu0 %v4075, 111
      %v4212 = vpop.permute.xlu0 %4211
      %v4213 = vsel %vm1134, %v4206, %v4210
      %v4214 = vsel %vm1134, %v4208, %v4212
      %v4215 = vsel %vm1134, %v4210, %v4206
      %v4216 = vsel %vm1134, %v4212, %v4208
      %v4217 = vmul.f32 %v4213, %v1137
      %v4218 = vmul.f32 %v4215, %v1138
      %v4219 = vmul.f32 %v4214, %v1137
      %v4220 = vmul.f32 %v4216, %v1138
      %v4221 = vpack.c.bf16 %v4218, %v4217
      %v4222 = vpack.c.bf16 %v4220, %v4219
      %v4225 = vunpack.c.l.b16 %v4093
      %v4226 = vunpack.c.h.b16 %v4093
      %v4227 = vunpack.c.l.b16 %v4094
      %v4228 = vunpack.c.h.b16 %v4094
      %v4229 = vpack.c.b16 %v4227, %v4225
      %v4230 = vpack.c.b16 %v4228, %v4226
      %v4235 = vunpack.c.l.b16 %v4111
      %v4236 = vunpack.c.h.b16 %v4111
      %v4237 = vunpack.c.l.b16 %v4112
      %v4238 = vunpack.c.h.b16 %v4112
      %v4239 = vpack.c.b16 %v4237, %v4235
      %v4240 = vpack.c.b16 %v4238, %v4236
      %v4245 = vunpack.c.l.b16 %v4129
      %v4246 = vunpack.c.h.b16 %v4129
      %v4247 = vunpack.c.l.b16 %v4130
      %v4248 = vunpack.c.h.b16 %v4130
      %v4249 = vpack.c.b16 %v4247, %v4245
      %v4250 = vpack.c.b16 %v4248, %v4246
      %v4255 = vunpack.c.l.b16 %v4147
      %v4256 = vunpack.c.h.b16 %v4147
      %v4257 = vunpack.c.l.b16 %v4148
      %v4258 = vunpack.c.h.b16 %v4148
      %v4259 = vpack.c.b16 %v4257, %v4255
      %v4260 = vpack.c.b16 %v4258, %v4256
      %v4265 = vunpack.c.l.b16 %v4149
      %v4266 = vunpack.c.h.b16 %v4149
      %v4267 = vunpack.c.l.b16 %v4150
      %v4268 = vunpack.c.h.b16 %v4150
      %v4269 = vpack.c.b16 %v4267, %v4265
      %v4270 = vpack.c.b16 %v4268, %v4266
      %v4275 = vunpack.c.l.b16 %v4167
      %v4276 = vunpack.c.h.b16 %v4167
      %v4277 = vunpack.c.l.b16 %v4168
      %v4278 = vunpack.c.h.b16 %v4168
      %v4279 = vpack.c.b16 %v4277, %v4275
      %v4280 = vpack.c.b16 %v4278, %v4276
      %v4285 = vunpack.c.l.b16 %v4185
      %v4286 = vunpack.c.h.b16 %v4185
      %v4287 = vunpack.c.l.b16 %v4186
      %v4288 = vunpack.c.h.b16 %v4186
      %v4289 = vpack.c.b16 %v4287, %v4285
      %v4290 = vpack.c.b16 %v4288, %v4286
      %v4295 = vunpack.c.l.b16 %v4203
      %v4296 = vunpack.c.h.b16 %v4203
      %v4297 = vunpack.c.l.b16 %v4204
      %v4298 = vunpack.c.h.b16 %v4204
      %v4299 = vpack.c.b16 %v4297, %v4295
      %v4300 = vpack.c.b16 %v4298, %v4296
      %v4305 = vunpack.c.l.b16 %v4221
      %v4306 = vunpack.c.h.b16 %v4221
      %v4307 = vunpack.c.l.b16 %v4222
      %v4308 = vunpack.c.h.b16 %v4222
      %v4309 = vpack.c.b16 %v4307, %v4305
      %v4310 = vpack.c.b16 %v4308, %v4306
      %v4313 = vld [vmem:[%s37] sm:$0xff]
      %4314 = vrot.lane.b32.xlu0 %v1468, 17
      %v4315 = vpop.permute.xlu0 %4314
      %4316 = vrot.lane.b32.xlu0 %v1469, 17
      %v4317 = vpop.permute.xlu0 %4316
      %v4318 = vsel %vm1009, %v4315, %v4317
      %v4319 = vsel %vm1009, %v4317, %v4315
      %v4320 = vmul.f32 %v4319, %v1012
      %v4321 = vmul.f32 %v4318, %v1013
      %v4322 = vpack.c.bf16 %v4321, %v4320
      %4323 = vrot.lane.b32.xlu0 %v1468, 16
      %v4324 = vpop.permute.xlu0 %4323
      %4325 = vrot.lane.b32.xlu0 %v1469, 16
      %v4326 = vpop.permute.xlu0 %4325
      %v4327 = vsel %vm1026, %v4324, %v4326
      %v4328 = vsel %vm1026, %v4326, %v4324
      %v4329 = vmul.f32 %v4328, %v1029
      %v4330 = vmul.f32 %v4327, %v1030
      %v4331 = vpack.c.bf16 %v4330, %v4329
      %4332 = vrot.lane.b32.xlu0 %v1468, 15
      %v4333 = vpop.permute.xlu0 %4332
      %4334 = vrot.lane.b32.xlu0 %v1469, 15
      %v4335 = vpop.permute.xlu0 %4334
      %v4336 = vsel %vm1043, %v4333, %v4335
      %v4337 = vsel %vm1043, %v4335, %v4333
      %v4338 = vmul.f32 %v4337, %v1046
      %v4339 = vmul.f32 %v4336, %v1047
      %v4340 = vpack.c.bf16 %v4339, %v4338
      %4341 = vrot.lane.b32.xlu0 %v1468, 1
      %v4342 = vpop.permute.xlu0 %4341
      %4343 = vrot.lane.b32.xlu0 %v1469, 1
      %v4344 = vpop.permute.xlu0 %4343
      %v4345 = vsel %vm1060, %v4342, %v4344
      %v4346 = vsel %vm1060, %v4344, %v4342
      %v4347 = vmul.f32 %v4346, %v1063
      %v4348 = vmul.f32 %v4345, %v1064
      %v4349 = vpack.c.bf16 %v4348, %v4347
      %v4350 = vpack.c.bf16 %v1469, %v1468
      %v4351 = vmul.f32 %v1474, %v1086
      %v4352 = vmul.f32 %v1475, %v1087
      %v4353 = vpack.c.bf16 %v4352, %v4351
      %4354 = vrot.lane.b32.xlu0 %v1468, 113
      %v4355 = vpop.permute.xlu0 %4354
      %4356 = vrot.lane.b32.xlu0 %v1469, 113
      %v4357 = vpop.permute.xlu0 %4356
      %v4358 = vsel %vm1100, %v4355, %v4357
      %v4359 = vsel %vm1100, %v4357, %v4355
      %v4360 = vmul.f32 %v4358, %v1103
      %v4361 = vmul.f32 %v4359, %v1104
      %v4362 = vpack.c.bf16 %v4361, %v4360
      %4363 = vrot.lane.b32.xlu0 %v1468, 112
      %v4364 = vpop.permute.xlu0 %4363
      %4365 = vrot.lane.b32.xlu0 %v1469, 112
      %v4366 = vpop.permute.xlu0 %4365
      %v4367 = vsel %vm1117, %v4364, %v4366
      %v4368 = vsel %vm1117, %v4366, %v4364
      %v4369 = vmul.f32 %v4367, %v1120
      %v4370 = vmul.f32 %v4368, %v1121
      %v4371 = vpack.c.bf16 %v4370, %v4369
      %4372 = vrot.lane.b32.xlu0 %v1468, 111
      %v4373 = vpop.permute.xlu0 %4372
      %4374 = vrot.lane.b32.xlu0 %v1469, 111
      %v4375 = vpop.permute.xlu0 %4374
      %v4376 = vsel %vm1134, %v4373, %v4375
      %v4377 = vsel %vm1134, %v4375, %v4373
      %v4378 = vmul.f32 %v4376, %v1137
      %v4379 = vmul.f32 %v4377, %v1138
      %v4380 = vpack.c.bf16 %v4379, %v4378
      %v4382 = vunpack.c.l.b16 %v4322
      %v4383 = vunpack.c.h.b16 %v4322
      %v4384 = vpack.c.b16 %v4382, %v4382
      %v4385 = vpack.c.b16 %v4383, %v4383
      %v4387 = vunpack.c.l.b16 %v4331
      %v4388 = vunpack.c.h.b16 %v4331
      %v4389 = vpack.c.b16 %v4387, %v4387
      %v4390 = vpack.c.b16 %v4388, %v4388
      %v4392 = vunpack.c.l.b16 %v4340
      %v4393 = vunpack.c.h.b16 %v4340
      %v4394 = vpack.c.b16 %v4392, %v4392
      %v4395 = vpack.c.b16 %v4393, %v4393
      %v4397 = vunpack.c.l.b16 %v4349
      %v4398 = vunpack.c.h.b16 %v4349
      %v4399 = vpack.c.b16 %v4397, %v4397
      %v4400 = vpack.c.b16 %v4398, %v4398
      %v4402 = vunpack.c.l.b16 %v4350
      %v4403 = vunpack.c.h.b16 %v4350
      %v4404 = vpack.c.b16 %v4402, %v4402
      %v4405 = vpack.c.b16 %v4403, %v4403
      %v4407 = vunpack.c.l.b16 %v4353
      %v4408 = vunpack.c.h.b16 %v4353
      %v4409 = vpack.c.b16 %v4407, %v4407
      %v4410 = vpack.c.b16 %v4408, %v4408
      %v4412 = vunpack.c.l.b16 %v4362
      %v4413 = vunpack.c.h.b16 %v4362
      %v4414 = vpack.c.b16 %v4412, %v4412
      %v4415 = vpack.c.b16 %v4413, %v4413
      %v4417 = vunpack.c.l.b16 %v4371
      %v4418 = vunpack.c.h.b16 %v4371
      %v4419 = vpack.c.b16 %v4417, %v4417
      %v4420 = vpack.c.b16 %v4418, %v4418
      %v4422 = vunpack.c.l.b16 %v4380
      %v4423 = vunpack.c.h.b16 %v4380
      %v4424 = vpack.c.b16 %v4422, %v4422
      %v4425 = vpack.c.b16 %v4423, %v4423
      %v4428 = vsel %vm1202, %v4384, %v4389
      %v4432 = vsel %vm1202, %v4385, %v4390
      %v4436 = vsel %vm1202, %v4394, %v4399
      %v4440 = vsel %vm1202, %v4395, %v4400
      %v4444 = vsel %vm1202, %v4404, %v4409
      %v4448 = vsel %vm1202, %v4405, %v4410
      %v4452 = vsel %vm1202, %v4414, %v4419
      %v4456 = vsel %vm1202, %v4415, %v4420
      %v4458 = vld [vmem:[%s39] sm:$0xf]
      %v4460 = vsel %vm1432, %v4458, 0
      %v4463 = vsel %vm1202, %v4424, 0
      %v4466 = vsel %vm1202, %v4425, 0
      %4468 = vmatpush.bf16.msra.mxu0 0
      %4469 = vmatpush.bf16.msra.mxu0 0
      %4470 = vmatpush.bf16.msra.mxu0 0
      %4471 = vmatpush.bf16.msra.mxu0 %v4463
      %4472 = vmatpush.bf16.msra.mxu0 %v4452
      %4473 = vmatpush.bf16.msra.mxu0 %v4444
      %4474 = vmatpush.bf16.msra.mxu0 %v4436
      %4475 = vmatpush.bf16.msra.mxu0 %v4428
      %4476 = vmatmul.bf16.gmra.mxu0 %v4460
      %v4477 = vpop.f32.mrf.mxu0
      %v4478 = vadd.f32 0.0, %v4477
      %v4479 = vpop.f32.mrf.mxu0
      %4480 = vdwg.mxu0
      %4481 = vmatpush.bf16.msra.mxu0 0
      %4482 = vmatpush.bf16.msra.mxu0 0
      %4483 = vmatpush.bf16.msra.mxu0 0
      %4484 = vmatpush.bf16.msra.mxu0 %v4466
      %4485 = vmatpush.bf16.msra.mxu0 %v4456
      %4486 = vmatpush.bf16.msra.mxu0 %v4448
      %4487 = vmatpush.bf16.msra.mxu0 %v4440
      %4488 = vmatpush.bf16.msra.mxu0 %v4432
      %4489 = vmatmul.bf16.gmra.mxu0 %v4460
      %v4490 = vpop.f32.mrf.mxu0
      %v4491 = vadd.f32 0.0, %v4490
      %v4492 = vpop.f32.mrf.mxu0
      %4493 = vdwg.mxu0
      %v4495 = vunpack.c.l.b16 %v4313
      %v4496 = vunpack.c.h.b16 %v4313
      %v4497 = vpack.c.b16 %v4495, %v4495
      %v4498 = vpack.c.b16 %v4496, %v4496
      %v4501 = vsel %vm2026, %v4498, 0
      %4503 = vmatpush.bf16.msra.mxu0 %v4299
      %4504 = vmatpush.bf16.msra.mxu0 %v4289
      %4505 = vmatpush.bf16.msra.mxu0 %v4279
      %4506 = vmatpush.bf16.msra.mxu0 %v4269
      %4507 = vmatpush.bf16.msra.mxu0 %v4259
      %4508 = vmatpush.bf16.msra.mxu0 %v4249
      %4509 = vmatpush.bf16.msra.mxu0 %v4239
      %4510 = vmatpush.bf16.msra.mxu0 %v4229
      %4511 = vmatmul.bf16.gmra.mxu0 %v4497
      %v4512 = vpop.f32.mrf.mxu0
      %v4513 = vadd.f32 %v4478, %v4512
      %v4514 = vpop.f32.mrf.mxu0
      %4515 = vdwg.mxu0
      %4516 = vmatpush.bf16.msra.mxu0 0
      %4517 = vmatpush.bf16.msra.mxu0 0
      %4518 = vmatpush.bf16.msra.mxu0 0
      %4519 = vmatpush.bf16.msra.mxu0 0
      %4520 = vmatpush.bf16.msra.mxu0 0
      %4521 = vmatpush.bf16.msra.mxu0 0
      %4522 = vmatpush.bf16.msra.mxu0 0
      %4523 = vmatpush.bf16.msra.mxu0 %v4309
      %4524 = vmatmul.bf16.gmra.mxu0 %v4501
      %v4525 = vpop.f32.mrf.mxu0
      %v4526 = vadd.f32 %v4513, %v4525
      %v4527 = vpop.f32.mrf.mxu0
      %4528 = vdwg.mxu0
      %4529 = vmatpush.bf16.msra.mxu0 %v4300
      %4530 = vmatpush.bf16.msra.mxu0 %v4290
      %4531 = vmatpush.bf16.msra.mxu0 %v4280
      %4532 = vmatpush.bf16.msra.mxu0 %v4270
      %4533 = vmatpush.bf16.msra.mxu0 %v4260
      %4534 = vmatpush.bf16.msra.mxu0 %v4250
      %4535 = vmatpush.bf16.msra.mxu0 %v4240
      %4536 = vmatpush.bf16.msra.mxu0 %v4230
      %4537 = vmatmul.bf16.gmra.mxu0 %v4497
      %v4538 = vpop.f32.mrf.mxu0
      %v4539 = vadd.f32 %v4491, %v4538
      %v4540 = vpop.f32.mrf.mxu0
      %4541 = vdwg.mxu0
      %4542 = vmatpush.bf16.msra.mxu0 0
      %4543 = vmatpush.bf16.msra.mxu0 0
      %4544 = vmatpush.bf16.msra.mxu0 0
      %4545 = vmatpush.bf16.msra.mxu0 0
      %4546 = vmatpush.bf16.msra.mxu0 0
      %4547 = vmatpush.bf16.msra.mxu0 0
      %4548 = vmatpush.bf16.msra.mxu0 0
      %4549 = vmatpush.bf16.msra.mxu0 %v4310
      %4550 = vmatmul.bf16.gmra.mxu0 %v4501
      %v4551 = vpop.f32.mrf.mxu0
      %v4552 = vadd.f32 %v4539, %v4551
      %v4553 = vpop.f32.mrf.mxu0
      %4554 = vdwg.mxu0
      %v4555 = vld [vmem:[%s41] sm:$0xff]
      %4557 = vset.pattern.permute.xlu0 0
      %4558 = vperm.xlu0 %4557, %v4555
      %v4559 = vpop.permute.xlu0 %4558
      %v4561 = vadd.f32 %v4526, %v4559
      %v4562 = vadd.f32 %v4552, %v4559
      %v4563 = vmax.f32 %v4561, 0.0
      %v4564 = vmax.f32 %v4562, 0.0
      %4565 = vrot.lane.b32.xlu0 %v4563, 17
      %v4566 = vpop.permute.xlu0 %4565
      %4567 = vrot.lane.b32.xlu0 %v4564, 17
      %v4568 = vpop.permute.xlu0 %4567
      %v4569 = vsel %vm1009, %v4566, %v4568
      %v4570 = vsel %vm1009, %v4568, %v4566
      %v4571 = vmul.f32 %v4570, %v1012
      %v4572 = vmul.f32 %v4569, %v1013
      %v4573 = vpack.c.bf16 %v4572, %v4571
      %4574 = vrot.lane.b32.xlu0 %v4563, 16
      %v4575 = vpop.permute.xlu0 %4574
      %4576 = vrot.lane.b32.xlu0 %v4564, 16
      %v4577 = vpop.permute.xlu0 %4576
      %v4578 = vsel %vm1026, %v4575, %v4577
      %v4579 = vsel %vm1026, %v4577, %v4575
      %v4580 = vmul.f32 %v4579, %v1029
      %v4581 = vmul.f32 %v4578, %v1030
      %v4582 = vpack.c.bf16 %v4581, %v4580
      %4583 = vrot.lane.b32.xlu0 %v4563, 15
      %v4584 = vpop.permute.xlu0 %4583
      %4585 = vrot.lane.b32.xlu0 %v4564, 15
      %v4586 = vpop.permute.xlu0 %4585
      %v4587 = vsel %vm1043, %v4584, %v4586
      %v4588 = vsel %vm1043, %v4586, %v4584
      %v4589 = vmul.f32 %v4588, %v1046
      %v4590 = vmul.f32 %v4587, %v1047
      %v4591 = vpack.c.bf16 %v4590, %v4589
      %4592 = vrot.lane.b32.xlu0 %v4563, 1
      %v4593 = vpop.permute.xlu0 %4592
      %4594 = vrot.lane.b32.xlu0 %v4564, 1
      %v4595 = vpop.permute.xlu0 %4594
      %v4596 = vsel %vm1060, %v4593, %v4595
      %v4597 = vsel %vm1060, %v4595, %v4593
      %v4598 = vmul.f32 %v4597, %v1063
      %v4599 = vmul.f32 %v4596, %v1064
      %v4600 = vpack.c.bf16 %v4599, %v4598
      %v4601 = vpack.c.bf16 %v4564, %v4563
      %4602 = vrot.lane.b32.xlu0 %v4563, 127
      %v4603 = vpop.permute.xlu0 %4602
      %4604 = vrot.lane.b32.xlu0 %v4564, 127
      %v4605 = vpop.permute.xlu0 %4604
      %v4606 = vsel %vm1083, %v4603, %v4605
      %v4607 = vsel %vm1083, %v4605, %v4603
      %v4608 = vmul.f32 %v4606, %v1086
      %v4609 = vmul.f32 %v4607, %v1087
      %v4610 = vpack.c.bf16 %v4609, %v4608
      %4611 = vrot.lane.b32.xlu0 %v4563, 113
      %v4612 = vpop.permute.xlu0 %4611
      %4613 = vrot.lane.b32.xlu0 %v4564, 113
      %v4614 = vpop.permute.xlu0 %4613
      %v4615 = vsel %vm1100, %v4612, %v4614
      %v4616 = vsel %vm1100, %v4614, %v4612
      %v4617 = vmul.f32 %v4615, %v1103
      %v4618 = vmul.f32 %v4616, %v1104
      %v4619 = vpack.c.bf16 %v4618, %v4617
      %4620 = vrot.lane.b32.xlu0 %v4563, 112
      %v4621 = vpop.permute.xlu0 %4620
      %4622 = vrot.lane.b32.xlu0 %v4564, 112
      %v4623 = vpop.permute.xlu0 %4622
      %v4624 = vsel %vm1117, %v4621, %v4623
      %v4625 = vsel %vm1117, %v4623, %v4621
      %v4626 = vmul.f32 %v4624, %v1120
      %v4627 = vmul.f32 %v4625, %v1121
      %v4628 = vpack.c.bf16 %v4627, %v4626
      %4629 = vrot.lane.b32.xlu0 %v4563, 111
      %v4630 = vpop.permute.xlu0 %4629
      %4631 = vrot.lane.b32.xlu0 %v4564, 111
      %v4632 = vpop.permute.xlu0 %4631
      %v4633 = vsel %vm1134, %v4630, %v4632
      %v4634 = vsel %vm1134, %v4632, %v4630
      %v4635 = vmul.f32 %v4633, %v1137
      %v4636 = vmul.f32 %v4634, %v1138
      %v4637 = vpack.c.bf16 %v4636, %v4635
      %v4639 = vunpack.c.l.b16 %v4573
      %v4640 = vunpack.c.h.b16 %v4573
      %v4641 = vpack.c.b16 %v4639, %v4639
      %v4642 = vpack.c.b16 %v4640, %v4640
      %v4644 = vunpack.c.l.b16 %v4582
      %v4645 = vunpack.c.h.b16 %v4582
      %v4646 = vpack.c.b16 %v4644, %v4644
      %v4647 = vpack.c.b16 %v4645, %v4645
      %v4649 = vunpack.c.l.b16 %v4591
      %v4650 = vunpack.c.h.b16 %v4591
      %v4651 = vpack.c.b16 %v4649, %v4649
      %v4652 = vpack.c.b16 %v4650, %v4650
      %v4654 = vunpack.c.l.b16 %v4600
      %v4655 = vunpack.c.h.b16 %v4600
      %v4656 = vpack.c.b16 %v4654, %v4654
      %v4657 = vpack.c.b16 %v4655, %v4655
      %v4659 = vunpack.c.l.b16 %v4601
      %v4660 = vunpack.c.h.b16 %v4601
      %v4661 = vpack.c.b16 %v4659, %v4659
      %v4662 = vpack.c.b16 %v4660, %v4660
      %v4664 = vunpack.c.l.b16 %v4610
      %v4665 = vunpack.c.h.b16 %v4610
      %v4666 = vpack.c.b16 %v4664, %v4664
      %v4667 = vpack.c.b16 %v4665, %v4665
      %v4669 = vunpack.c.l.b16 %v4619
      %v4670 = vunpack.c.h.b16 %v4619
      %v4671 = vpack.c.b16 %v4669, %v4669
      %v4672 = vpack.c.b16 %v4670, %v4670
      %v4674 = vunpack.c.l.b16 %v4628
      %v4675 = vunpack.c.h.b16 %v4628
      %v4676 = vpack.c.b16 %v4674, %v4674
      %v4677 = vpack.c.b16 %v4675, %v4675
      %v4679 = vunpack.c.l.b16 %v4637
      %v4680 = vunpack.c.h.b16 %v4637
      %v4681 = vpack.c.b16 %v4679, %v4679
      %v4682 = vpack.c.b16 %v4680, %v4680
      %v4685 = vsel %vm1202, %v4641, %v4646
      %v4689 = vsel %vm1202, %v4642, %v4647
      %v4693 = vsel %vm1202, %v4651, %v4656
      %v4697 = vsel %vm1202, %v4652, %v4657
      %v4701 = vsel %vm1202, %v4661, %v4666
      %v4705 = vsel %vm1202, %v4662, %v4667
      %v4709 = vsel %vm1202, %v4671, %v4676
      %v4713 = vsel %vm1202, %v4672, %v4677
      %v4715 = vld [vmem:[%s43] sm:$0xf]
      %v4716 = vld [vmem:[%s45] sm:$0xff]
      %4718 = vset.pattern.permute.xlu0 0
      %4719 = vperm.xlu0 %4718, %v4716
      %v4720 = vpop.permute.xlu0 %4719
      %v4723 = vsel %vm1432, %v4715, 0
      %v4726 = vsel %vm1202, %v4681, 0
      %v4729 = vsel %vm1202, %v4682, 0
      %4731 = vmatpush.bf16.msra.mxu0 0
      %4732 = vmatpush.bf16.msra.mxu0 0
      %4733 = vmatpush.bf16.msra.mxu0 0
      %4734 = vmatpush.bf16.msra.mxu0 %v4726
      %4735 = vmatpush.bf16.msra.mxu0 %v4709
      %4736 = vmatpush.bf16.msra.mxu0 %v4701
      %4737 = vmatpush.bf16.msra.mxu0 %v4693
      %4738 = vmatpush.bf16.msra.mxu0 %v4685
      %4739 = vmatmul.bf16.gmra.mxu0 %v4723
      %v4740 = vpop.f32.mrf.mxu0
      %v4741 = vadd.f32 %v4720, %v4740
      %v4742 = vpop.f32.mrf.mxu0
      %4743 = vdwg.mxu0
      %4744 = vmatpush.bf16.msra.mxu0 0
      %4745 = vmatpush.bf16.msra.mxu0 0
      %4746 = vmatpush.bf16.msra.mxu0 0
      %4747 = vmatpush.bf16.msra.mxu0 %v4729
      %4748 = vmatpush.bf16.msra.mxu0 %v4713
      %4749 = vmatpush.bf16.msra.mxu0 %v4705
      %4750 = vmatpush.bf16.msra.mxu0 %v4697
      %4751 = vmatpush.bf16.msra.mxu0 %v4689
      %4752 = vmatmul.bf16.gmra.mxu0 %v4723
      %v4753 = vpop.f32.mrf.mxu0
      %v4754 = vadd.f32 %v4720, %v4753
      %v4755 = vpop.f32.mrf.mxu0
      %4756 = vdwg.mxu0
      %v4757 = vmax.f32 %v4741, 0.0
      %v4758 = vmax.f32 %v4754, 0.0
      %4759 = vrot.lane.b32.xlu0 %v4757, 17
      %v4760 = vpop.permute.xlu0 %4759
      %4761 = vrot.lane.b32.xlu0 %v4758, 17
      %v4762 = vpop.permute.xlu0 %4761
      %v4763 = vsel %vm1009, %v4760, %v4762
      %v4764 = vsel %vm1009, %v4762, %v4760
      %v4765 = vmul.f32 %v4764, %v1012
      %v4766 = vmul.f32 %v4763, %v1013
      %v4767 = vpack.c.bf16 %v4766, %v4765
      %4768 = vrot.lane.b32.xlu0 %v4757, 16
      %v4769 = vpop.permute.xlu0 %4768
      %4770 = vrot.lane.b32.xlu0 %v4758, 16
      %v4771 = vpop.permute.xlu0 %4770
      %v4772 = vsel %vm1026, %v4769, %v4771
      %v4773 = vsel %vm1026, %v4771, %v4769
      %v4774 = vmul.f32 %v4773, %v1029
      %v4775 = vmul.f32 %v4772, %v1030
      %v4776 = vpack.c.bf16 %v4775, %v4774
      %4777 = vrot.lane.b32.xlu0 %v4757, 15
      %v4778 = vpop.permute.xlu0 %4777
      %4779 = vrot.lane.b32.xlu0 %v4758, 15
      %v4780 = vpop.permute.xlu0 %4779
      %v4781 = vsel %vm1043, %v4778, %v4780
      %v4782 = vsel %vm1043, %v4780, %v4778
      %v4783 = vmul.f32 %v4782, %v1046
      %v4784 = vmul.f32 %v4781, %v1047
      %v4785 = vpack.c.bf16 %v4784, %v4783
      %4786 = vrot.lane.b32.xlu0 %v4757, 1
      %v4787 = vpop.permute.xlu0 %4786
      %4788 = vrot.lane.b32.xlu0 %v4758, 1
      %v4789 = vpop.permute.xlu0 %4788
      %v4790 = vsel %vm1060, %v4787, %v4789
      %v4791 = vsel %vm1060, %v4789, %v4787
      %v4792 = vmul.f32 %v4791, %v1063
      %v4793 = vmul.f32 %v4790, %v1064
      %v4794 = vpack.c.bf16 %v4793, %v4792
      %v4795 = vpack.c.bf16 %v4758, %v4757
      %4796 = vrot.lane.b32.xlu0 %v4757, 127
      %v4797 = vpop.permute.xlu0 %4796
      %4798 = vrot.lane.b32.xlu0 %v4758, 127
      %v4799 = vpop.permute.xlu0 %4798
      %v4800 = vsel %vm1083, %v4797, %v4799
      %v4801 = vsel %vm1083, %v4799, %v4797
      %v4802 = vmul.f32 %v4800, %v1086
      %v4803 = vmul.f32 %v4801, %v1087
      %v4804 = vpack.c.bf16 %v4803, %v4802
      %4805 = vrot.lane.b32.xlu0 %v4757, 113
      %v4806 = vpop.permute.xlu0 %4805
      %4807 = vrot.lane.b32.xlu0 %v4758, 113
      %v4808 = vpop.permute.xlu0 %4807
      %v4809 = vsel %vm1100, %v4806, %v4808
      %v4810 = vsel %vm1100, %v4808, %v4806
      %v4811 = vmul.f32 %v4809, %v1103
      %v4812 = vmul.f32 %v4810, %v1104
      %v4813 = vpack.c.bf16 %v4812, %v4811
      %4814 = vrot.lane.b32.xlu0 %v4757, 112
      %v4815 = vpop.permute.xlu0 %4814
      %4816 = vrot.lane.b32.xlu0 %v4758, 112
      %v4817 = vpop.permute.xlu0 %4816
      %v4818 = vsel %vm1117, %v4815, %v4817
      %v4819 = vsel %vm1117, %v4817, %v4815
      %v4820 = vmul.f32 %v4818, %v1120
      %v4821 = vmul.f32 %v4819, %v1121
      %v4822 = vpack.c.bf16 %v4821, %v4820
      %4823 = vrot.lane.b32.xlu0 %v4757, 111
      %v4824 = vpop.permute.xlu0 %4823
      %4825 = vrot.lane.b32.xlu0 %v4758, 111
      %v4826 = vpop.permute.xlu0 %4825
      %v4827 = vsel %vm1134, %v4824, %v4826
      %v4828 = vsel %vm1134, %v4826, %v4824
      %v4829 = vmul.f32 %v4827, %v1137
      %v4830 = vmul.f32 %v4828, %v1138
      %v4831 = vpack.c.bf16 %v4830, %v4829
      %v4833 = vunpack.c.l.b16 %v4767
      %v4834 = vunpack.c.h.b16 %v4767
      %v4835 = vpack.c.b16 %v4833, %v4833
      %v4836 = vpack.c.b16 %v4834, %v4834
      %v4838 = vunpack.c.l.b16 %v4776
      %v4839 = vunpack.c.h.b16 %v4776
      %v4840 = vpack.c.b16 %v4838, %v4838
      %v4841 = vpack.c.b16 %v4839, %v4839
      %v4843 = vunpack.c.l.b16 %v4785
      %v4844 = vunpack.c.h.b16 %v4785
      %v4845 = vpack.c.b16 %v4843, %v4843
      %v4846 = vpack.c.b16 %v4844, %v4844
      %v4848 = vunpack.c.l.b16 %v4794
      %v4849 = vunpack.c.h.b16 %v4794
      %v4850 = vpack.c.b16 %v4848, %v4848
      %v4851 = vpack.c.b16 %v4849, %v4849
      %v4853 = vunpack.c.l.b16 %v4795
      %v4854 = vunpack.c.h.b16 %v4795
      %v4855 = vpack.c.b16 %v4853, %v4853
      %v4856 = vpack.c.b16 %v4854, %v4854
      %v4858 = vunpack.c.l.b16 %v4804
      %v4859 = vunpack.c.h.b16 %v4804
      %v4860 = vpack.c.b16 %v4858, %v4858
      %v4861 = vpack.c.b16 %v4859, %v4859
      %v4863 = vunpack.c.l.b16 %v4813
      %v4864 = vunpack.c.h.b16 %v4813
      %v4865 = vpack.c.b16 %v4863, %v4863
      %v4866 = vpack.c.b16 %v4864, %v4864
      %v4868 = vunpack.c.l.b16 %v4822
      %v4869 = vunpack.c.h.b16 %v4822
      %v4870 = vpack.c.b16 %v4868, %v4868
      %v4871 = vpack.c.b16 %v4869, %v4869
      %v4873 = vunpack.c.l.b16 %v4831
      %v4874 = vunpack.c.h.b16 %v4831
      %v4875 = vpack.c.b16 %v4873, %v4873
      %v4876 = vpack.c.b16 %v4874, %v4874
      %v4879 = vsel %vm1202, %v4835, %v4840
      %v4883 = vsel %vm1202, %v4836, %v4841
      %v4887 = vsel %vm1202, %v4845, %v4850
      %v4891 = vsel %vm1202, %v4846, %v4851
      %v4895 = vsel %vm1202, %v4855, %v4860
      %v4899 = vsel %vm1202, %v4856, %v4861
      %v4903 = vsel %vm1202, %v4865, %v4870
      %v4907 = vsel %vm1202, %v4866, %v4871
      %v4909 = vld [vmem:[%s47] sm:$0x1]
      %v4910 = vld [vmem:[#allocation2] sm:$0x1]
      %4912 = vset.pattern.permute.xlu0 0
      %4913 = vperm.xlu0 %4912, %v4910
      %v4914 = vpop.permute.xlu0 %4913
      %v4916 = vperm.slane %v4914, 0
      %v4918 = vsel %vm1432, %v4909, 0
      %v4921 = vsel %vm1202, %v4875, 0
      %v4924 = vsel %vm1202, %v4876, 0
      %4926 = vmatpush.bf16.msra.mxu0 0
      %4927 = vmatpush.bf16.msra.mxu0 0
      %4928 = vmatpush.bf16.msra.mxu0 0
      %4929 = vmatpush.bf16.msra.mxu0 %v4921
      %4930 = vmatpush.bf16.msra.mxu0 %v4903
      %4931 = vmatpush.bf16.msra.mxu0 %v4895
      %4932 = vmatpush.bf16.msra.mxu0 %v4887
      %4933 = vmatpush.bf16.msra.mxu0 %v4879
      %4934 = vmatmul.bf16.gmra.mxu0 %v4918
      %v4935 = vpop.f32.mrf.mxu0
      %v4936 = vadd.f32 %v4916, %v4935
      %v4937 = vpop.f32.mrf.mxu0
      %4938 = vdwg.mxu0
      %4939 = vmatpush.bf16.msra.mxu0 0
      %4940 = vmatpush.bf16.msra.mxu0 0
      %4941 = vmatpush.bf16.msra.mxu0 0
      %4942 = vmatpush.bf16.msra.mxu0 %v4924
      %4943 = vmatpush.bf16.msra.mxu0 %v4907
      %4944 = vmatpush.bf16.msra.mxu0 %v4899
      %4945 = vmatpush.bf16.msra.mxu0 %v4891
      %4946 = vmatpush.bf16.msra.mxu0 %v4883
      %4947 = vmatmul.bf16.gmra.mxu0 %v4918
      %v4948 = vpop.f32.mrf.mxu0
      %v4949 = vadd.f32 %v4916, %v4948
      %v4950 = vpop.f32.mrf.mxu0
      %4951 = vdwg.mxu0
      %v4954 = vrot.slane %v4949, 7
      %vm4955 = vcmask 1040384
      %v4956 = vsel %vm4955, %v4936, %v4954
      %v4958 = vlaneseq
      %vm4959 = vcmp.ge.s32.totalorder %v4958, 0
      %vm4960 = vcmp.lt.s32.totalorder %v4958, 256
      %vm4961 = vmand %vm4959, %vm4960
      %4962 = vst.msk [vmem:[%s986] sm:$0x3] %vm4961, %v4956
      %p4963 = scmp.lt.s32.totalorder %s78, 1
      %s4964 = scalar_select %p4963, %s78, 1
      %s4965 = smul.addr %s4964, 2
      %s4966 = scalar_lea.vmem %s65, %s4965
      // Predicated region
      $region149: #{net4ch_forward.1} parent=147 // pred_check
        %p4967 = pneg %p773
      $region150: #{net4ch_forward.1} parent=147 // pred_check_branch
        %4969 = sbr.rel (%p4967) target = $region152
      $region151: #{net4ch_forward.1} parent=147 // pred_region
        _
      $region152: #{net4ch_forward.1} parent=147 // pred_fallthru
        _
    $region148: #{net4ch_forward.1} parent=5 // pred_fallthru
      _
    %p4970 = scmp.le.s32.totalorder 2, %s73
    // Predicated region
    $region153: #{net4ch_forward.1} parent=5 // pred_check
      %p4971 = pneg %p4970
    $region154: #{net4ch_forward.1} parent=5 // pred_check_branch
      %4973 = sbr.rel (%p4971) target = $region156
    $region155: #{net4ch_forward.1} parent=5 // pred_region
      %s4974 = ssub.s32 %s73, 2
      // Predicated region
      $region157: #{net4ch_forward.1} parent=155 // pred_check
        %p4975 = pneg %p779
      $region158: #{net4ch_forward.1} parent=155 // pred_check_branch
        %4977 = sbr.rel (%p4975) target = $region160
      $region159: #{net4ch_forward.1} parent=155 // pred_region
        %p4978 = scmp.lt.s32.totalorder %s79, 1
        %s4979 = scalar_select %p4978, %s79, 1
        %s4980 = smul.addr %s4979, 2
        %s4981 = scalar_lea.vmem %s65, %s4980
      $region160: #{net4ch_forward.1} parent=155 // pred_fallthru
        _
    $region156: #{net4ch_forward.1} parent=5 // pred_fallthru
      _
  $region6: #{net4ch_forward.1} parent=0 // loop_footer
    %s77 = sadd.s32 1, %s73
  $region7: #{net4ch_forward.1} parent=0 // loop_footer_branch
    %72 = sbr.rel target = $region3
  $region8: #{net4ch_forward.1} parent=0 // loop_exit
    _

</llo_original>
